<compile_context>
chip_gen: v6e
topology: v6e:2x2x1
jax: 0.10.0
libtpu: 0.0.40
codegen_flags: <defaults>
</compile_context>

<pallas_src>
import functools
from math import prod

import jax
import jax.numpy as jnp
from jax.experimental import pallas as pl
from jax.experimental.pallas import tpu as pltpu

NEG_SLOPE = 0.01            # torch.nn.LeakyReLU default
BN_EPS = 1e-5               # torch.nn.BatchNorm2d default
LANE = 128                  # vreg lane width: pad K and N to multiples of this
MXU_DTYPE = jnp.bfloat16    # MXU operand dtype (f32 accumulation)


# ----------------------------------------------------------------------------
# Pallas kernel: the single fused matmul  act(x @ w + b)
# (BN scale/shift and the residual conv are pre-folded into w / b)
# ----------------------------------------------------------------------------
def _mm_bias_act_kernel(act, x_ref, w_ref, b_ref, o_ref):
    y = jnp.dot(x_ref[...], w_ref[...], preferred_element_type=jnp.float32)
    y = y + b_ref[...]
    if act == "relu_leaky":            # DownConvBlockInternal: relu_() then leaky
        y = jnp.maximum(y, 0.0)
    if act in ("leaky", "relu_leaky"):
        y = jnp.where(y > 0, y, NEG_SLOPE * y)
    o_ref[...] = y


def _round_up(v, m):
    return ((v + m - 1) // m) * m


def _choose_tm(M):
    # Target >=2 grid steps (software pipelining + megacore) with TM <= 512,
    # but never emit a huge single block; tiny M gets one full-height tile.
    if M >= 1024:
        return 512
    if M >= 256:
        return 128
    if M >= 128:
        return 64
    return _round_up(M, 8)


def mm_bias_act(x, w, b, act="none"):
    """act(x @ w + b).  x:(M,K) f32, w:(K,N) f32, b:(N,) f32 -> (M,N) f32."""
    M, K = x.shape
    K2, N = w.shape
    assert K2 == K
    Kp = _round_up(K, LANE)        # lane-dense / aligned contraction dim
    Np = _round_up(N, LANE)        # lane-dense output (unmasked vst)
    TM = _choose_tm(M)
    Mp = _round_up(M, TM)

    xp = jnp.pad(x.astype(MXU_DTYPE), ((0, Mp - M), (0, Kp - K)))
    wp = jnp.pad(w.astype(MXU_DTYPE), ((0, Kp - K), (0, Np - N)))
    bp = jnp.pad(b.astype(jnp.float32).reshape(1, N), ((0, 0), (0, Np - N)))

    cost = pl.CostEstimate(
        flops=2 * Mp * Kp * Np,
        transcendentals=0,
        bytes_accessed=Mp * Kp * 2 + Kp * Np * 2 + Np * 4 + Mp * Np * 4)

    y = pl.pallas_call(
        functools.partial(_mm_bias_act_kernel, act),
        out_shape=jax.ShapeDtypeStruct((Mp, Np), jnp.float32),
        grid=(Mp // TM,),
        in_specs=[
            pl.BlockSpec((TM, Kp), lambda i: (i, 0)),
            pl.BlockSpec((Kp, Np), lambda i: (0, 0)),
            pl.BlockSpec((1, Np), lambda i: (0, 0)),
        ],
        out_specs=pl.BlockSpec((TM, Np), lambda i: (i, 0)),
        compiler_params=pltpu.CompilerParams(
            dimension_semantics=("parallel",),
            vmem_limit_bytes=32 * 1024 * 1024),
        cost_estimate=cost,
    )(xp, wp, bp)
    return y[:M, :N]


# ----------------------------------------------------------------------------
# im2col / weight-layout glue (plain JAX, NHWC activations)
# ----------------------------------------------------------------------------
def _im2col(x, kh, kw, stride, pad):
    """x: (B,H,W,C) -> patches (B*OH*OW, KH*KW*C), rows ordered (b, oh, ow)."""
    B, H, W, C = x.shape
    xp = jnp.pad(x, ((0, 0), (pad, pad), (pad, pad), (0, 0)))
    OH = (H + 2 * pad - kh) // stride + 1
    OW = (W + 2 * pad - kw) // stride + 1
    cols = []
    for i in range(kh):
        for j in range(kw):
            cols.append(xp[:, i:i + (OH - 1) * stride + 1:stride,
                            j:j + (OW - 1) * stride + 1:stride, :])
    p = jnp.stack(cols, axis=3)                     # (B, OH, OW, KH*KW, C)
    return p.reshape(B * OH * OW, kh * kw * C), OH, OW


def _wmat(w):
    """torch weight (Cout, Cin, KH, KW) -> matmul rhs (KH*KW*Cin, Cout)."""
    cout = w.shape[0]
    return jnp.transpose(w, (2, 3, 1, 0)).reshape(-1, cout)


def _bn_fold(bn):
    gamma, beta, mean, var = bn
    scale = gamma / jnp.sqrt(var + BN_EPS)
    shift = beta - mean * scale
    return scale, shift


def conv2d(x, w, b, stride, pad, act="none"):
    """Plain conv (NHWC activations) via im2col + Pallas matmul."""
    B = x.shape[0]
    cout = w.shape[0]
    patches, OH, OW = _im2col(x, w.shape[2], w.shape[3], stride, pad)
    y = mm_bias_act(patches, _wmat(w), b, act=act)
    return y.reshape(B, OH, OW, cout)


# ----------------------------------------------------------------------------
# Fused external + internal down-block pair (one loop iteration of forward)
# ----------------------------------------------------------------------------
def down_block_pair(x, p_ext, p_int, r_ext, r_int):
    """Returns (ext_out, int_out) in NHWC.

    Fusions vs. the naive per-conv lowering:
      * the two 3x3 convs (ext: c_i->c_i, int: c_i->c_n) share their im2col
        patches and run as one matmul (concatenated output columns),
      * each block tail (last conv + BatchNorm + residual 1x1 conv + add +
        activation) is one matmul: BN folded into weight columns / bias and
        the residual conv folded in by concatenating along K.
    """
    B, H, W, _ = x.shape
    c_e = p_ext["w1"].shape[0]        # c_i
    c_n = p_int["w1"].shape[0]        # c_list[i+1]
    c_last = p_ext["w3"].shape[0]     # c_list[-1]

    # ---- shared 3x3 (stride 1, pad 1) + LeakyReLU --------------------------
    patches3, _, _ = _im2col(x, 3, 3, 1, 1)
    w3x3 = jnp.concatenate([_wmat(p_ext["w1"]), _wmat(p_int["w1"])], axis=1)
    b3x3 = jnp.concatenate([p_ext["b1"], p_int["b1"]])
    h = mm_bias_act(patches3, w3x3, b3x3, act="leaky").reshape(B, H, W, c_e + c_n)
    h_ext, h_int = h[..., :c_e], h[..., c_e:]

    # ---- external branch ---------------------------------------------------
    # 5x5 (stride 1, pad 2), no activation
    p5, _, _ = _im2col(h_ext, 5, 5, 1, 2)
    g = mm_bias_act(p5, _wmat(p_ext["w2"]), p_ext["b2"]).reshape(B, H, W, c_e)
    # tail: [1x1 stride r + BN] + [res 1x1 stride r] + add + LeakyReLU (fused)
    scale, shift = _bn_fold(p_ext["bn"])
    g_sub = g[:, ::r_ext, ::r_ext, :]
    x_sub = x[:, ::r_ext, ::r_ext, :]
    OHs, OWs = g_sub.shape[1], g_sub.shape[2]
    lhs = jnp.concatenate([g_sub.reshape(B * OHs * OWs, c_e),
                           x_sub.reshape(B * OHs * OWs, c_e)], axis=1)
    w_cat = jnp.concatenate([_wmat(p_ext["w3"]) * scale[None, :],
                             _wmat(p_ext["res_w"])], axis=0)
    b_cat = p_ext["b3"] * scale + shift + p_ext["res_b"]
    ext_out = mm_bias_act(lhs, w_cat, b_cat, act="leaky")
    ext_out = ext_out.reshape(B, OHs, OWs, c_last)

    # ---- internal branch ---------------------------------------------------
    # tail: [5x5 stride r pad 2 + BN] + [res 1x1 stride r] + add + relu + leaky
    scale, shift = _bn_fold(p_int["bn"])
    p5i, OHi, OWi = _im2col(h_int, 5, 5, r_int, 2)
    x_sub = x[:, ::r_int, ::r_int, :]
    lhs = jnp.concatenate([p5i, x_sub.reshape(B * OHi * OWi, c_e)], axis=1)
    w_cat = jnp.concatenate([_wmat(p_int["w2"]) * scale[None, :],
                             _wmat(p_int["res_w"])], axis=0)
    b_cat = p_int["b2"] * scale + shift + p_int["res_b"]
    int_out = mm_bias_act(lhs, w_cat, b_cat, act="relu_leaky")
    int_out = int_out.reshape(B, OHi, OWi, c_n)

    return ext_out, int_out


# ----------------------------------------------------------------------------
# ConvEmbedding forward (NCHW in/out to match the torch module)
# ----------------------------------------------------------------------------
def conv_embedding_forward(inp_nchw, params, r_list, f):
    x = jnp.transpose(inp_nchw, (0, 2, 3, 1))            # NCHW -> NHWC, once
    num_blocks = len(params["int"])
    chunks = []
    for i_b in range(num_blocks):
        r_int = r_list[i_b]
        r_ext = prod(r_list[i_b:])
        ext_out, x = down_block_pair(x, params["ext"][i_b], params["int"][i_b],
                                     r_ext, r_int)
        chunks.append(ext_out)
    chunks.append(x)
    res = jnp.concatenate(chunks, axis=-1)               # torch.cat(dim=1)
    out = conv2d(res, params["cc_w"], params["cc_b"], stride=1, pad=0)
    out = conv2d(out, params["proj_w"], params["proj_b"],
                 stride=f // 4, pad=(f - 1) // 2)
    return jnp.transpose(out, (0, 3, 1, 2))              # back to NCHW


# ----------------------------------------------------------------------------
# Deterministic parameter init (shapes mirror nn.Module __init__)
# ----------------------------------------------------------------------------
def init_params(key, r_list, c_list, c_o, f):
    keys = iter(jax.random.split(key, 256))

    def conv_p(cin, cout, k):
        fan_in = cin * k * k
        w = jax.random.normal(next(keys), (cout, cin, k, k), jnp.float32) / jnp.sqrt(fan_in)
        b = 0.05 * jax.random.normal(next(keys), (cout,), jnp.float32)
        return w, b

    def bn_p(c):
        gamma = 1.0 + 0.1 * jax.random.normal(next(keys), (c,), jnp.float32)
        beta = 0.1 * jax.random.normal(next(keys), (c,), jnp.float32)
        mean = 0.1 * jax.random.normal(next(keys), (c,), jnp.float32)
        var = 1.0 + 0.1 * jnp.abs(jax.random.normal(next(keys), (c,), jnp.float32))
        return gamma, beta, mean, var

    num_blocks = len(r_list)
    params = {"ext": [], "int": []}
    for i_b in range(num_blocks):
        c_i, c_n, c_last = c_list[i_b], c_list[i_b + 1], c_list[-1]
        # internal block: c_i -> c_n, stride r_list[i_b]
        rw, rb = conv_p(c_i, c_n, 1)
        w1, b1 = conv_p(c_i, c_n, 3)
        w2, b2 = conv_p(c_n, c_n, 5)
        params["int"].append(dict(res_w=rw, res_b=rb, w1=w1, b1=b1,
                                  w2=w2, b2=b2, bn=bn_p(c_n)))
        # external block: c_i -> c_last, stride prod(r_list[i_b:])
        rw, rb = conv_p(c_i, c_last, 1)
        w1, b1 = conv_p(c_i, c_i, 3)
        w2, b2 = conv_p(c_i, c_i, 5)
        w3, b3 = conv_p(c_i, c_last, 1)
        params["ext"].append(dict(res_w=rw, res_b=rb, w1=w1, b1=b1, w2=w2, b2=b2,
                                  w3=w3, b3=b3, bn=bn_p(c_last)))
    cc_in = c_list[-1] * (num_blocks + 1)
    params["cc_w"], params["cc_b"] = conv_p(cc_in, c_o, 1)
    params["proj_w"], params["proj_b"] = conv_p(c_o, c_o, f)  # frozen in torch
    return params


if __name__ == "__main__":
    init_dict = dict(
        sampling_ratio_list=[2, 2],
        channels_list=[4, 8, 16],
        num_out_channels=32,
        proj_filter_size=8,
        dropout=0.0,  # declared in torch __init__ but unused in forward
    )
    key = jax.random.PRNGKey(0)
    k_x, k_p = jax.random.split(key)
    x = jax.random.normal(k_x, (2, 4, 16, 16), jnp.float32)  # NCHW
    params = init_params(k_p, init_dict["sampling_ratio_list"],
                         init_dict["channels_list"],
                         init_dict["num_out_channels"],
                         init_dict["proj_filter_size"])

    fwd = jax.jit(conv_embedding_forward, static_argnums=(2, 3))
    out = fwd(x, params,
              tuple(init_dict["sampling_ratio_list"]),
              init_dict["proj_filter_size"])
    out = jax.block_until_ready(out)

    # f=8 -> proj stride 2, pad 3; spatial 16 -> 4 (two stride-2 blocks) -> 2
    assert out.shape == (2, init_dict["num_out_channels"], 2, 2), out.shape
    assert out.dtype == jnp.float32
    assert bool(jnp.all(jnp.isfinite(out)))
    print("KERNEL_OK")
</pallas_src>

<mosaic_0001>
module attributes {stable_mosaic.version = 11 : i64} {
  func.func @_mm_bias_act_kernel(%arg0: i32, %arg1: memref<128x128xbf16, #tpu.memory_space<vmem>>, %arg2: memref<128x128xbf16, #tpu.memory_space<vmem>>, %arg3: memref<1x128xf32, #tpu.memory_space<vmem>>, %arg4: memref<128x128xf32, #tpu.memory_space<vmem>>) attributes {dimension_semantics = [#tpu.dimension_semantics<parallel>], iteration_bounds = array<i64: 4>, scalar_prefetch = 0 : i64, scratch_operands = 0 : i64, tpu.core_type = #tpu.core_type<tc>, window_params = [{transform_indices = @transform_0, window_bounds = array<i64: 128, 128>}, {pipeline_mode = #tpu.pipeline_mode<synchronous>, transform_indices = @transform_1, window_bounds = array<i64: 128, 128>}, {pipeline_mode = #tpu.pipeline_mode<synchronous>, transform_indices = @transform_2, window_bounds = array<i64: 1, 128>}, {transform_indices = @transform_3, window_bounds = array<i64: 128, 128>}]} {
    %c0 = arith.constant 0 : index
    %c0_0 = arith.constant 0 : index
    %0 = vector.load %arg1[%c0, %c0_0] : memref<128x128xbf16, #tpu.memory_space<vmem>>, vector<128x128xbf16>
    %c0_1 = arith.constant 0 : index
    %c0_2 = arith.constant 0 : index
    %1 = vector.load %arg2[%c0_1, %c0_2] : memref<128x128xbf16, #tpu.memory_space<vmem>>, vector<128x128xbf16>
    %cst = arith.constant dense<0.000000e+00> : vector<128x128xf32>
    %2 = tpu.matmul %0, %1, %cst {dimension_numbers = #tpu.dot_dimension_numbers<[1], [0], [0], [1], [0, 0, 1, 1], [], []>} : vector<128x128xbf16>, vector<128x128xbf16>, vector<128x128xf32> -> vector<128x128xf32>
    %c0_3 = arith.constant 0 : index
    %c0_4 = arith.constant 0 : index
    %3 = vector.load %arg3[%c0_3, %c0_4] : memref<1x128xf32, #tpu.memory_space<vmem>>, vector<1x128xf32>
    %4 = vector.broadcast %3 : vector<1x128xf32> to vector<128x128xf32>
    %5 = arith.addf %2, %4 : vector<128x128xf32>
    %cst_5 = arith.constant 0.000000e+00 : f32
    %6 = vector.broadcast %cst_5 : f32 to vector<128x128xf32>
    %7 = arith.cmpf ogt, %5, %6 : vector<128x128xf32>
    %cst_6 = arith.constant 0.00999999977 : f32
    %8 = vector.broadcast %cst_6 : f32 to vector<128x128xf32>
    %9 = arith.mulf %8, %5 : vector<128x128xf32>
    %10 = arith.select %7, %5, %9 : vector<128x128xi1>, vector<128x128xf32>
    %c0_7 = arith.constant 0 : index
    %c0_8 = arith.constant 0 : index
    %11 = vector.load %arg4[%c0_7, %c0_8] : memref<128x128xf32, #tpu.memory_space<vmem>>, vector<128x128xf32>
    tpu.vector_store %arg4[%c0_7, %c0_8], %10 {strides = array<i32>} : memref<128x128xf32, #tpu.memory_space<vmem>>, vector<128x128xf32>,
    return
  }
  func.func @transform_0(%arg0: i32) -> (i32, i32) {
    %c0_i32 = arith.constant 0 : i32
    %c0_i32_0 = arith.constant 0 : i32
    return %arg0, %c0_i32 : i32, i32
  }
  func.func @transform_1(%arg0: i32) -> (i32, i32) {
    %c0_i32 = arith.constant 0 : i32
    %c0_i32_0 = arith.constant 0 : i32
    %c0_i32_1 = arith.constant 0 : i32
    return %c0_i32, %c0_i32_0 : i32, i32
  }
  func.func @transform_2(%arg0: i32) -> (i32, i32) {
    %c0_i32 = arith.constant 0 : i32
    %c0_i32_0 = arith.constant 0 : i32
    %c0_i32_1 = arith.constant 0 : i32
    return %c0_i32, %c0_i32_0 : i32, i32
  }
  func.func @transform_3(%arg0: i32) -> (i32, i32) {
    %c0_i32 = arith.constant 0 : i32
    %c0_i32_0 = arith.constant 0 : i32
    return %arg0, %c0_i32 : i32, i32
  }
}

module attributes {stable_mosaic.version = 11 : i64} {
  func.func @_mm_bias_act_kernel(%arg0: i32, %arg1: memref<128x128xbf16, #tpu.memory_space<vmem>>, %arg2: memref<128x128xbf16, #tpu.memory_space<vmem>>, %arg3: memref<1x128xf32, #tpu.memory_space<vmem>>, %arg4: memref<128x128xf32, #tpu.memory_space<vmem>>) attributes {dimension_semantics = [#tpu.dimension_semantics<parallel>], iteration_bounds = array<i64: 4>, scalar_prefetch = 0 : i64, scratch_operands = 0 : i64, tpu.core_type = #tpu.core_type<tc>, window_params = [{transform_indices = @transform_0, window_bounds = array<i64: 128, 128>}, {pipeline_mode = #tpu.pipeline_mode<synchronous>, transform_indices = @transform_1, window_bounds = array<i64: 128, 128>}, {pipeline_mode = #tpu.pipeline_mode<synchronous>, transform_indices = @transform_2, window_bounds = array<i64: 1, 128>}, {transform_indices = @transform_3, window_bounds = array<i64: 128, 128>}]} {
    %c0 = arith.constant 0 : index
    %c0_0 = arith.constant 0 : index
    %0 = vector.load %arg1[%c0, %c0_0] : memref<128x128xbf16, #tpu.memory_space<vmem>>, vector<128x128xbf16>
    %c0_1 = arith.constant 0 : index
    %c0_2 = arith.constant 0 : index
    %1 = vector.load %arg2[%c0_1, %c0_2] : memref<128x128xbf16, #tpu.memory_space<vmem>>, vector<128x128xbf16>
    %cst = arith.constant dense<0.000000e+00> : vector<128x128xf32>
    %2 = tpu.matmul %0, %1, %cst {dimension_numbers = #tpu.dot_dimension_numbers<[1], [0], [0], [1], [0, 0, 1, 1], [], []>} : vector<128x128xbf16>, vector<128x128xbf16>, vector<128x128xf32> -> vector<128x128xf32>
    %c0_3 = arith.constant 0 : index
    %c0_4 = arith.constant 0 : index
    %3 = vector.load %arg3[%c0_3, %c0_4] : memref<1x128xf32, #tpu.memory_space<vmem>>, vector<1x128xf32>
    %4 = vector.broadcast %3 : vector<1x128xf32> to vector<128x128xf32>
    %5 = arith.addf %2, %4 : vector<128x128xf32>
    %c0_5 = arith.constant 0 : index
    %c0_6 = arith.constant 0 : index
    %6 = vector.load %arg4[%c0_5, %c0_6] : memref<128x128xf32, #tpu.memory_space<vmem>>, vector<128x128xf32>
    tpu.vector_store %arg4[%c0_5, %c0_6], %5 {strides = array<i32>} : memref<128x128xf32, #tpu.memory_space<vmem>>, vector<128x128xf32>,
    return
  }
  func.func @transform_0(%arg0: i32) -> (i32, i32) {
    %c0_i32 = arith.constant 0 : i32
    %c0_i32_0 = arith.constant 0 : i32
    return %arg0, %c0_i32 : i32, i32
  }
  func.func @transform_1(%arg0: i32) -> (i32, i32) {
    %c0_i32 = arith.constant 0 : i32
    %c0_i32_0 = arith.constant 0 : i32
    %c0_i32_1 = arith.constant 0 : i32
    return %c0_i32, %c0_i32_0 : i32, i32
  }
  func.func @transform_2(%arg0: i32) -> (i32, i32) {
    %c0_i32 = arith.constant 0 : i32
    %c0_i32_0 = arith.constant 0 : i32
    %c0_i32_1 = arith.constant 0 : i32
    return %c0_i32, %c0_i32_0 : i32, i32
  }
  func.func @transform_3(%arg0: i32) -> (i32, i32) {
    %c0_i32 = arith.constant 0 : i32
    %c0_i32_0 = arith.constant 0 : i32
    return %arg0, %c0_i32 : i32, i32
  }
}

module attributes {stable_mosaic.version = 11 : i64} {
  func.func @_mm_bias_act_kernel(%arg0: i32, %arg1: memref<32x128xbf16, #tpu.memory_space<vmem>>, %arg2: memref<128x128xbf16, #tpu.memory_space<vmem>>, %arg3: memref<1x128xf32, #tpu.memory_space<vmem>>, %arg4: memref<32x128xf32, #tpu.memory_space<vmem>>) attributes {dimension_semantics = [#tpu.dimension_semantics<parallel>], iteration_bounds = array<i64: 1>, scalar_prefetch = 0 : i64, scratch_operands = 0 : i64, tpu.core_type = #tpu.core_type<tc>, window_params = [{transform_indices = @transform_0, window_bounds = array<i64: 32, 128>}, {pipeline_mode = #tpu.pipeline_mode<synchronous>, transform_indices = @transform_1, window_bounds = array<i64: 128, 128>}, {pipeline_mode = #tpu.pipeline_mode<synchronous>, transform_indices = @transform_2, window_bounds = array<i64: 1, 128>}, {transform_indices = @transform_3, window_bounds = array<i64: 32, 128>}]} {
    %c0 = arith.constant 0 : index
    %c0_0 = arith.constant 0 : index
    %0 = vector.load %arg1[%c0, %c0_0] : memref<32x128xbf16, #tpu.memory_space<vmem>>, vector<32x128xbf16>
    %c0_1 = arith.constant 0 : index
    %c0_2 = arith.constant 0 : index
    %1 = vector.load %arg2[%c0_1, %c0_2] : memref<128x128xbf16, #tpu.memory_space<vmem>>, vector<128x128xbf16>
    %cst = arith.constant dense<0.000000e+00> : vector<32x128xf32>
    %2 = tpu.matmul %0, %1, %cst {dimension_numbers = #tpu.dot_dimension_numbers<[1], [0], [0], [1], [0, 0, 1, 1], [], []>} : vector<32x128xbf16>, vector<128x128xbf16>, vector<32x128xf32> -> vector<32x128xf32>
    %c0_3 = arith.constant 0 : index
    %c0_4 = arith.constant 0 : index
    %3 = vector.load %arg3[%c0_3, %c0_4] : memref<1x128xf32, #tpu.memory_space<vmem>>, vector<1x128xf32>
    %4 = vector.broadcast %3 : vector<1x128xf32> to vector<32x128xf32>
    %5 = arith.addf %2, %4 : vector<32x128xf32>
    %cst_5 = arith.constant 0.000000e+00 : f32
    %6 = vector.broadcast %cst_5 : f32 to vector<32x128xf32>
    %7 = arith.cmpf ogt, %5, %6 : vector<32x128xf32>
    %cst_6 = arith.constant 0.00999999977 : f32
    %8 = vector.broadcast %cst_6 : f32 to vector<32x128xf32>
    %9 = arith.mulf %8, %5 : vector<32x128xf32>
    %10 = arith.select %7, %5, %9 : vector<32x128xi1>, vector<32x128xf32>
    %c0_7 = arith.constant 0 : index
    %c0_8 = arith.constant 0 : index
    %11 = vector.load %arg4[%c0_7, %c0_8] : memref<32x128xf32, #tpu.memory_space<vmem>>, vector<32x128xf32>
    tpu.vector_store %arg4[%c0_7, %c0_8], %10 {strides = array<i32>} : memref<32x128xf32, #tpu.memory_space<vmem>>, vector<32x128xf32>,
    return
  }
  func.func @transform_0(%arg0: i32) -> (i32, i32) {
    %c0_i32 = arith.constant 0 : i32
    %c0_i32_0 = arith.constant 0 : i32
    return %arg0, %c0_i32 : i32, i32
  }
  func.func @transform_1(%arg0: i32) -> (i32, i32) {
    %c0_i32 = arith.constant 0 : i32
    %c0_i32_0 = arith.constant 0 : i32
    %c0_i32_1 = arith.constant 0 : i32
    return %c0_i32, %c0_i32_0 : i32, i32
  }
  func.func @transform_2(%arg0: i32) -> (i32, i32) {
    %c0_i32 = arith.constant 0 : i32
    %c0_i32_0 = arith.constant 0 : i32
    %c0_i32_1 = arith.constant 0 : i32
    return %c0_i32, %c0_i32_0 : i32, i32
  }
  func.func @transform_3(%arg0: i32) -> (i32, i32) {
    %c0_i32 = arith.constant 0 : i32
    %c0_i32_0 = arith.constant 0 : i32
    return %arg0, %c0_i32 : i32, i32
  }
}

module attributes {stable_mosaic.version = 11 : i64} {
  func.func @_mm_bias_act_kernel(%arg0: i32, %arg1: memref<64x256xbf16, #tpu.memory_space<vmem>>, %arg2: memref<256x128xbf16, #tpu.memory_space<vmem>>, %arg3: memref<1x128xf32, #tpu.memory_space<vmem>>, %arg4: memref<64x128xf32, #tpu.memory_space<vmem>>) attributes {dimension_semantics = [#tpu.dimension_semantics<parallel>], iteration_bounds = array<i64: 2>, scalar_prefetch = 0 : i64, scratch_operands = 0 : i64, tpu.core_type = #tpu.core_type<tc>, window_params = [{transform_indices = @transform_0, window_bounds = array<i64: 64, 256>}, {pipeline_mode = #tpu.pipeline_mode<synchronous>, transform_indices = @transform_1, window_bounds = array<i64: 256, 128>}, {pipeline_mode = #tpu.pipeline_mode<synchronous>, transform_indices = @transform_2, window_bounds = array<i64: 1, 128>}, {transform_indices = @transform_3, window_bounds = array<i64: 64, 128>}]} {
    %c0 = arith.constant 0 : index
    %c0_0 = arith.constant 0 : index
    %0 = vector.load %arg1[%c0, %c0_0] : memref<64x256xbf16, #tpu.memory_space<vmem>>, vector<64x256xbf16>
    %c0_1 = arith.constant 0 : index
    %c0_2 = arith.constant 0 : index
    %1 = vector.load %arg2[%c0_1, %c0_2] : memref<256x128xbf16, #tpu.memory_space<vmem>>, vector<256x128xbf16>
    %cst = arith.constant dense<0.000000e+00> : vector<64x128xf32>
    %2 = tpu.matmul %0, %1, %cst {dimension_numbers = #tpu.dot_dimension_numbers<[1], [0], [0], [1], [0, 0, 1, 1], [], []>} : vector<64x256xbf16>, vector<256x128xbf16>, vector<64x128xf32> -> vector<64x128xf32>
    %c0_3 = arith.constant 0 : index
    %c0_4 = arith.constant 0 : index
    %3 = vector.load %arg3[%c0_3, %c0_4] : memref<1x128xf32, #tpu.memory_space<vmem>>, vector<1x128xf32>
    %4 = vector.broadcast %3 : vector<1x128xf32> to vector<64x128xf32>
    %5 = arith.addf %2, %4 : vector<64x128xf32>
    %cst_5 = arith.constant 0.000000e+00 : f32
    %6 = vector.broadcast %cst_5 : f32 to vector<64x128xf32>
    %7 = arith.maximumf %5, %6 : vector<64x128xf32>
    %cst_6 = arith.constant 0.000000e+00 : f32
    %8 = vector.broadcast %cst_6 : f32 to vector<64x128xf32>
    %9 = arith.cmpf ogt, %7, %8 : vector<64x128xf32>
    %cst_7 = arith.constant 0.00999999977 : f32
    %10 = vector.broadcast %cst_7 : f32 to vector<64x128xf32>
    %11 = arith.mulf %10, %7 : vector<64x128xf32>
    %12 = arith.select %9, %7, %11 : vector<64x128xi1>, vector<64x128xf32>
    %c0_8 = arith.constant 0 : index
    %c0_9 = arith.constant 0 : index
    %13 = vector.load %arg4[%c0_8, %c0_9] : memref<64x128xf32, #tpu.memory_space<vmem>>, vector<64x128xf32>
    tpu.vector_store %arg4[%c0_8, %c0_9], %12 {strides = array<i32>} : memref<64x128xf32, #tpu.memory_space<vmem>>, vector<64x128xf32>,
    return
  }
  func.func @transform_0(%arg0: i32) -> (i32, i32) {
    %c0_i32 = arith.constant 0 : i32
    %c0_i32_0 = arith.constant 0 : i32
    return %arg0, %c0_i32 : i32, i32
  }
  func.func @transform_1(%arg0: i32) -> (i32, i32) {
    %c0_i32 = arith.constant 0 : i32
    %c0_i32_0 = arith.constant 0 : i32
    %c0_i32_1 = arith.constant 0 : i32
    return %c0_i32, %c0_i32_0 : i32, i32
  }
  func.func @transform_2(%arg0: i32) -> (i32, i32) {
    %c0_i32 = arith.constant 0 : i32
    %c0_i32_0 = arith.constant 0 : i32
    %c0_i32_1 = arith.constant 0 : i32
    return %c0_i32, %c0_i32_0 : i32, i32
  }
  func.func @transform_3(%arg0: i32) -> (i32, i32) {
    %c0_i32 = arith.constant 0 : i32
    %c0_i32_0 = arith.constant 0 : i32
    return %arg0, %c0_i32 : i32, i32
  }
}

module attributes {stable_mosaic.version = 11 : i64} {
  func.func @_mm_bias_act_kernel(%arg0: i32, %arg1: memref<64x128xbf16, #tpu.memory_space<vmem>>, %arg2: memref<128x128xbf16, #tpu.memory_space<vmem>>, %arg3: memref<1x128xf32, #tpu.memory_space<vmem>>, %arg4: memref<64x128xf32, #tpu.memory_space<vmem>>) attributes {dimension_semantics = [#tpu.dimension_semantics<parallel>], iteration_bounds = array<i64: 2>, scalar_prefetch = 0 : i64, scratch_operands = 0 : i64, tpu.core_type = #tpu.core_type<tc>, window_params = [{transform_indices = @transform_0, window_bounds = array<i64: 64, 128>}, {pipeline_mode = #tpu.pipeline_mode<synchronous>, transform_indices = @transform_1, window_bounds = array<i64: 128, 128>}, {pipeline_mode = #tpu.pipeline_mode<synchronous>, transform_indices = @transform_2, window_bounds = array<i64: 1, 128>}, {transform_indices = @transform_3, window_bounds = array<i64: 64, 128>}]} {
    %c0 = arith.constant 0 : index
    %c0_0 = arith.constant 0 : index
    %0 = vector.load %arg1[%c0, %c0_0] : memref<64x128xbf16, #tpu.memory_space<vmem>>, vector<64x128xbf16>
    %c0_1 = arith.constant 0 : index
    %c0_2 = arith.constant 0 : index
    %1 = vector.load %arg2[%c0_1, %c0_2] : memref<128x128xbf16, #tpu.memory_space<vmem>>, vector<128x128xbf16>
    %cst = arith.constant dense<0.000000e+00> : vector<64x128xf32>
    %2 = tpu.matmul %0, %1, %cst {dimension_numbers = #tpu.dot_dimension_numbers<[1], [0], [0], [1], [0, 0, 1, 1], [], []>} : vector<64x128xbf16>, vector<128x128xbf16>, vector<64x128xf32> -> vector<64x128xf32>
    %c0_3 = arith.constant 0 : index
    %c0_4 = arith.constant 0 : index
    %3 = vector.load %arg3[%c0_3, %c0_4] : memref<1x128xf32, #tpu.memory_space<vmem>>, vector<1x128xf32>
    %4 = vector.broadcast %3 : vector<1x128xf32> to vector<64x128xf32>
    %5 = arith.addf %2, %4 : vector<64x128xf32>
    %cst_5 = arith.constant 0.000000e+00 : f32
    %6 = vector.broadcast %cst_5 : f32 to vector<64x128xf32>
    %7 = arith.cmpf ogt, %5, %6 : vector<64x128xf32>
    %cst_6 = arith.constant 0.00999999977 : f32
    %8 = vector.broadcast %cst_6 : f32 to vector<64x128xf32>
    %9 = arith.mulf %8, %5 : vector<64x128xf32>
    %10 = arith.select %7, %5, %9 : vector<64x128xi1>, vector<64x128xf32>
    %c0_7 = arith.constant 0 : index
    %c0_8 = arith.constant 0 : index
    %11 = vector.load %arg4[%c0_7, %c0_8] : memref<64x128xf32, #tpu.memory_space<vmem>>, vector<64x128xf32>
    tpu.vector_store %arg4[%c0_7, %c0_8], %10 {strides = array<i32>} : memref<64x128xf32, #tpu.memory_space<vmem>>, vector<64x128xf32>,
    return
  }
  func.func @transform_0(%arg0: i32) -> (i32, i32) {
    %c0_i32 = arith.constant 0 : i32
    %c0_i32_0 = arith.constant 0 : i32
    return %arg0, %c0_i32 : i32, i32
  }
  func.func @transform_1(%arg0: i32) -> (i32, i32) {
    %c0_i32 = arith.constant 0 : i32
    %c0_i32_0 = arith.constant 0 : i32
    %c0_i32_1 = arith.constant 0 : i32
    return %c0_i32, %c0_i32_0 : i32, i32
  }
  func.func @transform_2(%arg0: i32) -> (i32, i32) {
    %c0_i32 = arith.constant 0 : i32
    %c0_i32_0 = arith.constant 0 : i32
    %c0_i32_1 = arith.constant 0 : i32
    return %c0_i32, %c0_i32_0 : i32, i32
  }
  func.func @transform_3(%arg0: i32) -> (i32, i32) {
    %c0_i32 = arith.constant 0 : i32
    %c0_i32_0 = arith.constant 0 : i32
    return %arg0, %c0_i32 : i32, i32
  }
}

module attributes {stable_mosaic.version = 11 : i64} {
  func.func @_mm_bias_act_kernel(%arg0: i32, %arg1: memref<64x256xbf16, #tpu.memory_space<vmem>>, %arg2: memref<256x128xbf16, #tpu.memory_space<vmem>>, %arg3: memref<1x128xf32, #tpu.memory_space<vmem>>, %arg4: memref<64x128xf32, #tpu.memory_space<vmem>>) attributes {dimension_semantics = [#tpu.dimension_semantics<parallel>], iteration_bounds = array<i64: 2>, scalar_prefetch = 0 : i64, scratch_operands = 0 : i64, tpu.core_type = #tpu.core_type<tc>, window_params = [{transform_indices = @transform_0, window_bounds = array<i64: 64, 256>}, {pipeline_mode = #tpu.pipeline_mode<synchronous>, transform_indices = @transform_1, window_bounds = array<i64: 256, 128>}, {pipeline_mode = #tpu.pipeline_mode<synchronous>, transform_indices = @transform_2, window_bounds = array<i64: 1, 128>}, {transform_indices = @transform_3, window_bounds = array<i64: 64, 128>}]} {
    %c0 = arith.constant 0 : index
    %c0_0 = arith.constant 0 : index
    %0 = vector.load %arg1[%c0, %c0_0] : memref<64x256xbf16, #tpu.memory_space<vmem>>, vector<64x256xbf16>
    %c0_1 = arith.constant 0 : index
    %c0_2 = arith.constant 0 : index
    %1 = vector.load %arg2[%c0_1, %c0_2] : memref<256x128xbf16, #tpu.memory_space<vmem>>, vector<256x128xbf16>
    %cst = arith.constant dense<0.000000e+00> : vector<64x128xf32>
    %2 = tpu.matmul %0, %1, %cst {dimension_numbers = #tpu.dot_dimension_numbers<[1], [0], [0], [1], [0, 0, 1, 1], [], []>} : vector<64x256xbf16>, vector<256x128xbf16>, vector<64x128xf32> -> vector<64x128xf32>
    %c0_3 = arith.constant 0 : index
    %c0_4 = arith.constant 0 : index
    %3 = vector.load %arg3[%c0_3, %c0_4] : memref<1x128xf32, #tpu.memory_space<vmem>>, vector<1x128xf32>
    %4 = vector.broadcast %3 : vector<1x128xf32> to vector<64x128xf32>
    %5 = arith.addf %2, %4 : vector<64x128xf32>
    %c0_5 = arith.constant 0 : index
    %c0_6 = arith.constant 0 : index
    %6 = vector.load %arg4[%c0_5, %c0_6] : memref<64x128xf32, #tpu.memory_space<vmem>>, vector<64x128xf32>
    tpu.vector_store %arg4[%c0_5, %c0_6], %5 {strides = array<i32>} : memref<64x128xf32, #tpu.memory_space<vmem>>, vector<64x128xf32>,
    return
  }
  func.func @transform_0(%arg0: i32) -> (i32, i32) {
    %c0_i32 = arith.constant 0 : i32
    %c0_i32_0 = arith.constant 0 : i32
    return %arg0, %c0_i32 : i32, i32
  }
  func.func @transform_1(%arg0: i32) -> (i32, i32) {
    %c0_i32 = arith.constant 0 : i32
    %c0_i32_0 = arith.constant 0 : i32
    %c0_i32_1 = arith.constant 0 : i32
    return %c0_i32, %c0_i32_0 : i32, i32
  }
  func.func @transform_2(%arg0: i32) -> (i32, i32) {
    %c0_i32 = arith.constant 0 : i32
    %c0_i32_0 = arith.constant 0 : i32
    %c0_i32_1 = arith.constant 0 : i32
    return %c0_i32, %c0_i32_0 : i32, i32
  }
  func.func @transform_3(%arg0: i32) -> (i32, i32) {
    %c0_i32 = arith.constant 0 : i32
    %c0_i32_0 = arith.constant 0 : i32
    return %arg0, %c0_i32 : i32, i32
  }
}

module attributes {stable_mosaic.version = 11 : i64} {
  func.func @_mm_bias_act_kernel(%arg0: i32, %arg1: memref<32x512xbf16, #tpu.memory_space<vmem>>, %arg2: memref<512x128xbf16, #tpu.memory_space<vmem>>, %arg3: memref<1x128xf32, #tpu.memory_space<vmem>>, %arg4: memref<32x128xf32, #tpu.memory_space<vmem>>) attributes {dimension_semantics = [#tpu.dimension_semantics<parallel>], iteration_bounds = array<i64: 1>, scalar_prefetch = 0 : i64, scratch_operands = 0 : i64, tpu.core_type = #tpu.core_type<tc>, window_params = [{transform_indices = @transform_0, window_bounds = array<i64: 32, 512>}, {pipeline_mode = #tpu.pipeline_mode<synchronous>, transform_indices = @transform_1, window_bounds = array<i64: 512, 128>}, {pipeline_mode = #tpu.pipeline_mode<synchronous>, transform_indices = @transform_2, window_bounds = array<i64: 1, 128>}, {transform_indices = @transform_3, window_bounds = array<i64: 32, 128>}]} {
    %c0 = arith.constant 0 : index
    %c0_0 = arith.constant 0 : index
    %0 = vector.load %arg1[%c0, %c0_0] : memref<32x512xbf16, #tpu.memory_space<vmem>>, vector<32x512xbf16>
    %c0_1 = arith.constant 0 : index
    %c0_2 = arith.constant 0 : index
    %1 = vector.load %arg2[%c0_1, %c0_2] : memref<512x128xbf16, #tpu.memory_space<vmem>>, vector<512x128xbf16>
    %cst = arith.constant dense<0.000000e+00> : vector<32x128xf32>
    %2 = tpu.matmul %0, %1, %cst {dimension_numbers = #tpu.dot_dimension_numbers<[1], [0], [0], [1], [0, 0, 1, 1], [], []>} : vector<32x512xbf16>, vector<512x128xbf16>, vector<32x128xf32> -> vector<32x128xf32>
    %c0_3 = arith.constant 0 : index
    %c0_4 = arith.constant 0 : index
    %3 = vector.load %arg3[%c0_3, %c0_4] : memref<1x128xf32, #tpu.memory_space<vmem>>, vector<1x128xf32>
    %4 = vector.broadcast %3 : vector<1x128xf32> to vector<32x128xf32>
    %5 = arith.addf %2, %4 : vector<32x128xf32>
    %cst_5 = arith.constant 0.000000e+00 : f32
    %6 = vector.broadcast %cst_5 : f32 to vector<32x128xf32>
    %7 = arith.maximumf %5, %6 : vector<32x128xf32>
    %cst_6 = arith.constant 0.000000e+00 : f32
    %8 = vector.broadcast %cst_6 : f32 to vector<32x128xf32>
    %9 = arith.cmpf ogt, %7, %8 : vector<32x128xf32>
    %cst_7 = arith.constant 0.00999999977 : f32
    %10 = vector.broadcast %cst_7 : f32 to vector<32x128xf32>
    %11 = arith.mulf %10, %7 : vector<32x128xf32>
    %12 = arith.select %9, %7, %11 : vector<32x128xi1>, vector<32x128xf32>
    %c0_8 = arith.constant 0 : index
    %c0_9 = arith.constant 0 : index
    %13 = vector.load %arg4[%c0_8, %c0_9] : memref<32x128xf32, #tpu.memory_space<vmem>>, vector<32x128xf32>
    tpu.vector_store %arg4[%c0_8, %c0_9], %12 {strides = array<i32>} : memref<32x128xf32, #tpu.memory_space<vmem>>, vector<32x128xf32>,
    return
  }
  func.func @transform_0(%arg0: i32) -> (i32, i32) {
    %c0_i32 = arith.constant 0 : i32
    %c0_i32_0 = arith.constant 0 : i32
    return %arg0, %c0_i32 : i32, i32
  }
  func.func @transform_1(%arg0: i32) -> (i32, i32) {
    %c0_i32 = arith.constant 0 : i32
    %c0_i32_0 = arith.constant 0 : i32
    %c0_i32_1 = arith.constant 0 : i32
    return %c0_i32, %c0_i32_0 : i32, i32
  }
  func.func @transform_2(%arg0: i32) -> (i32, i32) {
    %c0_i32 = arith.constant 0 : i32
    %c0_i32_0 = arith.constant 0 : i32
    %c0_i32_1 = arith.constant 0 : i32
    return %c0_i32, %c0_i32_0 : i32, i32
  }
  func.func @transform_3(%arg0: i32) -> (i32, i32) {
    %c0_i32 = arith.constant 0 : i32
    %c0_i32_0 = arith.constant 0 : i32
    return %arg0, %c0_i32 : i32, i32
  }
}

module attributes {stable_mosaic.version = 11 : i64} {
  func.func @_mm_bias_act_kernel(%arg0: i32, %arg1: memref<32x128xbf16, #tpu.memory_space<vmem>>, %arg2: memref<128x128xbf16, #tpu.memory_space<vmem>>, %arg3: memref<1x128xf32, #tpu.memory_space<vmem>>, %arg4: memref<32x128xf32, #tpu.memory_space<vmem>>) attributes {dimension_semantics = [#tpu.dimension_semantics<parallel>], iteration_bounds = array<i64: 1>, scalar_prefetch = 0 : i64, scratch_operands = 0 : i64, tpu.core_type = #tpu.core_type<tc>, window_params = [{transform_indices = @transform_0, window_bounds = array<i64: 32, 128>}, {pipeline_mode = #tpu.pipeline_mode<synchronous>, transform_indices = @transform_1, window_bounds = array<i64: 128, 128>}, {pipeline_mode = #tpu.pipeline_mode<synchronous>, transform_indices = @transform_2, window_bounds = array<i64: 1, 128>}, {transform_indices = @transform_3, window_bounds = array<i64: 32, 128>}]} {
    %c0 = arith.constant 0 : index
    %c0_0 = arith.constant 0 : index
    %0 = vector.load %arg1[%c0, %c0_0] : memref<32x128xbf16, #tpu.memory_space<vmem>>, vector<32x128xbf16>
    %c0_1 = arith.constant 0 : index
    %c0_2 = arith.constant 0 : index
    %1 = vector.load %arg2[%c0_1, %c0_2] : memref<128x128xbf16, #tpu.memory_space<vmem>>, vector<128x128xbf16>
    %cst = arith.constant dense<0.000000e+00> : vector<32x128xf32>
    %2 = tpu.matmul %0, %1, %cst {dimension_numbers = #tpu.dot_dimension_numbers<[1], [0], [0], [1], [0, 0, 1, 1], [], []>} : vector<32x128xbf16>, vector<128x128xbf16>, vector<32x128xf32> -> vector<32x128xf32>
    %c0_3 = arith.constant 0 : index
    %c0_4 = arith.constant 0 : index
    %3 = vector.load %arg3[%c0_3, %c0_4] : memref<1x128xf32, #tpu.memory_space<vmem>>, vector<1x128xf32>
    %4 = vector.broadcast %3 : vector<1x128xf32> to vector<32x128xf32>
    %5 = arith.addf %2, %4 : vector<32x128xf32>
    %c0_5 = arith.constant 0 : index
    %c0_6 = arith.constant 0 : index
    %6 = vector.load %arg4[%c0_5, %c0_6] : memref<32x128xf32, #tpu.memory_space<vmem>>, vector<32x128xf32>
    tpu.vector_store %arg4[%c0_5, %c0_6], %5 {strides = array<i32>} : memref<32x128xf32, #tpu.memory_space<vmem>>, vector<32x128xf32>,
    return
  }
  func.func @transform_0(%arg0: i32) -> (i32, i32) {
    %c0_i32 = arith.constant 0 : i32
    %c0_i32_0 = arith.constant 0 : i32
    return %arg0, %c0_i32 : i32, i32
  }
  func.func @transform_1(%arg0: i32) -> (i32, i32) {
    %c0_i32 = arith.constant 0 : i32
    %c0_i32_0 = arith.constant 0 : i32
    %c0_i32_1 = arith.constant 0 : i32
    return %c0_i32, %c0_i32_0 : i32, i32
  }
  func.func @transform_2(%arg0: i32) -> (i32, i32) {
    %c0_i32 = arith.constant 0 : i32
    %c0_i32_0 = arith.constant 0 : i32
    %c0_i32_1 = arith.constant 0 : i32
    return %c0_i32, %c0_i32_0 : i32, i32
  }
  func.func @transform_3(%arg0: i32) -> (i32, i32) {
    %c0_i32 = arith.constant 0 : i32
    %c0_i32_0 = arith.constant 0 : i32
    return %arg0, %c0_i32 : i32, i32
  }
}

module attributes {stable_mosaic.version = 11 : i64} {
  func.func @_mm_bias_act_kernel(%arg0: i32, %arg1: memref<8x2048xbf16, #tpu.memory_space<vmem>>, %arg2: memref<2048x128xbf16, #tpu.memory_space<vmem>>, %arg3: memref<1x128xf32, #tpu.memory_space<vmem>>, %arg4: memref<8x128xf32, #tpu.memory_space<vmem>>) attributes {dimension_semantics = [#tpu.dimension_semantics<parallel>], iteration_bounds = array<i64: 1>, scalar_prefetch = 0 : i64, scratch_operands = 0 : i64, tpu.core_type = #tpu.core_type<tc>, window_params = [{transform_indices = @transform_0, window_bounds = array<i64: 8, 2048>}, {pipeline_mode = #tpu.pipeline_mode<synchronous>, transform_indices = @transform_1, window_bounds = array<i64: 2048, 128>}, {pipeline_mode = #tpu.pipeline_mode<synchronous>, transform_indices = @transform_2, window_bounds = array<i64: 1, 128>}, {transform_indices = @transform_3, window_bounds = array<i64: 8, 128>}]} {
    %c0 = arith.constant 0 : index
    %c0_0 = arith.constant 0 : index
    %0 = vector.load %arg1[%c0, %c0_0] : memref<8x2048xbf16, #tpu.memory_space<vmem>>, vector<8x2048xbf16>
    %c0_1 = arith.constant 0 : index
    %c0_2 = arith.constant 0 : index
    %1 = vector.load %arg2[%c0_1, %c0_2] : memref<2048x128xbf16, #tpu.memory_space<vmem>>, vector<2048x128xbf16>
    %cst = arith.constant dense<0.000000e+00> : vector<8x128xf32>
    %2 = tpu.matmul %0, %1, %cst {dimension_numbers = #tpu.dot_dimension_numbers<[1], [0], [0], [1], [0, 0, 1, 1], [], []>} : vector<8x2048xbf16>, vector<2048x128xbf16>, vector<8x128xf32> -> vector<8x128xf32>
    %c0_3 = arith.constant 0 : index
    %c0_4 = arith.constant 0 : index
    %3 = vector.load %arg3[%c0_3, %c0_4] : memref<1x128xf32, #tpu.memory_space<vmem>>, vector<1x128xf32>
    %4 = vector.broadcast %3 : vector<1x128xf32> to vector<8x128xf32>
    %5 = arith.addf %2, %4 : vector<8x128xf32>
    %c0_5 = arith.constant 0 : index
    %c0_6 = arith.constant 0 : index
    %6 = vector.load %arg4[%c0_5, %c0_6] : memref<8x128xf32, #tpu.memory_space<vmem>>, vector<8x128xf32>
    tpu.vector_store %arg4[%c0_5, %c0_6], %5 {strides = array<i32>} : memref<8x128xf32, #tpu.memory_space<vmem>>, vector<8x128xf32>,
    return
  }
  func.func @transform_0(%arg0: i32) -> (i32, i32) {
    %c0_i32 = arith.constant 0 : i32
    %c0_i32_0 = arith.constant 0 : i32
    return %arg0, %c0_i32 : i32, i32
  }
  func.func @transform_1(%arg0: i32) -> (i32, i32) {
    %c0_i32 = arith.constant 0 : i32
    %c0_i32_0 = arith.constant 0 : i32
    %c0_i32_1 = arith.constant 0 : i32
    return %c0_i32, %c0_i32_0 : i32, i32
  }
  func.func @transform_2(%arg0: i32) -> (i32, i32) {
    %c0_i32 = arith.constant 0 : i32
    %c0_i32_0 = arith.constant 0 : i32
    %c0_i32_1 = arith.constant 0 : i32
    return %c0_i32, %c0_i32_0 : i32, i32
  }
  func.func @transform_3(%arg0: i32) -> (i32, i32) {
    %c0_i32 = arith.constant 0 : i32
    %c0_i32_0 = arith.constant 0 : i32
    return %arg0, %c0_i32 : i32, i32
  }
}

</mosaic_0001>

<llo_original>
// kernel: conv_embedding_forward.10
$region0: #{conv_embedding_forward.10}
  #allocation0 [shape = 'u32[]', space=smem, size = 0x4, offset = 0x4, fixed_abs, tag = 'smem constant byte address 0x4 - core index']
  #allocation1 [shape = 'u32[144,128]{1,0:T(1,128)}', space=vmem, size = 0x12000, scoped, tag = 'internal scratch']
  %s0 = inlined_call_operand.vmem [shape: bf16[512,128], index: 0, kind: input, shape index: {}]
  %s1 = inlined_call_operand.vmem [shape: bf16[128,128], index: 1, kind: input, shape index: {}]
  %s2 = inlined_call_operand.vmem [shape: f32[1,128], index: 2, kind: input, shape index: {}]
  %s3 = inlined_call_operand.vmem [shape: f32[512,128], index: 3, kind: output, shape index: {}]
  %s4 = sld [smem:[#allocation0]]
  $region45: #{conv_embedding_forward.10} parent=0
    _
  %s6 = ssub.s32 1, %s4
  %s7 = scalar_select 0, %s6, %s4
  loop: start=0, step=1, limit=6
  $region2: #{conv_embedding_forward.10} parent=0 // loop_pre_header
    _
  $region3: #{conv_embedding_forward.10} parent=0 // loop_header
    %s9 = sphi 0, %s13
    %p10 = scmp.ge.s32.totalorder %s9, 6
    %s19 = sphi 0, %s21
    %s22 = sphi 0, %s19
    %s23 = sphi 0, %s22
    %s39 = sphi 0, %s23
    %s43 = sphi 0, %s43
    %s45 = sphi 0, %s43
    %s46 = sphi 0, %s45
    %s60 = sphi 0, %s46
    %s64 = sphi 0, %s64
    %s66 = sphi 0, %s64
    %s67 = sphi 0, %s66
    %s81 = sphi 0, %s67
    %s87 = sphi 0, %s89
    %s90 = sphi 0, %s87
    %s91 = sphi 0, %s90
    %s107 = sphi 0, %s91
  $region4: #{conv_embedding_forward.10} parent=0 // loop_header_branch
    %12 = sbr.rel (%p10) target = $region8
  $region5: #{conv_embedding_forward.10} parent=0 // loop_body
    %s14 = ssub.s32 %s9, 1
    %s15 = ssub.s32 %s9, 2
    %s16 = sadd.s32 %s9, 1
    %s17 = ssub.s32 %s9, %s16
    %p18 = scmp.eq.s32.totalorder %s17, 0
    %s20 = sadd.s32 %s19, 1
    %s21 = scalar_select %p18, %s19, %s20
    %p24 = pneg %p18
    %p25 = scmp.eq.s32.totalorder %s9, 3
    %p26 = por %p24, %p25
    %p27 = scmp.ne.s32.totalorder %s19, %s22
    %p28 = scmp.eq.s32.totalorder %s9, 0
    %p29 = por %p27, %p28
    %p30 = scmp.ne.s32.totalorder %s19, %s22
    %p31 = scmp.eq.s32.totalorder %s14, 3
    %p32 = por %p30, %p31
    %p33 = scmp.ne.s32.totalorder %s22, %s23
    %p34 = scmp.eq.s32.totalorder %s14, 0
    %p35 = por %p33, %p34
    %p36 = scmp.ne.s32.totalorder %s22, %s23
    %p37 = scmp.eq.s32.totalorder %s15, 3
    %p38 = por %p36, %p37
    %p40 = scmp.ne.s32.totalorder %s23, %s39
    %p41 = scmp.eq.s32.totalorder %s15, 0
    %p42 = por %p40, %p41
    %s44 = sadd.s32 %s43, 1
    %p47 = scmp.eq.s32.totalorder %s9, 3
    %p48 = scmp.ne.s32.totalorder %s43, %s45
    %p49 = scmp.eq.s32.totalorder %s9, 0
    %p50 = por %p48, %p49
    %p51 = scmp.ne.s32.totalorder %s43, %s45
    %p52 = scmp.eq.s32.totalorder %s14, 3
    %p53 = por %p51, %p52
    %p54 = scmp.ne.s32.totalorder %s45, %s46
    %p55 = scmp.eq.s32.totalorder %s14, 0
    %p56 = por %p54, %p55
    %p57 = scmp.ne.s32.totalorder %s45, %s46
    %p58 = scmp.eq.s32.totalorder %s15, 3
    %p59 = por %p57, %p58
    %p61 = scmp.ne.s32.totalorder %s46, %s60
    %p62 = scmp.eq.s32.totalorder %s15, 0
    %p63 = por %p61, %p62
    %s65 = sadd.s32 %s64, 1
    %p68 = scmp.eq.s32.totalorder %s9, 3
    %p69 = scmp.ne.s32.totalorder %s64, %s66
    %p70 = scmp.eq.s32.totalorder %s9, 0
    %p71 = por %p69, %p70
    %p72 = scmp.ne.s32.totalorder %s64, %s66
    %p73 = scmp.eq.s32.totalorder %s14, 3
    %p74 = por %p72, %p73
    %p75 = scmp.ne.s32.totalorder %s66, %s67
    %p76 = scmp.eq.s32.totalorder %s14, 0
    %p77 = por %p75, %p76
    %p78 = scmp.ne.s32.totalorder %s66, %s67
    %p79 = scmp.eq.s32.totalorder %s15, 3
    %p80 = por %p78, %p79
    %p82 = scmp.ne.s32.totalorder %s67, %s81
    %p83 = scmp.eq.s32.totalorder %s15, 0
    %p84 = por %p82, %p83
    %s85 = ssub.s32 %s9, %s16
    %p86 = scmp.eq.s32.totalorder %s85, 0
    %s88 = sadd.s32 %s87, 1
    %s89 = scalar_select %p86, %s87, %s88
    %p92 = pneg %p86
    %p93 = scmp.eq.s32.totalorder %s9, 3
    %p94 = por %p92, %p93
    %p95 = scmp.ne.s32.totalorder %s87, %s90
    %p96 = scmp.eq.s32.totalorder %s9, 0
    %p97 = por %p95, %p96
    %p98 = scmp.ne.s32.totalorder %s87, %s90
    %p99 = scmp.eq.s32.totalorder %s14, 3
    %p100 = por %p98, %p99
    %p101 = scmp.ne.s32.totalorder %s90, %s91
    %p102 = scmp.eq.s32.totalorder %s14, 0
    %p103 = por %p101, %p102
    %p104 = scmp.ne.s32.totalorder %s90, %s91
    %p105 = scmp.eq.s32.totalorder %s15, 3
    %p106 = por %p104, %p105
    %p108 = scmp.ne.s32.totalorder %s91, %s107
    %p109 = scmp.eq.s32.totalorder %s15, 0
    %p110 = por %p108, %p109
    %p111 = scmp.le.s32.totalorder 1, %s9
    %p112 = scmp.lt.s32.totalorder %s9, 5
    %p113 = pnand %p111, %p112
    %p114 = pneg %p113
    // Predicated region
    $region9: #{conv_embedding_forward.10} parent=5 // pred_check
      _
    $region10: #{conv_embedding_forward.10} parent=5 // pred_check_branch
      %116 = sbr.rel (%p113) target = $region12
    $region11: #{conv_embedding_forward.10} parent=5 // pred_region
      %s117 = ssub.s32 %s9, 1
      // Predicated region
      $region13: #{conv_embedding_forward.10} parent=11 // pred_check
        %p118 = pneg %p56
      $region14: #{conv_embedding_forward.10} parent=11 // pred_check_branch
        %120 = sbr.rel (%p118) target = $region16
      $region15: #{conv_embedding_forward.10} parent=11 // pred_region
        _
      $region16: #{conv_embedding_forward.10} parent=11 // pred_fallthru
        _
      // Predicated region
      $region17: #{conv_embedding_forward.10} parent=11 // pred_check
        %p121 = pneg %p77
      $region18: #{conv_embedding_forward.10} parent=11 // pred_check_branch
        %123 = sbr.rel (%p121) target = $region20
      $region19: #{conv_embedding_forward.10} parent=11 // pred_region
        _
      $region20: #{conv_embedding_forward.10} parent=11 // pred_fallthru
        _
    $region12: #{conv_embedding_forward.10} parent=5 // pred_fallthru
      _
    %p124 = scmp.lt.s32.totalorder %s9, 4
    // Predicated region
    $region21: #{conv_embedding_forward.10} parent=5 // pred_check
      %p125 = pneg %p124
    $region22: #{conv_embedding_forward.10} parent=5 // pred_check_branch
      %127 = sbr.rel (%p125) target = $region24
    $region23: #{conv_embedding_forward.10} parent=5 // pred_region
      // Predicated region
      $region25: #{conv_embedding_forward.10} parent=23 // pred_check
        %p128 = pneg %p29
      $region26: #{conv_embedding_forward.10} parent=23 // pred_check_branch
        %130 = sbr.rel (%p128) target = $region28
      $region27: #{conv_embedding_forward.10} parent=23 // pred_region
        %s131 = smul.u32 16, %s9
        %p132 = scmp.lt.s32.totalorder %s131, 63
        %s133 = scalar_select %p132, %s131, 63
        %s134 = smul.addr %s133, 4
        %s135 = scalar_lea.vmem %s0, %s134
        %s136 = smul.u32 16, %s9
      $region28: #{conv_embedding_forward.10} parent=23 // pred_fallthru
        _
    $region24: #{conv_embedding_forward.10} parent=5 // pred_fallthru
      _
    %p137 = scmp.le.s32.totalorder 1, %s9
    %p138 = scmp.lt.s32.totalorder %s9, 5
    %p139 = pnand %p137, %p138
    %p140 = pneg %p139
    // Predicated region
    $region29: #{conv_embedding_forward.10} parent=5 // pred_check
      _
    $region30: #{conv_embedding_forward.10} parent=5 // pred_check_branch
      %142 = sbr.rel (%p139) target = $region32
    $region31: #{conv_embedding_forward.10} parent=5 // pred_region
      %s143 = ssub.s32 %s9, 1
      %s144 = smul.u32 16, %s14
      %p145 = scmp.lt.s32.totalorder %s144, 63
      %s146 = scalar_select %p145, %s144, 63
      %s147 = smul.addr %s146, 4
      %s148 = scalar_lea.vmem %s0, %s147
      %p149 = pneg %p35
      %p150 = pneg %p32
      %p151 = pneg %p56
      %p152 = pneg %p53
      %p153 = pneg %p77
      %p154 = pneg %p74
      %p155 = pneg %p103
      %p156 = pneg %p100
      %s157 = smul.u32 16, %s14
      %p158 = scmp.lt.s32.totalorder %s157, 63
      %s159 = scalar_select %p158, %s157, 63
      %s160 = smul.addr %s159, 8
      %s161 = scalar_lea.vmem %s3, %s160
      %s162 = smul.u32 16, %s14
      %p163 = scmp.lt.s32.totalorder %s162, 63
      %s164 = scalar_select %p163, %s162, 63
      %s165 = smul.addr %s164, 4
      %s166 = scalar_lea.vmem %s0, %s165
      %s167 = smul.u32 16, %s14
      %s168 = smul.u32 16, %s14
      %p169 = scmp.lt.s32.totalorder %s168, 63
      %s170 = scalar_select %p169, %s168, 63
      %s171 = smul.addr %s170, 8
      %s172 = scalar_lea.vmem %s3, %s171
      %s173 = smul.u32 16, %s14
      %v175 = vld [vmem:[%s166] sm:$0xf]
      %v176 = vld [vmem:[%s166 + $0x4] sm:$0xf]
      %v177 = vld [vmem:[%s166 + $0x8] sm:$0xf]
      %v178 = vld [vmem:[%s166 + $0xc] sm:$0xf]
      %v179 = vld [vmem:[%s166 + $0x10] sm:$0xf]
      %v180 = vld [vmem:[%s166 + $0x14] sm:$0xf]
      %v181 = vld [vmem:[%s166 + $0x18] sm:$0xf]
      %v182 = vld [vmem:[%s166 + $0x1c] sm:$0xf]
      %v183 = vld [vmem:[%s166 + $0x20] sm:$0xf]
      %v184 = vld [vmem:[%s166 + $0x24] sm:$0xf]
      %v185 = vld [vmem:[%s166 + $0x28] sm:$0xf]
      %v186 = vld [vmem:[%s166 + $0x2c] sm:$0xf]
      %v187 = vld [vmem:[%s166 + $0x30] sm:$0xf]
      %v188 = vld [vmem:[%s166 + $0x34] sm:$0xf]
      %v189 = vld [vmem:[%s166 + $0x38] sm:$0xf]
      %v190 = vld [vmem:[%s166 + $0x3c] sm:$0xf]
      %v191 = vld [vmem:[%s1] sm:$0xf]
      %v192 = vld [vmem:[%s1 + $0x4] sm:$0xf]
      %v193 = vld [vmem:[%s1 + $0x8] sm:$0xf]
      %v194 = vld [vmem:[%s1 + $0xc] sm:$0xf]
      %v195 = vld [vmem:[%s1 + $0x10] sm:$0xf]
      %v196 = vld [vmem:[%s1 + $0x14] sm:$0xf]
      %v197 = vld [vmem:[%s1 + $0x18] sm:$0xf]
      %v198 = vld [vmem:[%s1 + $0x1c] sm:$0xf]
      %v199 = vld [vmem:[%s1 + $0x20] sm:$0xf]
      %v200 = vld [vmem:[%s1 + $0x24] sm:$0xf]
      %v201 = vld [vmem:[%s1 + $0x28] sm:$0xf]
      %v202 = vld [vmem:[%s1 + $0x2c] sm:$0xf]
      %v203 = vld [vmem:[%s1 + $0x30] sm:$0xf]
      %v204 = vld [vmem:[%s1 + $0x34] sm:$0xf]
      %v205 = vld [vmem:[%s1 + $0x38] sm:$0xf]
      %v206 = vld [vmem:[%s1 + $0x3c] sm:$0xf]
      %v207 = vld [vmem:[%s2] sm:$0x1]
      %v209 = vlaneseq
      %v210 = vshrl.u32 %v209, 7
      %v211 = vsub.s32 0, %v210
      %v212 = vrot.slane %v207, %v211
      %v230 = vunpack.c.l.b16 %v175
      %v231 = vunpack.c.l.b16 %v176
      %v232 = vunpack.c.l.b16 %v177
      %v233 = vunpack.c.l.b16 %v178
      %v234 = vunpack.c.l.b16 %v179
      %v235 = vunpack.c.l.b16 %v180
      %v236 = vunpack.c.l.b16 %v181
      %v237 = vunpack.c.l.b16 %v182
      %v238 = vunpack.c.l.b16 %v183
      %v239 = vunpack.c.l.b16 %v184
      %v240 = vunpack.c.l.b16 %v185
      %v241 = vunpack.c.l.b16 %v186
      %v242 = vunpack.c.l.b16 %v187
      %v243 = vunpack.c.l.b16 %v188
      %v244 = vunpack.c.l.b16 %v189
      %v245 = vunpack.c.l.b16 %v190
      %v246 = vpack.c.b16 %v231, %v230
      %v247 = vpack.c.b16 %v233, %v232
      %v248 = vpack.c.b16 %v235, %v234
      %v249 = vpack.c.b16 %v237, %v236
      %v250 = vpack.c.b16 %v239, %v238
      %v251 = vpack.c.b16 %v241, %v240
      %v252 = vpack.c.b16 %v243, %v242
      %v253 = vpack.c.b16 %v245, %v244
      %v278 = vunpack.c.l.b16 %v191
      %v279 = vunpack.c.l.b16 %v192
      %v280 = vunpack.c.l.b16 %v193
      %v281 = vunpack.c.l.b16 %v194
      %v282 = vunpack.c.l.b16 %v195
      %v283 = vunpack.c.l.b16 %v196
      %v284 = vunpack.c.l.b16 %v197
      %v285 = vunpack.c.l.b16 %v198
      %v286 = vunpack.c.l.b16 %v199
      %v287 = vunpack.c.l.b16 %v200
      %v288 = vunpack.c.l.b16 %v201
      %v289 = vunpack.c.l.b16 %v202
      %v290 = vunpack.c.l.b16 %v203
      %v291 = vunpack.c.l.b16 %v204
      %v292 = vunpack.c.l.b16 %v205
      %v293 = vunpack.c.l.b16 %v206
      %v294 = vpack.c.b16 %v279, %v278
      %v295 = vpack.c.b16 %v281, %v280
      %v296 = vpack.c.b16 %v283, %v282
      %v297 = vpack.c.b16 %v285, %v284
      %v298 = vpack.c.b16 %v287, %v286
      %v299 = vpack.c.b16 %v289, %v288
      %v300 = vpack.c.b16 %v291, %v290
      %v301 = vpack.c.b16 %v293, %v292
      %310 = vmatprep.subr.bf16.mxu0 0
      %311 = vmatpush1.bf16.msra.mxu0 %v301
      %312 = vmatprep.subr.bf16.mxu0 0
      %313 = vmatpush1.bf16.msra.mxu0 %v300
      %314 = vmatprep.subr.bf16.mxu0 0
      %315 = vmatpush1.bf16.msra.mxu0 %v299
      %316 = vmatprep.subr.bf16.mxu0 0
      %317 = vmatpush1.bf16.msra.mxu0 %v298
      %318 = vmatprep.subr.bf16.mxu0 0
      %319 = vmatpush1.bf16.msra.mxu0 %v297
      %320 = vmatprep.subr.bf16.mxu0 0
      %321 = vmatpush1.bf16.msra.mxu0 %v296
      %322 = vmatprep.subr.bf16.mxu0 0
      %323 = vmatpush1.bf16.msra.mxu0 %v295
      %324 = vmatprep.subr.bf16.mxu0 0
      %325 = vmatpush1.bf16.msra.mxu0 %v294
      %326 = vmatprep.subr.bf16.mxu0 0
      %327 = vmatpush2.bf16.msra.mxu0 0
      %328 = vmatprep.subr.bf16.mxu0 0
      %329 = vmatpush2.bf16.msra.mxu0 0
      %330 = vmatprep.subr.bf16.mxu0 0
      %331 = vmatpush2.bf16.msra.mxu0 0
      %332 = vmatprep.subr.bf16.mxu0 0
      %333 = vmatpush2.bf16.msra.mxu0 0
      %334 = vmatprep.subr.bf16.mxu0 0
      %335 = vmatpush2.bf16.msra.mxu0 0
      %336 = vmatprep.subr.bf16.mxu0 0
      %337 = vmatpush2.bf16.msra.mxu0 0
      %338 = vmatprep.subr.bf16.mxu0 0
      %339 = vmatpush2.bf16.msra.mxu0 0
      %340 = vmatprep.subr.bf16.mxu0 0
      %341 = vmatpush2.bf16.msra.mxu0 0
      %342 = vmatprep.mubr.bf16.mxu0 0
      %343 = vmatmul.mubr.bf16.gmra.mxu0 %v246
      %v344 = vpop.f32.mrf.mxu0
      %v345 = vadd.f32 %v212, %v344
      %v346 = vpop.f32.mrf.mxu0
      %v347 = vpop.f32.mrf.mxu0
      %v348 = vadd.f32 %v212, %v347
      %v349 = vpop.f32.mrf.mxu0
      %350 = vmatprep.mubr.bf16.mxu0 0
      %351 = vmatmul.mubr.bf16.gmra.mxu0 %v247
      %v352 = vpop.f32.mrf.mxu0
      %v353 = vadd.f32 %v212, %v352
      %v354 = vpop.f32.mrf.mxu0
      %v355 = vpop.f32.mrf.mxu0
      %v356 = vadd.f32 %v212, %v355
      %v357 = vpop.f32.mrf.mxu0
      %358 = vmatprep.mubr.bf16.mxu0 0
      %359 = vmatmul.mubr.bf16.gmra.mxu0 %v248
      %v360 = vpop.f32.mrf.mxu0
      %v361 = vadd.f32 %v212, %v360
      %v362 = vpop.f32.mrf.mxu0
      %v363 = vpop.f32.mrf.mxu0
      %v364 = vadd.f32 %v212, %v363
      %v365 = vpop.f32.mrf.mxu0
      %366 = vmatprep.mubr.bf16.mxu0 0
      %367 = vmatmul.mubr.bf16.gmra.mxu0 %v249
      %v368 = vpop.f32.mrf.mxu0
      %v369 = vadd.f32 %v212, %v368
      %v370 = vpop.f32.mrf.mxu0
      %v371 = vpop.f32.mrf.mxu0
      %v372 = vadd.f32 %v212, %v371
      %v373 = vpop.f32.mrf.mxu0
      %374 = vmatprep.mubr.bf16.mxu0 0
      %375 = vmatmul.mubr.bf16.gmra.mxu0 %v250
      %v376 = vpop.f32.mrf.mxu0
      %v377 = vadd.f32 %v212, %v376
      %v378 = vpop.f32.mrf.mxu0
      %v379 = vpop.f32.mrf.mxu0
      %v380 = vadd.f32 %v212, %v379
      %v381 = vpop.f32.mrf.mxu0
      %382 = vmatprep.mubr.bf16.mxu0 0
      %383 = vmatmul.mubr.bf16.gmra.mxu0 %v251
      %v384 = vpop.f32.mrf.mxu0
      %v385 = vadd.f32 %v212, %v384
      %v386 = vpop.f32.mrf.mxu0
      %v387 = vpop.f32.mrf.mxu0
      %v388 = vadd.f32 %v212, %v387
      %v389 = vpop.f32.mrf.mxu0
      %390 = vmatprep.mubr.bf16.mxu0 0
      %391 = vmatmul.mubr.bf16.gmra.mxu0 %v252
      %v392 = vpop.f32.mrf.mxu0
      %v393 = vadd.f32 %v212, %v392
      %v394 = vpop.f32.mrf.mxu0
      %v395 = vpop.f32.mrf.mxu0
      %v396 = vadd.f32 %v212, %v395
      %v397 = vpop.f32.mrf.mxu0
      %398 = vmatprep.mubr.bf16.mxu0 0
      %399 = vmatmul.mubr.bf16.gmra.mxu0 %v253
      %v400 = vpop.f32.mrf.mxu0
      %v401 = vadd.f32 %v212, %v400
      %v402 = vpop.f32.mrf.mxu0
      %v403 = vpop.f32.mrf.mxu0
      %v404 = vadd.f32 %v212, %v403
      %v405 = vpop.f32.mrf.mxu0
      %406 = vdwg.mxu0
      %vm407 = vcmp.gt.f32.partialorder %v345, 0.0
      %vm408 = vcmp.gt.f32.partialorder %v348, 0.0
      %vm409 = vcmp.gt.f32.partialorder %v353, 0.0
      %vm410 = vcmp.gt.f32.partialorder %v356, 0.0
      %vm411 = vcmp.gt.f32.partialorder %v361, 0.0
      %vm412 = vcmp.gt.f32.partialorder %v364, 0.0
      %vm413 = vcmp.gt.f32.partialorder %v369, 0.0
      %vm414 = vcmp.gt.f32.partialorder %v372, 0.0
      %vm415 = vcmp.gt.f32.partialorder %v377, 0.0
      %vm416 = vcmp.gt.f32.partialorder %v380, 0.0
      %vm417 = vcmp.gt.f32.partialorder %v385, 0.0
      %vm418 = vcmp.gt.f32.partialorder %v388, 0.0
      %vm419 = vcmp.gt.f32.partialorder %v393, 0.0
      %vm420 = vcmp.gt.f32.partialorder %v396, 0.0
      %vm421 = vcmp.gt.f32.partialorder %v401, 0.0
      %vm422 = vcmp.gt.f32.partialorder %v404, 0.0
      %v423 = vmul.f32 %v345, 0.01
      %v424 = vmul.f32 %v348, 0.01
      %v425 = vmul.f32 %v353, 0.01
      %v426 = vmul.f32 %v356, 0.01
      %v427 = vmul.f32 %v361, 0.01
      %v428 = vmul.f32 %v364, 0.01
      %v429 = vmul.f32 %v369, 0.01
      %v430 = vmul.f32 %v372, 0.01
      %v431 = vmul.f32 %v377, 0.01
      %v432 = vmul.f32 %v380, 0.01
      %v433 = vmul.f32 %v385, 0.01
      %v434 = vmul.f32 %v388, 0.01
      %v435 = vmul.f32 %v393, 0.01
      %v436 = vmul.f32 %v396, 0.01
      %v437 = vmul.f32 %v401, 0.01
      %v438 = vmul.f32 %v404, 0.01
      %v439 = vsel %vm407, %v345, %v423
      %v440 = vsel %vm408, %v348, %v424
      %v441 = vsel %vm409, %v353, %v425
      %v442 = vsel %vm410, %v356, %v426
      %v443 = vsel %vm411, %v361, %v427
      %v444 = vsel %vm412, %v364, %v428
      %v445 = vsel %vm413, %v369, %v429
      %v446 = vsel %vm414, %v372, %v430
      %v447 = vsel %vm415, %v377, %v431
      %v448 = vsel %vm416, %v380, %v432
      %v449 = vsel %vm417, %v385, %v433
      %v450 = vsel %vm418, %v388, %v434
      %v451 = vsel %vm419, %v393, %v435
      %v452 = vsel %vm420, %v396, %v436
      %v453 = vsel %vm421, %v401, %v437
      %v454 = vsel %vm422, %v404, %v438
      %455 = vst [vmem:[%s172] sm:$0xff] %v439
      %456 = vst [vmem:[%s172 + $0x8] sm:$0xff] %v440
      %457 = vst [vmem:[%s172 + $0x10] sm:$0xff] %v441
      %458 = vst [vmem:[%s172 + $0x18] sm:$0xff] %v442
      %459 = vst [vmem:[%s172 + $0x20] sm:$0xff] %v443
      %460 = vst [vmem:[%s172 + $0x28] sm:$0xff] %v444
      %461 = vst [vmem:[%s172 + $0x30] sm:$0xff] %v445
      %462 = vst [vmem:[%s172 + $0x38] sm:$0xff] %v446
      %463 = vst [vmem:[%s172 + $0x40] sm:$0xff] %v447
      %464 = vst [vmem:[%s172 + $0x48] sm:$0xff] %v448
      %465 = vst [vmem:[%s172 + $0x50] sm:$0xff] %v449
      %466 = vst [vmem:[%s172 + $0x58] sm:$0xff] %v450
      %467 = vst [vmem:[%s172 + $0x60] sm:$0xff] %v451
      %468 = vst [vmem:[%s172 + $0x68] sm:$0xff] %v452
      %469 = vst [vmem:[%s172 + $0x70] sm:$0xff] %v453
      %470 = vst [vmem:[%s172 + $0x78] sm:$0xff] %v454
      %s471 = smul.u32 16, %s14
      %p472 = scmp.lt.s32.totalorder %s471, 63
      %s473 = scalar_select %p472, %s471, 63
      %s474 = smul.addr %s473, 8
      %s475 = scalar_lea.vmem %s3, %s474
      // Predicated region
      $region33: #{conv_embedding_forward.10} parent=31 // pred_check
        %p476 = pneg %p100
      $region34: #{conv_embedding_forward.10} parent=31 // pred_check_branch
        %478 = sbr.rel (%p476) target = $region36
      $region35: #{conv_embedding_forward.10} parent=31 // pred_region
        %s479 = smul.u32 16, %s14
      $region36: #{conv_embedding_forward.10} parent=31 // pred_fallthru
        _
    $region32: #{conv_embedding_forward.10} parent=5 // pred_fallthru
      _
    %p480 = scmp.le.s32.totalorder 2, %s9
    // Predicated region
    $region37: #{conv_embedding_forward.10} parent=5 // pred_check
      %p481 = pneg %p480
    $region38: #{conv_embedding_forward.10} parent=5 // pred_check_branch
      %483 = sbr.rel (%p481) target = $region40
    $region39: #{conv_embedding_forward.10} parent=5 // pred_region
      %s484 = ssub.s32 %s9, 2
      // Predicated region
      $region41: #{conv_embedding_forward.10} parent=39 // pred_check
        %p485 = pneg %p106
      $region42: #{conv_embedding_forward.10} parent=39 // pred_check_branch
        %487 = sbr.rel (%p485) target = $region44
      $region43: #{conv_embedding_forward.10} parent=39 // pred_region
        %s488 = smul.u32 16, %s15
        %p489 = scmp.lt.s32.totalorder %s488, 63
        %s490 = scalar_select %p489, %s488, 63
        %s491 = smul.addr %s490, 8
        %s492 = scalar_lea.vmem %s3, %s491
      $region44: #{conv_embedding_forward.10} parent=39 // pred_fallthru
        _
    $region40: #{conv_embedding_forward.10} parent=5 // pred_fallthru
      _
  $region6: #{conv_embedding_forward.10} parent=0 // loop_footer
    %s13 = sadd.s32 1, %s9
  $region7: #{conv_embedding_forward.10} parent=0 // loop_footer_branch
    %8 = sbr.rel target = $region3
  $region8: #{conv_embedding_forward.10} parent=0 // loop_exit
    _

// kernel: conv_embedding_forward.11
$region0: #{conv_embedding_forward.11}
  #allocation0 [shape = 'u32[]', space=smem, size = 0x4, offset = 0x4, fixed_abs, tag = 'smem constant byte address 0x4 - core index']
  #allocation1 [shape = 'u32[144,128]{1,0:T(1,128)}', space=vmem, size = 0x12000, scoped, tag = 'internal scratch']
  %s0 = inlined_call_operand.vmem [shape: bf16[512,128], index: 0, kind: input, shape index: {}]
  %s1 = inlined_call_operand.vmem [shape: bf16[128,128], index: 1, kind: input, shape index: {}]
  %s2 = inlined_call_operand.vmem [shape: f32[1,128], index: 2, kind: input, shape index: {}]
  %s3 = inlined_call_operand.vmem [shape: f32[512,128], index: 3, kind: output, shape index: {}]
  %s4 = sld [smem:[#allocation0]]
  $region45: #{conv_embedding_forward.11} parent=0
    _
  %s6 = ssub.s32 1, %s4
  %s7 = scalar_select 0, %s6, %s4
  loop: start=0, step=1, limit=6
  $region2: #{conv_embedding_forward.11} parent=0 // loop_pre_header
    _
  $region3: #{conv_embedding_forward.11} parent=0 // loop_header
    %s9 = sphi 0, %s13
    %p10 = scmp.ge.s32.totalorder %s9, 6
    %s19 = sphi 0, %s21
    %s22 = sphi 0, %s19
    %s23 = sphi 0, %s22
    %s39 = sphi 0, %s23
    %s43 = sphi 0, %s43
    %s45 = sphi 0, %s43
    %s46 = sphi 0, %s45
    %s60 = sphi 0, %s46
    %s64 = sphi 0, %s64
    %s66 = sphi 0, %s64
    %s67 = sphi 0, %s66
    %s81 = sphi 0, %s67
    %s87 = sphi 0, %s89
    %s90 = sphi 0, %s87
    %s91 = sphi 0, %s90
    %s107 = sphi 0, %s91
  $region4: #{conv_embedding_forward.11} parent=0 // loop_header_branch
    %12 = sbr.rel (%p10) target = $region8
  $region5: #{conv_embedding_forward.11} parent=0 // loop_body
    %s14 = ssub.s32 %s9, 1
    %s15 = ssub.s32 %s9, 2
    %s16 = sadd.s32 %s9, 1
    %s17 = ssub.s32 %s9, %s16
    %p18 = scmp.eq.s32.totalorder %s17, 0
    %s20 = sadd.s32 %s19, 1
    %s21 = scalar_select %p18, %s19, %s20
    %p24 = pneg %p18
    %p25 = scmp.eq.s32.totalorder %s9, 3
    %p26 = por %p24, %p25
    %p27 = scmp.ne.s32.totalorder %s19, %s22
    %p28 = scmp.eq.s32.totalorder %s9, 0
    %p29 = por %p27, %p28
    %p30 = scmp.ne.s32.totalorder %s19, %s22
    %p31 = scmp.eq.s32.totalorder %s14, 3
    %p32 = por %p30, %p31
    %p33 = scmp.ne.s32.totalorder %s22, %s23
    %p34 = scmp.eq.s32.totalorder %s14, 0
    %p35 = por %p33, %p34
    %p36 = scmp.ne.s32.totalorder %s22, %s23
    %p37 = scmp.eq.s32.totalorder %s15, 3
    %p38 = por %p36, %p37
    %p40 = scmp.ne.s32.totalorder %s23, %s39
    %p41 = scmp.eq.s32.totalorder %s15, 0
    %p42 = por %p40, %p41
    %s44 = sadd.s32 %s43, 1
    %p47 = scmp.eq.s32.totalorder %s9, 3
    %p48 = scmp.ne.s32.totalorder %s43, %s45
    %p49 = scmp.eq.s32.totalorder %s9, 0
    %p50 = por %p48, %p49
    %p51 = scmp.ne.s32.totalorder %s43, %s45
    %p52 = scmp.eq.s32.totalorder %s14, 3
    %p53 = por %p51, %p52
    %p54 = scmp.ne.s32.totalorder %s45, %s46
    %p55 = scmp.eq.s32.totalorder %s14, 0
    %p56 = por %p54, %p55
    %p57 = scmp.ne.s32.totalorder %s45, %s46
    %p58 = scmp.eq.s32.totalorder %s15, 3
    %p59 = por %p57, %p58
    %p61 = scmp.ne.s32.totalorder %s46, %s60
    %p62 = scmp.eq.s32.totalorder %s15, 0
    %p63 = por %p61, %p62
    %s65 = sadd.s32 %s64, 1
    %p68 = scmp.eq.s32.totalorder %s9, 3
    %p69 = scmp.ne.s32.totalorder %s64, %s66
    %p70 = scmp.eq.s32.totalorder %s9, 0
    %p71 = por %p69, %p70
    %p72 = scmp.ne.s32.totalorder %s64, %s66
    %p73 = scmp.eq.s32.totalorder %s14, 3
    %p74 = por %p72, %p73
    %p75 = scmp.ne.s32.totalorder %s66, %s67
    %p76 = scmp.eq.s32.totalorder %s14, 0
    %p77 = por %p75, %p76
    %p78 = scmp.ne.s32.totalorder %s66, %s67
    %p79 = scmp.eq.s32.totalorder %s15, 3
    %p80 = por %p78, %p79
    %p82 = scmp.ne.s32.totalorder %s67, %s81
    %p83 = scmp.eq.s32.totalorder %s15, 0
    %p84 = por %p82, %p83
    %s85 = ssub.s32 %s9, %s16
    %p86 = scmp.eq.s32.totalorder %s85, 0
    %s88 = sadd.s32 %s87, 1
    %s89 = scalar_select %p86, %s87, %s88
    %p92 = pneg %p86
    %p93 = scmp.eq.s32.totalorder %s9, 3
    %p94 = por %p92, %p93
    %p95 = scmp.ne.s32.totalorder %s87, %s90
    %p96 = scmp.eq.s32.totalorder %s9, 0
    %p97 = por %p95, %p96
    %p98 = scmp.ne.s32.totalorder %s87, %s90
    %p99 = scmp.eq.s32.totalorder %s14, 3
    %p100 = por %p98, %p99
    %p101 = scmp.ne.s32.totalorder %s90, %s91
    %p102 = scmp.eq.s32.totalorder %s14, 0
    %p103 = por %p101, %p102
    %p104 = scmp.ne.s32.totalorder %s90, %s91
    %p105 = scmp.eq.s32.totalorder %s15, 3
    %p106 = por %p104, %p105
    %p108 = scmp.ne.s32.totalorder %s91, %s107
    %p109 = scmp.eq.s32.totalorder %s15, 0
    %p110 = por %p108, %p109
    %p111 = scmp.le.s32.totalorder 1, %s9
    %p112 = scmp.lt.s32.totalorder %s9, 5
    %p113 = pnand %p111, %p112
    %p114 = pneg %p113
    // Predicated region
    $region9: #{conv_embedding_forward.11} parent=5 // pred_check
      _
    $region10: #{conv_embedding_forward.11} parent=5 // pred_check_branch
      %116 = sbr.rel (%p113) target = $region12
    $region11: #{conv_embedding_forward.11} parent=5 // pred_region
      %s117 = ssub.s32 %s9, 1
      // Predicated region
      $region13: #{conv_embedding_forward.11} parent=11 // pred_check
        %p118 = pneg %p56
      $region14: #{conv_embedding_forward.11} parent=11 // pred_check_branch
        %120 = sbr.rel (%p118) target = $region16
      $region15: #{conv_embedding_forward.11} parent=11 // pred_region
        _
      $region16: #{conv_embedding_forward.11} parent=11 // pred_fallthru
        _
      // Predicated region
      $region17: #{conv_embedding_forward.11} parent=11 // pred_check
        %p121 = pneg %p77
      $region18: #{conv_embedding_forward.11} parent=11 // pred_check_branch
        %123 = sbr.rel (%p121) target = $region20
      $region19: #{conv_embedding_forward.11} parent=11 // pred_region
        _
      $region20: #{conv_embedding_forward.11} parent=11 // pred_fallthru
        _
    $region12: #{conv_embedding_forward.11} parent=5 // pred_fallthru
      _
    %p124 = scmp.lt.s32.totalorder %s9, 4
    // Predicated region
    $region21: #{conv_embedding_forward.11} parent=5 // pred_check
      %p125 = pneg %p124
    $region22: #{conv_embedding_forward.11} parent=5 // pred_check_branch
      %127 = sbr.rel (%p125) target = $region24
    $region23: #{conv_embedding_forward.11} parent=5 // pred_region
      // Predicated region
      $region25: #{conv_embedding_forward.11} parent=23 // pred_check
        %p128 = pneg %p29
      $region26: #{conv_embedding_forward.11} parent=23 // pred_check_branch
        %130 = sbr.rel (%p128) target = $region28
      $region27: #{conv_embedding_forward.11} parent=23 // pred_region
        %s131 = smul.u32 16, %s9
        %p132 = scmp.lt.s32.totalorder %s131, 63
        %s133 = scalar_select %p132, %s131, 63
        %s134 = smul.addr %s133, 4
        %s135 = scalar_lea.vmem %s0, %s134
        %s136 = smul.u32 16, %s9
      $region28: #{conv_embedding_forward.11} parent=23 // pred_fallthru
        _
    $region24: #{conv_embedding_forward.11} parent=5 // pred_fallthru
      _
    %p137 = scmp.le.s32.totalorder 1, %s9
    %p138 = scmp.lt.s32.totalorder %s9, 5
    %p139 = pnand %p137, %p138
    %p140 = pneg %p139
    // Predicated region
    $region29: #{conv_embedding_forward.11} parent=5 // pred_check
      _
    $region30: #{conv_embedding_forward.11} parent=5 // pred_check_branch
      %142 = sbr.rel (%p139) target = $region32
    $region31: #{conv_embedding_forward.11} parent=5 // pred_region
      %s143 = ssub.s32 %s9, 1
      %s144 = smul.u32 16, %s14
      %p145 = scmp.lt.s32.totalorder %s144, 63
      %s146 = scalar_select %p145, %s144, 63
      %s147 = smul.addr %s146, 4
      %s148 = scalar_lea.vmem %s0, %s147
      %p149 = pneg %p35
      %p150 = pneg %p32
      %p151 = pneg %p56
      %p152 = pneg %p53
      %p153 = pneg %p77
      %p154 = pneg %p74
      %p155 = pneg %p103
      %p156 = pneg %p100
      %s157 = smul.u32 16, %s14
      %p158 = scmp.lt.s32.totalorder %s157, 63
      %s159 = scalar_select %p158, %s157, 63
      %s160 = smul.addr %s159, 8
      %s161 = scalar_lea.vmem %s3, %s160
      %s162 = smul.u32 16, %s14
      %p163 = scmp.lt.s32.totalorder %s162, 63
      %s164 = scalar_select %p163, %s162, 63
      %s165 = smul.addr %s164, 4
      %s166 = scalar_lea.vmem %s0, %s165
      %s167 = smul.u32 16, %s14
      %s168 = smul.u32 16, %s14
      %p169 = scmp.lt.s32.totalorder %s168, 63
      %s170 = scalar_select %p169, %s168, 63
      %s171 = smul.addr %s170, 8
      %s172 = scalar_lea.vmem %s3, %s171
      %s173 = smul.u32 16, %s14
      %v175 = vld [vmem:[%s166] sm:$0xf]
      %v176 = vld [vmem:[%s166 + $0x4] sm:$0xf]
      %v177 = vld [vmem:[%s166 + $0x8] sm:$0xf]
      %v178 = vld [vmem:[%s166 + $0xc] sm:$0xf]
      %v179 = vld [vmem:[%s166 + $0x10] sm:$0xf]
      %v180 = vld [vmem:[%s166 + $0x14] sm:$0xf]
      %v181 = vld [vmem:[%s166 + $0x18] sm:$0xf]
      %v182 = vld [vmem:[%s166 + $0x1c] sm:$0xf]
      %v183 = vld [vmem:[%s166 + $0x20] sm:$0xf]
      %v184 = vld [vmem:[%s166 + $0x24] sm:$0xf]
      %v185 = vld [vmem:[%s166 + $0x28] sm:$0xf]
      %v186 = vld [vmem:[%s166 + $0x2c] sm:$0xf]
      %v187 = vld [vmem:[%s166 + $0x30] sm:$0xf]
      %v188 = vld [vmem:[%s166 + $0x34] sm:$0xf]
      %v189 = vld [vmem:[%s166 + $0x38] sm:$0xf]
      %v190 = vld [vmem:[%s166 + $0x3c] sm:$0xf]
      %v191 = vld [vmem:[%s1] sm:$0xf]
      %v192 = vld [vmem:[%s1 + $0x4] sm:$0xf]
      %v193 = vld [vmem:[%s1 + $0x8] sm:$0xf]
      %v194 = vld [vmem:[%s1 + $0xc] sm:$0xf]
      %v195 = vld [vmem:[%s1 + $0x10] sm:$0xf]
      %v196 = vld [vmem:[%s1 + $0x14] sm:$0xf]
      %v197 = vld [vmem:[%s1 + $0x18] sm:$0xf]
      %v198 = vld [vmem:[%s1 + $0x1c] sm:$0xf]
      %v199 = vld [vmem:[%s1 + $0x20] sm:$0xf]
      %v200 = vld [vmem:[%s1 + $0x24] sm:$0xf]
      %v201 = vld [vmem:[%s1 + $0x28] sm:$0xf]
      %v202 = vld [vmem:[%s1 + $0x2c] sm:$0xf]
      %v203 = vld [vmem:[%s1 + $0x30] sm:$0xf]
      %v204 = vld [vmem:[%s1 + $0x34] sm:$0xf]
      %v205 = vld [vmem:[%s1 + $0x38] sm:$0xf]
      %v206 = vld [vmem:[%s1 + $0x3c] sm:$0xf]
      %v207 = vld [vmem:[%s2] sm:$0x1]
      %v209 = vlaneseq
      %v210 = vshrl.u32 %v209, 7
      %v211 = vsub.s32 0, %v210
      %v212 = vrot.slane %v207, %v211
      %v230 = vunpack.c.l.b16 %v175
      %v231 = vunpack.c.l.b16 %v176
      %v232 = vunpack.c.l.b16 %v177
      %v233 = vunpack.c.l.b16 %v178
      %v234 = vunpack.c.l.b16 %v179
      %v235 = vunpack.c.l.b16 %v180
      %v236 = vunpack.c.l.b16 %v181
      %v237 = vunpack.c.l.b16 %v182
      %v238 = vunpack.c.l.b16 %v183
      %v239 = vunpack.c.l.b16 %v184
      %v240 = vunpack.c.l.b16 %v185
      %v241 = vunpack.c.l.b16 %v186
      %v242 = vunpack.c.l.b16 %v187
      %v243 = vunpack.c.l.b16 %v188
      %v244 = vunpack.c.l.b16 %v189
      %v245 = vunpack.c.l.b16 %v190
      %v246 = vpack.c.b16 %v231, %v230
      %v247 = vpack.c.b16 %v233, %v232
      %v248 = vpack.c.b16 %v235, %v234
      %v249 = vpack.c.b16 %v237, %v236
      %v250 = vpack.c.b16 %v239, %v238
      %v251 = vpack.c.b16 %v241, %v240
      %v252 = vpack.c.b16 %v243, %v242
      %v253 = vpack.c.b16 %v245, %v244
      %v278 = vunpack.c.l.b16 %v191
      %v279 = vunpack.c.l.b16 %v192
      %v280 = vunpack.c.l.b16 %v193
      %v281 = vunpack.c.l.b16 %v194
      %v282 = vunpack.c.l.b16 %v195
      %v283 = vunpack.c.l.b16 %v196
      %v284 = vunpack.c.l.b16 %v197
      %v285 = vunpack.c.l.b16 %v198
      %v286 = vunpack.c.l.b16 %v199
      %v287 = vunpack.c.l.b16 %v200
      %v288 = vunpack.c.l.b16 %v201
      %v289 = vunpack.c.l.b16 %v202
      %v290 = vunpack.c.l.b16 %v203
      %v291 = vunpack.c.l.b16 %v204
      %v292 = vunpack.c.l.b16 %v205
      %v293 = vunpack.c.l.b16 %v206
      %v294 = vpack.c.b16 %v279, %v278
      %v295 = vpack.c.b16 %v281, %v280
      %v296 = vpack.c.b16 %v283, %v282
      %v297 = vpack.c.b16 %v285, %v284
      %v298 = vpack.c.b16 %v287, %v286
      %v299 = vpack.c.b16 %v289, %v288
      %v300 = vpack.c.b16 %v291, %v290
      %v301 = vpack.c.b16 %v293, %v292
      %310 = vmatprep.subr.bf16.mxu0 0
      %311 = vmatpush1.bf16.msra.mxu0 %v301
      %312 = vmatprep.subr.bf16.mxu0 0
      %313 = vmatpush1.bf16.msra.mxu0 %v300
      %314 = vmatprep.subr.bf16.mxu0 0
      %315 = vmatpush1.bf16.msra.mxu0 %v299
      %316 = vmatprep.subr.bf16.mxu0 0
      %317 = vmatpush1.bf16.msra.mxu0 %v298
      %318 = vmatprep.subr.bf16.mxu0 0
      %319 = vmatpush1.bf16.msra.mxu0 %v297
      %320 = vmatprep.subr.bf16.mxu0 0
      %321 = vmatpush1.bf16.msra.mxu0 %v296
      %322 = vmatprep.subr.bf16.mxu0 0
      %323 = vmatpush1.bf16.msra.mxu0 %v295
      %324 = vmatprep.subr.bf16.mxu0 0
      %325 = vmatpush1.bf16.msra.mxu0 %v294
      %326 = vmatprep.subr.bf16.mxu0 0
      %327 = vmatpush2.bf16.msra.mxu0 0
      %328 = vmatprep.subr.bf16.mxu0 0
      %329 = vmatpush2.bf16.msra.mxu0 0
      %330 = vmatprep.subr.bf16.mxu0 0
      %331 = vmatpush2.bf16.msra.mxu0 0
      %332 = vmatprep.subr.bf16.mxu0 0
      %333 = vmatpush2.bf16.msra.mxu0 0
      %334 = vmatprep.subr.bf16.mxu0 0
      %335 = vmatpush2.bf16.msra.mxu0 0
      %336 = vmatprep.subr.bf16.mxu0 0
      %337 = vmatpush2.bf16.msra.mxu0 0
      %338 = vmatprep.subr.bf16.mxu0 0
      %339 = vmatpush2.bf16.msra.mxu0 0
      %340 = vmatprep.subr.bf16.mxu0 0
      %341 = vmatpush2.bf16.msra.mxu0 0
      %342 = vmatprep.mubr.bf16.mxu0 0
      %343 = vmatmul.mubr.bf16.gmra.mxu0 %v246
      %v344 = vpop.f32.mrf.mxu0
      %v345 = vadd.f32 %v212, %v344
      %v346 = vpop.f32.mrf.mxu0
      %v347 = vpop.f32.mrf.mxu0
      %v348 = vadd.f32 %v212, %v347
      %v349 = vpop.f32.mrf.mxu0
      %350 = vmatprep.mubr.bf16.mxu0 0
      %351 = vmatmul.mubr.bf16.gmra.mxu0 %v247
      %v352 = vpop.f32.mrf.mxu0
      %v353 = vadd.f32 %v212, %v352
      %v354 = vpop.f32.mrf.mxu0
      %v355 = vpop.f32.mrf.mxu0
      %v356 = vadd.f32 %v212, %v355
      %v357 = vpop.f32.mrf.mxu0
      %358 = vmatprep.mubr.bf16.mxu0 0
      %359 = vmatmul.mubr.bf16.gmra.mxu0 %v248
      %v360 = vpop.f32.mrf.mxu0
      %v361 = vadd.f32 %v212, %v360
      %v362 = vpop.f32.mrf.mxu0
      %v363 = vpop.f32.mrf.mxu0
      %v364 = vadd.f32 %v212, %v363
      %v365 = vpop.f32.mrf.mxu0
      %366 = vmatprep.mubr.bf16.mxu0 0
      %367 = vmatmul.mubr.bf16.gmra.mxu0 %v249
      %v368 = vpop.f32.mrf.mxu0
      %v369 = vadd.f32 %v212, %v368
      %v370 = vpop.f32.mrf.mxu0
      %v371 = vpop.f32.mrf.mxu0
      %v372 = vadd.f32 %v212, %v371
      %v373 = vpop.f32.mrf.mxu0
      %374 = vmatprep.mubr.bf16.mxu0 0
      %375 = vmatmul.mubr.bf16.gmra.mxu0 %v250
      %v376 = vpop.f32.mrf.mxu0
      %v377 = vadd.f32 %v212, %v376
      %v378 = vpop.f32.mrf.mxu0
      %v379 = vpop.f32.mrf.mxu0
      %v380 = vadd.f32 %v212, %v379
      %v381 = vpop.f32.mrf.mxu0
      %382 = vmatprep.mubr.bf16.mxu0 0
      %383 = vmatmul.mubr.bf16.gmra.mxu0 %v251
      %v384 = vpop.f32.mrf.mxu0
      %v385 = vadd.f32 %v212, %v384
      %v386 = vpop.f32.mrf.mxu0
      %v387 = vpop.f32.mrf.mxu0
      %v388 = vadd.f32 %v212, %v387
      %v389 = vpop.f32.mrf.mxu0
      %390 = vmatprep.mubr.bf16.mxu0 0
      %391 = vmatmul.mubr.bf16.gmra.mxu0 %v252
      %v392 = vpop.f32.mrf.mxu0
      %v393 = vadd.f32 %v212, %v392
      %v394 = vpop.f32.mrf.mxu0
      %v395 = vpop.f32.mrf.mxu0
      %v396 = vadd.f32 %v212, %v395
      %v397 = vpop.f32.mrf.mxu0
      %398 = vmatprep.mubr.bf16.mxu0 0
      %399 = vmatmul.mubr.bf16.gmra.mxu0 %v253
      %v400 = vpop.f32.mrf.mxu0
      %v401 = vadd.f32 %v212, %v400
      %v402 = vpop.f32.mrf.mxu0
      %v403 = vpop.f32.mrf.mxu0
      %v404 = vadd.f32 %v212, %v403
      %v405 = vpop.f32.mrf.mxu0
      %406 = vdwg.mxu0
      %407 = vst [vmem:[%s172] sm:$0xff] %v345
      %408 = vst [vmem:[%s172 + $0x8] sm:$0xff] %v348
      %409 = vst [vmem:[%s172 + $0x10] sm:$0xff] %v353
      %410 = vst [vmem:[%s172 + $0x18] sm:$0xff] %v356
      %411 = vst [vmem:[%s172 + $0x20] sm:$0xff] %v361
      %412 = vst [vmem:[%s172 + $0x28] sm:$0xff] %v364
      %413 = vst [vmem:[%s172 + $0x30] sm:$0xff] %v369
      %414 = vst [vmem:[%s172 + $0x38] sm:$0xff] %v372
      %415 = vst [vmem:[%s172 + $0x40] sm:$0xff] %v377
      %416 = vst [vmem:[%s172 + $0x48] sm:$0xff] %v380
      %417 = vst [vmem:[%s172 + $0x50] sm:$0xff] %v385
      %418 = vst [vmem:[%s172 + $0x58] sm:$0xff] %v388
      %419 = vst [vmem:[%s172 + $0x60] sm:$0xff] %v393
      %420 = vst [vmem:[%s172 + $0x68] sm:$0xff] %v396
      %421 = vst [vmem:[%s172 + $0x70] sm:$0xff] %v401
      %422 = vst [vmem:[%s172 + $0x78] sm:$0xff] %v404
      %s423 = smul.u32 16, %s14
      %p424 = scmp.lt.s32.totalorder %s423, 63
      %s425 = scalar_select %p424, %s423, 63
      %s426 = smul.addr %s425, 8
      %s427 = scalar_lea.vmem %s3, %s426
      // Predicated region
      $region33: #{conv_embedding_forward.11} parent=31 // pred_check
        %p428 = pneg %p100
      $region34: #{conv_embedding_forward.11} parent=31 // pred_check_branch
        %430 = sbr.rel (%p428) target = $region36
      $region35: #{conv_embedding_forward.11} parent=31 // pred_region
        %s431 = smul.u32 16, %s14
      $region36: #{conv_embedding_forward.11} parent=31 // pred_fallthru
        _
    $region32: #{conv_embedding_forward.11} parent=5 // pred_fallthru
      _
    %p432 = scmp.le.s32.totalorder 2, %s9
    // Predicated region
    $region37: #{conv_embedding_forward.11} parent=5 // pred_check
      %p433 = pneg %p432
    $region38: #{conv_embedding_forward.11} parent=5 // pred_check_branch
      %435 = sbr.rel (%p433) target = $region40
    $region39: #{conv_embedding_forward.11} parent=5 // pred_region
      %s436 = ssub.s32 %s9, 2
      // Predicated region
      $region41: #{conv_embedding_forward.11} parent=39 // pred_check
        %p437 = pneg %p106
      $region42: #{conv_embedding_forward.11} parent=39 // pred_check_branch
        %439 = sbr.rel (%p437) target = $region44
      $region43: #{conv_embedding_forward.11} parent=39 // pred_region
        %s440 = smul.u32 16, %s15
        %p441 = scmp.lt.s32.totalorder %s440, 63
        %s442 = scalar_select %p441, %s440, 63
        %s443 = smul.addr %s442, 8
        %s444 = scalar_lea.vmem %s3, %s443
      $region44: #{conv_embedding_forward.11} parent=39 // pred_fallthru
        _
    $region40: #{conv_embedding_forward.11} parent=5 // pred_fallthru
      _
  $region6: #{conv_embedding_forward.11} parent=0 // loop_footer
    %s13 = sadd.s32 1, %s9
  $region7: #{conv_embedding_forward.11} parent=0 // loop_footer_branch
    %8 = sbr.rel target = $region3
  $region8: #{conv_embedding_forward.11} parent=0 // loop_exit
    _

// kernel: conv_embedding_forward.12
$region0: #{conv_embedding_forward.12}
  #allocation0 [shape = 'u32[]', space=smem, size = 0x4, offset = 0x4, fixed_abs, tag = 'smem constant byte address 0x4 - core index']
  #allocation1 [shape = 'u32[144,128]{1,0:T(1,128)}', space=vmem, size = 0x12000, scoped, tag = 'internal scratch']
  %s0 = inlined_call_operand.vmem [shape: bf16[32,128], index: 0, kind: input, shape index: {}]
  %s1 = inlined_call_operand.vmem [shape: bf16[128,128], index: 1, kind: input, shape index: {}]
  %s2 = inlined_call_operand.vmem [shape: f32[1,128], index: 2, kind: input, shape index: {}]
  %s3 = inlined_call_operand.vmem [shape: f32[32,128], index: 3, kind: output, shape index: {}]
  %s4 = sld [smem:[#allocation0]]
  $region22: #{conv_embedding_forward.12} parent=0
    _
  %s6 = ssub.s32 1, %s4
  %s7 = scalar_select 0, %s6, %s4
  // Predicated region
  $region2: #{conv_embedding_forward.12} parent=0 // pred_check
    _
  $region3: #{conv_embedding_forward.12} parent=0 // pred_check_branch
    %9 = sbr.rel (0) target = $region5
  $region4: #{conv_embedding_forward.12} parent=0 // pred_region
    _
  $region5: #{conv_embedding_forward.12} parent=0 // pred_fallthru
    _
  // Predicated region
  $region6: #{conv_embedding_forward.12} parent=0 // pred_check
    _
  $region7: #{conv_embedding_forward.12} parent=0 // pred_check_branch
    %11 = sbr.rel (0) target = $region9
  $region8: #{conv_embedding_forward.12} parent=0 // pred_region
    _
  $region9: #{conv_embedding_forward.12} parent=0 // pred_fallthru
    _
  // Predicated region
  $region10: #{conv_embedding_forward.12} parent=0 // pred_check
    _
  $region11: #{conv_embedding_forward.12} parent=0 // pred_check_branch
    %13 = sbr.rel (0) target = $region13
  $region12: #{conv_embedding_forward.12} parent=0 // pred_region
    _
  $region13: #{conv_embedding_forward.12} parent=0 // pred_fallthru
    _
  %v15 = vld [vmem:[%s0] sm:$0xf]
  %v16 = vld [vmem:[%s0 + $0x4] sm:$0xf]
  %v17 = vld [vmem:[%s0 + $0x8] sm:$0xf]
  %v18 = vld [vmem:[%s0 + $0xc] sm:$0xf]
  %v19 = vld [vmem:[%s1] sm:$0xf]
  %v20 = vld [vmem:[%s1 + $0x4] sm:$0xf]
  %v21 = vld [vmem:[%s1 + $0x8] sm:$0xf]
  %v22 = vld [vmem:[%s1 + $0xc] sm:$0xf]
  %v23 = vld [vmem:[%s1 + $0x10] sm:$0xf]
  %v24 = vld [vmem:[%s1 + $0x14] sm:$0xf]
  %v25 = vld [vmem:[%s1 + $0x18] sm:$0xf]
  %v26 = vld [vmem:[%s1 + $0x1c] sm:$0xf]
  %v27 = vld [vmem:[%s1 + $0x20] sm:$0xf]
  %v28 = vld [vmem:[%s1 + $0x24] sm:$0xf]
  %v29 = vld [vmem:[%s1 + $0x28] sm:$0xf]
  %v30 = vld [vmem:[%s1 + $0x2c] sm:$0xf]
  %v31 = vld [vmem:[%s1 + $0x30] sm:$0xf]
  %v32 = vld [vmem:[%s1 + $0x34] sm:$0xf]
  %v33 = vld [vmem:[%s1 + $0x38] sm:$0xf]
  %v34 = vld [vmem:[%s1 + $0x3c] sm:$0xf]
  %v35 = vld [vmem:[%s2] sm:$0x1]
  %v37 = vlaneseq
  %v38 = vshrl.u32 %v37, 7
  %v39 = vsub.s32 0, %v38
  %v40 = vrot.slane %v35, %v39
  %v46 = vunpack.c.l.b16 %v15
  %v47 = vunpack.c.l.b16 %v16
  %v48 = vunpack.c.l.b16 %v17
  %v49 = vunpack.c.l.b16 %v18
  %v50 = vpack.c.b16 %v47, %v46
  %v51 = vpack.c.b16 %v49, %v48
  %v70 = vunpack.c.l.b16 %v19
  %v71 = vunpack.c.l.b16 %v20
  %v72 = vunpack.c.l.b16 %v21
  %v73 = vunpack.c.l.b16 %v22
  %v74 = vunpack.c.l.b16 %v23
  %v75 = vunpack.c.l.b16 %v24
  %v76 = vunpack.c.l.b16 %v25
  %v77 = vunpack.c.l.b16 %v26
  %v78 = vunpack.c.l.b16 %v27
  %v79 = vunpack.c.l.b16 %v28
  %v80 = vunpack.c.l.b16 %v29
  %v81 = vunpack.c.l.b16 %v30
  %v82 = vunpack.c.l.b16 %v31
  %v83 = vunpack.c.l.b16 %v32
  %v84 = vunpack.c.l.b16 %v33
  %v85 = vunpack.c.l.b16 %v34
  %v86 = vpack.c.b16 %v71, %v70
  %v87 = vpack.c.b16 %v73, %v72
  %v88 = vpack.c.b16 %v75, %v74
  %v89 = vpack.c.b16 %v77, %v76
  %v90 = vpack.c.b16 %v79, %v78
  %v91 = vpack.c.b16 %v81, %v80
  %v92 = vpack.c.b16 %v83, %v82
  %v93 = vpack.c.b16 %v85, %v84
  %102 = vmatprep.subr.bf16.mxu0 0
  %103 = vmatpush1.bf16.msra.mxu0 %v93
  %104 = vmatprep.subr.bf16.mxu0 0
  %105 = vmatpush1.bf16.msra.mxu0 %v92
  %106 = vmatprep.subr.bf16.mxu0 0
  %107 = vmatpush1.bf16.msra.mxu0 %v91
  %108 = vmatprep.subr.bf16.mxu0 0
  %109 = vmatpush1.bf16.msra.mxu0 %v90
  %110 = vmatprep.subr.bf16.mxu0 0
  %111 = vmatpush1.bf16.msra.mxu0 %v89
  %112 = vmatprep.subr.bf16.mxu0 0
  %113 = vmatpush1.bf16.msra.mxu0 %v88
  %114 = vmatprep.subr.bf16.mxu0 0
  %115 = vmatpush1.bf16.msra.mxu0 %v87
  %116 = vmatprep.subr.bf16.mxu0 0
  %117 = vmatpush1.bf16.msra.mxu0 %v86
  %118 = vmatprep.subr.bf16.mxu0 0
  %119 = vmatpush2.bf16.msra.mxu0 0
  %120 = vmatprep.subr.bf16.mxu0 0
  %121 = vmatpush2.bf16.msra.mxu0 0
  %122 = vmatprep.subr.bf16.mxu0 0
  %123 = vmatpush2.bf16.msra.mxu0 0
  %124 = vmatprep.subr.bf16.mxu0 0
  %125 = vmatpush2.bf16.msra.mxu0 0
  %126 = vmatprep.subr.bf16.mxu0 0
  %127 = vmatpush2.bf16.msra.mxu0 0
  %128 = vmatprep.subr.bf16.mxu0 0
  %129 = vmatpush2.bf16.msra.mxu0 0
  %130 = vmatprep.subr.bf16.mxu0 0
  %131 = vmatpush2.bf16.msra.mxu0 0
  %132 = vmatprep.subr.bf16.mxu0 0
  %133 = vmatpush2.bf16.msra.mxu0 0
  %134 = vmatprep.mubr.bf16.mxu0 0
  %135 = vmatmul.mubr.bf16.gmra.mxu0 %v50
  %v136 = vpop.f32.mrf.mxu0
  %v137 = vadd.f32 %v40, %v136
  %v138 = vpop.f32.mrf.mxu0
  %v139 = vpop.f32.mrf.mxu0
  %v140 = vadd.f32 %v40, %v139
  %v141 = vpop.f32.mrf.mxu0
  %142 = vmatprep.mubr.bf16.mxu0 0
  %143 = vmatmul.mubr.bf16.gmra.mxu0 %v51
  %v144 = vpop.f32.mrf.mxu0
  %v145 = vadd.f32 %v40, %v144
  %v146 = vpop.f32.mrf.mxu0
  %v147 = vpop.f32.mrf.mxu0
  %v148 = vadd.f32 %v40, %v147
  %v149 = vpop.f32.mrf.mxu0
  %150 = vdwg.mxu0
  %vm151 = vcmp.gt.f32.partialorder %v137, 0.0
  %vm152 = vcmp.gt.f32.partialorder %v140, 0.0
  %vm153 = vcmp.gt.f32.partialorder %v145, 0.0
  %vm154 = vcmp.gt.f32.partialorder %v148, 0.0
  %v155 = vmul.f32 %v137, 0.01
  %v156 = vmul.f32 %v140, 0.01
  %v157 = vmul.f32 %v145, 0.01
  %v158 = vmul.f32 %v148, 0.01
  %v159 = vsel %vm151, %v137, %v155
  %v160 = vsel %vm152, %v140, %v156
  %v161 = vsel %vm153, %v145, %v157
  %v162 = vsel %vm154, %v148, %v158
  %163 = vst [vmem:[%s3] sm:$0xff] %v159
  %164 = vst [vmem:[%s3 + $0x8] sm:$0xff] %v160
  %165 = vst [vmem:[%s3 + $0x10] sm:$0xff] %v161
  %166 = vst [vmem:[%s3 + $0x18] sm:$0xff] %v162
  // Predicated region
  $region14: #{conv_embedding_forward.12} parent=0 // pred_check
    _
  $region15: #{conv_embedding_forward.12} parent=0 // pred_check_branch
    %168 = sbr.rel (0) target = $region17
  $region16: #{conv_embedding_forward.12} parent=0 // pred_region
    _
  $region17: #{conv_embedding_forward.12} parent=0 // pred_fallthru
    _
  // Predicated region
  $region18: #{conv_embedding_forward.12} parent=0 // pred_check
    _
  $region19: #{conv_embedding_forward.12} parent=0 // pred_check_branch
    %170 = sbr.rel (0) target = $region21
  $region20: #{conv_embedding_forward.12} parent=0 // pred_region
    _
  $region21: #{conv_embedding_forward.12} parent=0 // pred_fallthru
    _

// kernel: conv_embedding_forward.13
$region0: #{conv_embedding_forward.13}
  #allocation0 [shape = 'u32[]', space=smem, size = 0x4, offset = 0x4, fixed_abs, tag = 'smem constant byte address 0x4 - core index']
  #allocation1 [shape = 'u32[144,128]{1,0:T(1,128)}', space=vmem, size = 0x12000, scoped, tag = 'internal scratch']
  %s0 = inlined_call_operand.vmem [shape: bf16[128,256], index: 0, kind: input, shape index: {}]
  %s1 = inlined_call_operand.vmem [shape: bf16[256,128], index: 1, kind: input, shape index: {}]
  %s2 = inlined_call_operand.vmem [shape: f32[1,128], index: 2, kind: input, shape index: {}]
  %s3 = inlined_call_operand.vmem [shape: f32[128,128], index: 3, kind: output, shape index: {}]
  %s4 = sld [smem:[#allocation0]]
  $region45: #{conv_embedding_forward.13} parent=0
    _
  %s6 = ssub.s32 1, %s4
  %s7 = scalar_select 0, %s6, %s4
  loop: start=0, step=1, limit=4
  $region2: #{conv_embedding_forward.13} parent=0 // loop_pre_header
    _
  $region3: #{conv_embedding_forward.13} parent=0 // loop_header
    %s9 = sphi 0, %s13
    %p10 = scmp.ge.s32.totalorder %s9, 4
    %s19 = sphi 0, %s21
    %s22 = sphi 0, %s19
    %s23 = sphi 0, %s22
    %s39 = sphi 0, %s23
    %s43 = sphi 0, %s43
    %s45 = sphi 0, %s43
    %s46 = sphi 0, %s45
    %s60 = sphi 0, %s46
    %s64 = sphi 0, %s64
    %s66 = sphi 0, %s64
    %s67 = sphi 0, %s66
    %s81 = sphi 0, %s67
    %s87 = sphi 0, %s89
    %s90 = sphi 0, %s87
    %s91 = sphi 0, %s90
    %s107 = sphi 0, %s91
  $region4: #{conv_embedding_forward.13} parent=0 // loop_header_branch
    %12 = sbr.rel (%p10) target = $region8
  $region5: #{conv_embedding_forward.13} parent=0 // loop_body
    %s14 = ssub.s32 %s9, 1
    %s15 = ssub.s32 %s9, 2
    %s16 = sadd.s32 %s9, 1
    %s17 = ssub.s32 %s9, %s16
    %p18 = scmp.eq.s32.totalorder %s17, 0
    %s20 = sadd.s32 %s19, 1
    %s21 = scalar_select %p18, %s19, %s20
    %p24 = pneg %p18
    %p25 = scmp.eq.s32.totalorder %s9, 1
    %p26 = por %p24, %p25
    %p27 = scmp.ne.s32.totalorder %s19, %s22
    %p28 = scmp.eq.s32.totalorder %s9, 0
    %p29 = por %p27, %p28
    %p30 = scmp.ne.s32.totalorder %s19, %s22
    %p31 = scmp.eq.s32.totalorder %s14, 1
    %p32 = por %p30, %p31
    %p33 = scmp.ne.s32.totalorder %s22, %s23
    %p34 = scmp.eq.s32.totalorder %s14, 0
    %p35 = por %p33, %p34
    %p36 = scmp.ne.s32.totalorder %s22, %s23
    %p37 = scmp.eq.s32.totalorder %s15, 1
    %p38 = por %p36, %p37
    %p40 = scmp.ne.s32.totalorder %s23, %s39
    %p41 = scmp.eq.s32.totalorder %s15, 0
    %p42 = por %p40, %p41
    %s44 = sadd.s32 %s43, 1
    %p47 = scmp.eq.s32.totalorder %s9, 1
    %p48 = scmp.ne.s32.totalorder %s43, %s45
    %p49 = scmp.eq.s32.totalorder %s9, 0
    %p50 = por %p48, %p49
    %p51 = scmp.ne.s32.totalorder %s43, %s45
    %p52 = scmp.eq.s32.totalorder %s14, 1
    %p53 = por %p51, %p52
    %p54 = scmp.ne.s32.totalorder %s45, %s46
    %p55 = scmp.eq.s32.totalorder %s14, 0
    %p56 = por %p54, %p55
    %p57 = scmp.ne.s32.totalorder %s45, %s46
    %p58 = scmp.eq.s32.totalorder %s15, 1
    %p59 = por %p57, %p58
    %p61 = scmp.ne.s32.totalorder %s46, %s60
    %p62 = scmp.eq.s32.totalorder %s15, 0
    %p63 = por %p61, %p62
    %s65 = sadd.s32 %s64, 1
    %p68 = scmp.eq.s32.totalorder %s9, 1
    %p69 = scmp.ne.s32.totalorder %s64, %s66
    %p70 = scmp.eq.s32.totalorder %s9, 0
    %p71 = por %p69, %p70
    %p72 = scmp.ne.s32.totalorder %s64, %s66
    %p73 = scmp.eq.s32.totalorder %s14, 1
    %p74 = por %p72, %p73
    %p75 = scmp.ne.s32.totalorder %s66, %s67
    %p76 = scmp.eq.s32.totalorder %s14, 0
    %p77 = por %p75, %p76
    %p78 = scmp.ne.s32.totalorder %s66, %s67
    %p79 = scmp.eq.s32.totalorder %s15, 1
    %p80 = por %p78, %p79
    %p82 = scmp.ne.s32.totalorder %s67, %s81
    %p83 = scmp.eq.s32.totalorder %s15, 0
    %p84 = por %p82, %p83
    %s85 = ssub.s32 %s9, %s16
    %p86 = scmp.eq.s32.totalorder %s85, 0
    %s88 = sadd.s32 %s87, 1
    %s89 = scalar_select %p86, %s87, %s88
    %p92 = pneg %p86
    %p93 = scmp.eq.s32.totalorder %s9, 1
    %p94 = por %p92, %p93
    %p95 = scmp.ne.s32.totalorder %s87, %s90
    %p96 = scmp.eq.s32.totalorder %s9, 0
    %p97 = por %p95, %p96
    %p98 = scmp.ne.s32.totalorder %s87, %s90
    %p99 = scmp.eq.s32.totalorder %s14, 1
    %p100 = por %p98, %p99
    %p101 = scmp.ne.s32.totalorder %s90, %s91
    %p102 = scmp.eq.s32.totalorder %s14, 0
    %p103 = por %p101, %p102
    %p104 = scmp.ne.s32.totalorder %s90, %s91
    %p105 = scmp.eq.s32.totalorder %s15, 1
    %p106 = por %p104, %p105
    %p108 = scmp.ne.s32.totalorder %s91, %s107
    %p109 = scmp.eq.s32.totalorder %s15, 0
    %p110 = por %p108, %p109
    %p111 = scmp.le.s32.totalorder 1, %s9
    %p112 = scmp.lt.s32.totalorder %s9, 3
    %p113 = pnand %p111, %p112
    %p114 = pneg %p113
    // Predicated region
    $region9: #{conv_embedding_forward.13} parent=5 // pred_check
      _
    $region10: #{conv_embedding_forward.13} parent=5 // pred_check_branch
      %116 = sbr.rel (%p113) target = $region12
    $region11: #{conv_embedding_forward.13} parent=5 // pred_region
      %s117 = ssub.s32 %s9, 1
      // Predicated region
      $region13: #{conv_embedding_forward.13} parent=11 // pred_check
        %p118 = pneg %p56
      $region14: #{conv_embedding_forward.13} parent=11 // pred_check_branch
        %120 = sbr.rel (%p118) target = $region16
      $region15: #{conv_embedding_forward.13} parent=11 // pred_region
        _
      $region16: #{conv_embedding_forward.13} parent=11 // pred_fallthru
        _
      // Predicated region
      $region17: #{conv_embedding_forward.13} parent=11 // pred_check
        %p121 = pneg %p77
      $region18: #{conv_embedding_forward.13} parent=11 // pred_check_branch
        %123 = sbr.rel (%p121) target = $region20
      $region19: #{conv_embedding_forward.13} parent=11 // pred_region
        _
      $region20: #{conv_embedding_forward.13} parent=11 // pred_fallthru
        _
    $region12: #{conv_embedding_forward.13} parent=5 // pred_fallthru
      _
    %p124 = scmp.lt.s32.totalorder %s9, 2
    // Predicated region
    $region21: #{conv_embedding_forward.13} parent=5 // pred_check
      %p125 = pneg %p124
    $region22: #{conv_embedding_forward.13} parent=5 // pred_check_branch
      %127 = sbr.rel (%p125) target = $region24
    $region23: #{conv_embedding_forward.13} parent=5 // pred_region
      // Predicated region
      $region25: #{conv_embedding_forward.13} parent=23 // pred_check
        %p128 = pneg %p29
      $region26: #{conv_embedding_forward.13} parent=23 // pred_check_branch
        %130 = sbr.rel (%p128) target = $region28
      $region27: #{conv_embedding_forward.13} parent=23 // pred_region
        %s131 = smul.u32 8, %s9
        %p132 = scmp.lt.s32.totalorder %s131, 15
        %s133 = scalar_select %p132, %s131, 15
        %s134 = smul.addr %s133, 2
        %s135 = smul.addr %s134, 4
        %s136 = scalar_lea.vmem %s0, %s135
        %s137 = smul.u32 8, %s9
      $region28: #{conv_embedding_forward.13} parent=23 // pred_fallthru
        _
    $region24: #{conv_embedding_forward.13} parent=5 // pred_fallthru
      _
    %p138 = scmp.le.s32.totalorder 1, %s9
    %p139 = scmp.lt.s32.totalorder %s9, 3
    %p140 = pnand %p138, %p139
    %p141 = pneg %p140
    // Predicated region
    $region29: #{conv_embedding_forward.13} parent=5 // pred_check
      _
    $region30: #{conv_embedding_forward.13} parent=5 // pred_check_branch
      %143 = sbr.rel (%p140) target = $region32
    $region31: #{conv_embedding_forward.13} parent=5 // pred_region
      %s144 = ssub.s32 %s9, 1
      %s145 = smul.u32 8, %s14
      %p146 = scmp.lt.s32.totalorder %s145, 15
      %s147 = scalar_select %p146, %s145, 15
      %s148 = smul.addr %s147, 2
      %s149 = smul.addr %s148, 4
      %s150 = scalar_lea.vmem %s0, %s149
      %p151 = pneg %p35
      %p152 = pneg %p32
      %p153 = pneg %p56
      %p154 = pneg %p53
      %p155 = pneg %p77
      %p156 = pneg %p74
      %p157 = pneg %p103
      %p158 = pneg %p100
      %s159 = smul.u32 8, %s14
      %p160 = scmp.lt.s32.totalorder %s159, 15
      %s161 = scalar_select %p160, %s159, 15
      %s162 = smul.addr %s161, 8
      %s163 = scalar_lea.vmem %s3, %s162
      %s164 = smul.u32 8, %s14
      %p165 = scmp.lt.s32.totalorder %s164, 15
      %s166 = scalar_select %p165, %s164, 15
      %s167 = smul.addr %s166, 2
      %s168 = smul.addr %s167, 4
      %s169 = scalar_lea.vmem %s0, %s168
      %s170 = smul.u32 8, %s14
      %s171 = smul.u32 8, %s14
      %p172 = scmp.lt.s32.totalorder %s171, 15
      %s173 = scalar_select %p172, %s171, 15
      %s174 = smul.addr %s173, 8
      %s175 = scalar_lea.vmem %s3, %s174
      %s176 = smul.u32 8, %s14
      %v178 = vld [vmem:[%s169] sm:$0xff]
      %v179 = vld [vmem:[%s169 + $0x8] sm:$0xff]
      %v180 = vld [vmem:[%s169 + $0x10] sm:$0xff]
      %v181 = vld [vmem:[%s169 + $0x18] sm:$0xff]
      %v182 = vld [vmem:[%s169 + $0x20] sm:$0xff]
      %v183 = vld [vmem:[%s169 + $0x28] sm:$0xff]
      %v184 = vld [vmem:[%s169 + $0x30] sm:$0xff]
      %v185 = vld [vmem:[%s169 + $0x38] sm:$0xff]
      %v186 = vld [vmem:[%s1] sm:$0xf]
      %v187 = vld [vmem:[%s1 + $0x4] sm:$0xf]
      %v188 = vld [vmem:[%s1 + $0x8] sm:$0xf]
      %v189 = vld [vmem:[%s1 + $0xc] sm:$0xf]
      %v190 = vld [vmem:[%s1 + $0x10] sm:$0xf]
      %v191 = vld [vmem:[%s1 + $0x14] sm:$0xf]
      %v192 = vld [vmem:[%s1 + $0x18] sm:$0xf]
      %v193 = vld [vmem:[%s1 + $0x1c] sm:$0xf]
      %v194 = vld [vmem:[%s1 + $0x20] sm:$0xf]
      %v195 = vld [vmem:[%s1 + $0x24] sm:$0xf]
      %v196 = vld [vmem:[%s1 + $0x28] sm:$0xf]
      %v197 = vld [vmem:[%s1 + $0x2c] sm:$0xf]
      %v198 = vld [vmem:[%s1 + $0x30] sm:$0xf]
      %v199 = vld [vmem:[%s1 + $0x34] sm:$0xf]
      %v200 = vld [vmem:[%s1 + $0x38] sm:$0xf]
      %v201 = vld [vmem:[%s1 + $0x3c] sm:$0xf]
      %v202 = vld [vmem:[%s1 + $0x40] sm:$0xf]
      %v203 = vld [vmem:[%s1 + $0x44] sm:$0xf]
      %v204 = vld [vmem:[%s1 + $0x48] sm:$0xf]
      %v205 = vld [vmem:[%s1 + $0x4c] sm:$0xf]
      %v206 = vld [vmem:[%s1 + $0x50] sm:$0xf]
      %v207 = vld [vmem:[%s1 + $0x54] sm:$0xf]
      %v208 = vld [vmem:[%s1 + $0x58] sm:$0xf]
      %v209 = vld [vmem:[%s1 + $0x5c] sm:$0xf]
      %v210 = vld [vmem:[%s1 + $0x60] sm:$0xf]
      %v211 = vld [vmem:[%s1 + $0x64] sm:$0xf]
      %v212 = vld [vmem:[%s1 + $0x68] sm:$0xf]
      %v213 = vld [vmem:[%s1 + $0x6c] sm:$0xf]
      %v214 = vld [vmem:[%s1 + $0x70] sm:$0xf]
      %v215 = vld [vmem:[%s1 + $0x74] sm:$0xf]
      %v216 = vld [vmem:[%s1 + $0x78] sm:$0xf]
      %v217 = vld [vmem:[%s1 + $0x7c] sm:$0xf]
      %v218 = vld [vmem:[%s2] sm:$0x1]
      %v220 = vlaneseq
      %v221 = vshrl.u32 %v220, 7
      %v222 = vsub.s32 0, %v221
      %v223 = vrot.slane %v218, %v222
      %v233 = vunpack.c.l.b16 %v178
      %v234 = vunpack.c.h.b16 %v178
      %v235 = vunpack.c.l.b16 %v179
      %v236 = vunpack.c.h.b16 %v179
      %v237 = vunpack.c.l.b16 %v180
      %v238 = vunpack.c.h.b16 %v180
      %v239 = vunpack.c.l.b16 %v181
      %v240 = vunpack.c.h.b16 %v181
      %v241 = vunpack.c.l.b16 %v182
      %v242 = vunpack.c.h.b16 %v182
      %v243 = vunpack.c.l.b16 %v183
      %v244 = vunpack.c.h.b16 %v183
      %v245 = vunpack.c.l.b16 %v184
      %v246 = vunpack.c.h.b16 %v184
      %v247 = vunpack.c.l.b16 %v185
      %v248 = vunpack.c.h.b16 %v185
      %v249 = vpack.c.b16 %v235, %v233
      %v250 = vpack.c.b16 %v236, %v234
      %v251 = vpack.c.b16 %v239, %v237
      %v252 = vpack.c.b16 %v240, %v238
      %v253 = vpack.c.b16 %v243, %v241
      %v254 = vpack.c.b16 %v244, %v242
      %v255 = vpack.c.b16 %v247, %v245
      %v256 = vpack.c.b16 %v248, %v246
      %v297 = vunpack.c.l.b16 %v186
      %v298 = vunpack.c.l.b16 %v187
      %v299 = vunpack.c.l.b16 %v188
      %v300 = vunpack.c.l.b16 %v189
      %v301 = vunpack.c.l.b16 %v190
      %v302 = vunpack.c.l.b16 %v191
      %v303 = vunpack.c.l.b16 %v192
      %v304 = vunpack.c.l.b16 %v193
      %v305 = vunpack.c.l.b16 %v194
      %v306 = vunpack.c.l.b16 %v195
      %v307 = vunpack.c.l.b16 %v196
      %v308 = vunpack.c.l.b16 %v197
      %v309 = vunpack.c.l.b16 %v198
      %v310 = vunpack.c.l.b16 %v199
      %v311 = vunpack.c.l.b16 %v200
      %v312 = vunpack.c.l.b16 %v201
      %v313 = vunpack.c.l.b16 %v202
      %v314 = vunpack.c.l.b16 %v203
      %v315 = vunpack.c.l.b16 %v204
      %v316 = vunpack.c.l.b16 %v205
      %v317 = vunpack.c.l.b16 %v206
      %v318 = vunpack.c.l.b16 %v207
      %v319 = vunpack.c.l.b16 %v208
      %v320 = vunpack.c.l.b16 %v209
      %v321 = vunpack.c.l.b16 %v210
      %v322 = vunpack.c.l.b16 %v211
      %v323 = vunpack.c.l.b16 %v212
      %v324 = vunpack.c.l.b16 %v213
      %v325 = vunpack.c.l.b16 %v214
      %v326 = vunpack.c.l.b16 %v215
      %v327 = vunpack.c.l.b16 %v216
      %v328 = vunpack.c.l.b16 %v217
      %v329 = vpack.c.b16 %v298, %v297
      %v330 = vpack.c.b16 %v300, %v299
      %v331 = vpack.c.b16 %v302, %v301
      %v332 = vpack.c.b16 %v304, %v303
      %v333 = vpack.c.b16 %v306, %v305
      %v334 = vpack.c.b16 %v308, %v307
      %v335 = vpack.c.b16 %v310, %v309
      %v336 = vpack.c.b16 %v312, %v311
      %v337 = vpack.c.b16 %v314, %v313
      %v338 = vpack.c.b16 %v316, %v315
      %v339 = vpack.c.b16 %v318, %v317
      %v340 = vpack.c.b16 %v320, %v319
      %v341 = vpack.c.b16 %v322, %v321
      %v342 = vpack.c.b16 %v324, %v323
      %v343 = vpack.c.b16 %v326, %v325
      %v344 = vpack.c.b16 %v328, %v327
      %361 = vmatprep.subr.bf16.mxu0 0
      %362 = vmatpush1.bf16.msra.mxu0 %v336
      %363 = vmatprep.subr.bf16.mxu0 0
      %364 = vmatpush1.bf16.msra.mxu0 %v335
      %365 = vmatprep.subr.bf16.mxu0 0
      %366 = vmatpush1.bf16.msra.mxu0 %v334
      %367 = vmatprep.subr.bf16.mxu0 0
      %368 = vmatpush1.bf16.msra.mxu0 %v333
      %369 = vmatprep.subr.bf16.mxu0 0
      %370 = vmatpush1.bf16.msra.mxu0 %v332
      %371 = vmatprep.subr.bf16.mxu0 0
      %372 = vmatpush1.bf16.msra.mxu0 %v331
      %373 = vmatprep.subr.bf16.mxu0 0
      %374 = vmatpush1.bf16.msra.mxu0 %v330
      %375 = vmatprep.subr.bf16.mxu0 0
      %376 = vmatpush1.bf16.msra.mxu0 %v329
      %377 = vmatprep.subr.bf16.mxu0 0
      %378 = vmatpush2.bf16.msra.mxu0 %v344
      %379 = vmatprep.subr.bf16.mxu0 0
      %380 = vmatpush2.bf16.msra.mxu0 %v343
      %381 = vmatprep.subr.bf16.mxu0 0
      %382 = vmatpush2.bf16.msra.mxu0 %v342
      %383 = vmatprep.subr.bf16.mxu0 0
      %384 = vmatpush2.bf16.msra.mxu0 %v341
      %385 = vmatprep.subr.bf16.mxu0 0
      %386 = vmatpush2.bf16.msra.mxu0 %v340
      %387 = vmatprep.subr.bf16.mxu0 0
      %388 = vmatpush2.bf16.msra.mxu0 %v339
      %389 = vmatprep.subr.bf16.mxu0 0
      %390 = vmatpush2.bf16.msra.mxu0 %v338
      %391 = vmatprep.subr.bf16.mxu0 0
      %392 = vmatpush2.bf16.msra.mxu0 %v337
      %393 = vmatprep.mubr.bf16.mxu0 %v250
      %394 = vmatmul.mubr.bf16.gmra.mxu0 %v249
      %v395 = vpop.f32.mrf.mxu0
      %v396 = vadd.f32 %v223, %v395
      %v397 = vpop.f32.mrf.mxu0
      %v398 = vpop.f32.mrf.mxu0
      %v399 = vadd.f32 %v223, %v398
      %v400 = vpop.f32.mrf.mxu0
      %401 = vmatprep.mubr.bf16.mxu0 %v252
      %402 = vmatmul.mubr.bf16.gmra.mxu0 %v251
      %v403 = vpop.f32.mrf.mxu0
      %v404 = vadd.f32 %v223, %v403
      %v405 = vpop.f32.mrf.mxu0
      %v406 = vpop.f32.mrf.mxu0
      %v407 = vadd.f32 %v223, %v406
      %v408 = vpop.f32.mrf.mxu0
      %409 = vmatprep.mubr.bf16.mxu0 %v254
      %410 = vmatmul.mubr.bf16.gmra.mxu0 %v253
      %v411 = vpop.f32.mrf.mxu0
      %v412 = vadd.f32 %v223, %v411
      %v413 = vpop.f32.mrf.mxu0
      %v414 = vpop.f32.mrf.mxu0
      %v415 = vadd.f32 %v223, %v414
      %v416 = vpop.f32.mrf.mxu0
      %417 = vmatprep.mubr.bf16.mxu0 %v256
      %418 = vmatmul.mubr.bf16.gmra.mxu0 %v255
      %v419 = vpop.f32.mrf.mxu0
      %v420 = vadd.f32 %v223, %v419
      %v421 = vpop.f32.mrf.mxu0
      %v422 = vpop.f32.mrf.mxu0
      %v423 = vadd.f32 %v223, %v422
      %v424 = vpop.f32.mrf.mxu0
      %425 = vdwg.mxu0
      %v426 = vmax.f32 %v396, 0.0
      %v427 = vmax.f32 %v399, 0.0
      %v428 = vmax.f32 %v404, 0.0
      %v429 = vmax.f32 %v407, 0.0
      %v430 = vmax.f32 %v412, 0.0
      %v431 = vmax.f32 %v415, 0.0
      %v432 = vmax.f32 %v420, 0.0
      %v433 = vmax.f32 %v423, 0.0
      %vm434 = vcmp.gt.f32.partialorder %v426, 0.0
      %vm435 = vcmp.gt.f32.partialorder %v427, 0.0
      %vm436 = vcmp.gt.f32.partialorder %v428, 0.0
      %vm437 = vcmp.gt.f32.partialorder %v429, 0.0
      %vm438 = vcmp.gt.f32.partialorder %v430, 0.0
      %vm439 = vcmp.gt.f32.partialorder %v431, 0.0
      %vm440 = vcmp.gt.f32.partialorder %v432, 0.0
      %vm441 = vcmp.gt.f32.partialorder %v433, 0.0
      %v442 = vmul.f32 %v426, 0.01
      %v443 = vmul.f32 %v427, 0.01
      %v444 = vmul.f32 %v428, 0.01
      %v445 = vmul.f32 %v429, 0.01
      %v446 = vmul.f32 %v430, 0.01
      %v447 = vmul.f32 %v431, 0.01
      %v448 = vmul.f32 %v432, 0.01
      %v449 = vmul.f32 %v433, 0.01
      %v450 = vsel %vm434, %v426, %v442
      %v451 = vsel %vm435, %v427, %v443
      %v452 = vsel %vm436, %v428, %v444
      %v453 = vsel %vm437, %v429, %v445
      %v454 = vsel %vm438, %v430, %v446
      %v455 = vsel %vm439, %v431, %v447
      %v456 = vsel %vm440, %v432, %v448
      %v457 = vsel %vm441, %v433, %v449
      %458 = vst [vmem:[%s175] sm:$0xff] %v450
      %459 = vst [vmem:[%s175 + $0x8] sm:$0xff] %v451
      %460 = vst [vmem:[%s175 + $0x10] sm:$0xff] %v452
      %461 = vst [vmem:[%s175 + $0x18] sm:$0xff] %v453
      %462 = vst [vmem:[%s175 + $0x20] sm:$0xff] %v454
      %463 = vst [vmem:[%s175 + $0x28] sm:$0xff] %v455
      %464 = vst [vmem:[%s175 + $0x30] sm:$0xff] %v456
      %465 = vst [vmem:[%s175 + $0x38] sm:$0xff] %v457
      %s466 = smul.u32 8, %s14
      %p467 = scmp.lt.s32.totalorder %s466, 15
      %s468 = scalar_select %p467, %s466, 15
      %s469 = smul.addr %s468, 8
      %s470 = scalar_lea.vmem %s3, %s469
      // Predicated region
      $region33: #{conv_embedding_forward.13} parent=31 // pred_check
        %p471 = pneg %p100
      $region34: #{conv_embedding_forward.13} parent=31 // pred_check_branch
        %473 = sbr.rel (%p471) target = $region36
      $region35: #{conv_embedding_forward.13} parent=31 // pred_region
        %s474 = smul.u32 8, %s14
      $region36: #{conv_embedding_forward.13} parent=31 // pred_fallthru
        _
    $region32: #{conv_embedding_forward.13} parent=5 // pred_fallthru
      _
    %p475 = scmp.le.s32.totalorder 2, %s9
    // Predicated region
    $region37: #{conv_embedding_forward.13} parent=5 // pred_check
      %p476 = pneg %p475
    $region38: #{conv_embedding_forward.13} parent=5 // pred_check_branch
      %478 = sbr.rel (%p476) target = $region40
    $region39: #{conv_embedding_forward.13} parent=5 // pred_region
      %s479 = ssub.s32 %s9, 2
      // Predicated region
      $region41: #{conv_embedding_forward.13} parent=39 // pred_check
        %p480 = pneg %p106
      $region42: #{conv_embedding_forward.13} parent=39 // pred_check_branch
        %482 = sbr.rel (%p480) target = $region44
      $region43: #{conv_embedding_forward.13} parent=39 // pred_region
        %s483 = smul.u32 8, %s15
        %p484 = scmp.lt.s32.totalorder %s483, 15
        %s485 = scalar_select %p484, %s483, 15
        %s486 = smul.addr %s485, 8
        %s487 = scalar_lea.vmem %s3, %s486
      $region44: #{conv_embedding_forward.13} parent=39 // pred_fallthru
        _
    $region40: #{conv_embedding_forward.13} parent=5 // pred_fallthru
      _
  $region6: #{conv_embedding_forward.13} parent=0 // loop_footer
    %s13 = sadd.s32 1, %s9
  $region7: #{conv_embedding_forward.13} parent=0 // loop_footer_branch
    %8 = sbr.rel target = $region3
  $region8: #{conv_embedding_forward.13} parent=0 // loop_exit
    _

// kernel: conv_embedding_forward.14
$region0: #{conv_embedding_forward.14}
  #allocation0 [shape = 'u32[]', space=smem, size = 0x4, offset = 0x4, fixed_abs, tag = 'smem constant byte address 0x4 - core index']
  #allocation1 [shape = 'u32[144,128]{1,0:T(1,128)}', space=vmem, size = 0x12000, scoped, tag = 'internal scratch']
  %s0 = inlined_call_operand.vmem [shape: bf16[128,128], index: 0, kind: input, shape index: {}]
  %s1 = inlined_call_operand.vmem [shape: bf16[128,128], index: 1, kind: input, shape index: {}]
  %s2 = inlined_call_operand.vmem [shape: f32[1,128], index: 2, kind: input, shape index: {}]
  %s3 = inlined_call_operand.vmem [shape: f32[128,128], index: 3, kind: output, shape index: {}]
  %s4 = sld [smem:[#allocation0]]
  $region45: #{conv_embedding_forward.14} parent=0
    _
  %s6 = ssub.s32 1, %s4
  %s7 = scalar_select 0, %s6, %s4
  loop: start=0, step=1, limit=4
  $region2: #{conv_embedding_forward.14} parent=0 // loop_pre_header
    _
  $region3: #{conv_embedding_forward.14} parent=0 // loop_header
    %s9 = sphi 0, %s13
    %p10 = scmp.ge.s32.totalorder %s9, 4
    %s19 = sphi 0, %s21
    %s22 = sphi 0, %s19
    %s23 = sphi 0, %s22
    %s39 = sphi 0, %s23
    %s43 = sphi 0, %s43
    %s45 = sphi 0, %s43
    %s46 = sphi 0, %s45
    %s60 = sphi 0, %s46
    %s64 = sphi 0, %s64
    %s66 = sphi 0, %s64
    %s67 = sphi 0, %s66
    %s81 = sphi 0, %s67
    %s87 = sphi 0, %s89
    %s90 = sphi 0, %s87
    %s91 = sphi 0, %s90
    %s107 = sphi 0, %s91
  $region4: #{conv_embedding_forward.14} parent=0 // loop_header_branch
    %12 = sbr.rel (%p10) target = $region8
  $region5: #{conv_embedding_forward.14} parent=0 // loop_body
    %s14 = ssub.s32 %s9, 1
    %s15 = ssub.s32 %s9, 2
    %s16 = sadd.s32 %s9, 1
    %s17 = ssub.s32 %s9, %s16
    %p18 = scmp.eq.s32.totalorder %s17, 0
    %s20 = sadd.s32 %s19, 1
    %s21 = scalar_select %p18, %s19, %s20
    %p24 = pneg %p18
    %p25 = scmp.eq.s32.totalorder %s9, 1
    %p26 = por %p24, %p25
    %p27 = scmp.ne.s32.totalorder %s19, %s22
    %p28 = scmp.eq.s32.totalorder %s9, 0
    %p29 = por %p27, %p28
    %p30 = scmp.ne.s32.totalorder %s19, %s22
    %p31 = scmp.eq.s32.totalorder %s14, 1
    %p32 = por %p30, %p31
    %p33 = scmp.ne.s32.totalorder %s22, %s23
    %p34 = scmp.eq.s32.totalorder %s14, 0
    %p35 = por %p33, %p34
    %p36 = scmp.ne.s32.totalorder %s22, %s23
    %p37 = scmp.eq.s32.totalorder %s15, 1
    %p38 = por %p36, %p37
    %p40 = scmp.ne.s32.totalorder %s23, %s39
    %p41 = scmp.eq.s32.totalorder %s15, 0
    %p42 = por %p40, %p41
    %s44 = sadd.s32 %s43, 1
    %p47 = scmp.eq.s32.totalorder %s9, 1
    %p48 = scmp.ne.s32.totalorder %s43, %s45
    %p49 = scmp.eq.s32.totalorder %s9, 0
    %p50 = por %p48, %p49
    %p51 = scmp.ne.s32.totalorder %s43, %s45
    %p52 = scmp.eq.s32.totalorder %s14, 1
    %p53 = por %p51, %p52
    %p54 = scmp.ne.s32.totalorder %s45, %s46
    %p55 = scmp.eq.s32.totalorder %s14, 0
    %p56 = por %p54, %p55
    %p57 = scmp.ne.s32.totalorder %s45, %s46
    %p58 = scmp.eq.s32.totalorder %s15, 1
    %p59 = por %p57, %p58
    %p61 = scmp.ne.s32.totalorder %s46, %s60
    %p62 = scmp.eq.s32.totalorder %s15, 0
    %p63 = por %p61, %p62
    %s65 = sadd.s32 %s64, 1
    %p68 = scmp.eq.s32.totalorder %s9, 1
    %p69 = scmp.ne.s32.totalorder %s64, %s66
    %p70 = scmp.eq.s32.totalorder %s9, 0
    %p71 = por %p69, %p70
    %p72 = scmp.ne.s32.totalorder %s64, %s66
    %p73 = scmp.eq.s32.totalorder %s14, 1
    %p74 = por %p72, %p73
    %p75 = scmp.ne.s32.totalorder %s66, %s67
    %p76 = scmp.eq.s32.totalorder %s14, 0
    %p77 = por %p75, %p76
    %p78 = scmp.ne.s32.totalorder %s66, %s67
    %p79 = scmp.eq.s32.totalorder %s15, 1
    %p80 = por %p78, %p79
    %p82 = scmp.ne.s32.totalorder %s67, %s81
    %p83 = scmp.eq.s32.totalorder %s15, 0
    %p84 = por %p82, %p83
    %s85 = ssub.s32 %s9, %s16
    %p86 = scmp.eq.s32.totalorder %s85, 0
    %s88 = sadd.s32 %s87, 1
    %s89 = scalar_select %p86, %s87, %s88
    %p92 = pneg %p86
    %p93 = scmp.eq.s32.totalorder %s9, 1
    %p94 = por %p92, %p93
    %p95 = scmp.ne.s32.totalorder %s87, %s90
    %p96 = scmp.eq.s32.totalorder %s9, 0
    %p97 = por %p95, %p96
    %p98 = scmp.ne.s32.totalorder %s87, %s90
    %p99 = scmp.eq.s32.totalorder %s14, 1
    %p100 = por %p98, %p99
    %p101 = scmp.ne.s32.totalorder %s90, %s91
    %p102 = scmp.eq.s32.totalorder %s14, 0
    %p103 = por %p101, %p102
    %p104 = scmp.ne.s32.totalorder %s90, %s91
    %p105 = scmp.eq.s32.totalorder %s15, 1
    %p106 = por %p104, %p105
    %p108 = scmp.ne.s32.totalorder %s91, %s107
    %p109 = scmp.eq.s32.totalorder %s15, 0
    %p110 = por %p108, %p109
    %p111 = scmp.le.s32.totalorder 1, %s9
    %p112 = scmp.lt.s32.totalorder %s9, 3
    %p113 = pnand %p111, %p112
    %p114 = pneg %p113
    // Predicated region
    $region9: #{conv_embedding_forward.14} parent=5 // pred_check
      _
    $region10: #{conv_embedding_forward.14} parent=5 // pred_check_branch
      %116 = sbr.rel (%p113) target = $region12
    $region11: #{conv_embedding_forward.14} parent=5 // pred_region
      %s117 = ssub.s32 %s9, 1
      // Predicated region
      $region13: #{conv_embedding_forward.14} parent=11 // pred_check
        %p118 = pneg %p56
      $region14: #{conv_embedding_forward.14} parent=11 // pred_check_branch
        %120 = sbr.rel (%p118) target = $region16
      $region15: #{conv_embedding_forward.14} parent=11 // pred_region
        _
      $region16: #{conv_embedding_forward.14} parent=11 // pred_fallthru
        _
      // Predicated region
      $region17: #{conv_embedding_forward.14} parent=11 // pred_check
        %p121 = pneg %p77
      $region18: #{conv_embedding_forward.14} parent=11 // pred_check_branch
        %123 = sbr.rel (%p121) target = $region20
      $region19: #{conv_embedding_forward.14} parent=11 // pred_region
        _
      $region20: #{conv_embedding_forward.14} parent=11 // pred_fallthru
        _
    $region12: #{conv_embedding_forward.14} parent=5 // pred_fallthru
      _
    %p124 = scmp.lt.s32.totalorder %s9, 2
    // Predicated region
    $region21: #{conv_embedding_forward.14} parent=5 // pred_check
      %p125 = pneg %p124
    $region22: #{conv_embedding_forward.14} parent=5 // pred_check_branch
      %127 = sbr.rel (%p125) target = $region24
    $region23: #{conv_embedding_forward.14} parent=5 // pred_region
      // Predicated region
      $region25: #{conv_embedding_forward.14} parent=23 // pred_check
        %p128 = pneg %p29
      $region26: #{conv_embedding_forward.14} parent=23 // pred_check_branch
        %130 = sbr.rel (%p128) target = $region28
      $region27: #{conv_embedding_forward.14} parent=23 // pred_region
        %s131 = smul.u32 8, %s9
        %p132 = scmp.lt.s32.totalorder %s131, 15
        %s133 = scalar_select %p132, %s131, 15
        %s134 = smul.addr %s133, 4
        %s135 = scalar_lea.vmem %s0, %s134
        %s136 = smul.u32 8, %s9
      $region28: #{conv_embedding_forward.14} parent=23 // pred_fallthru
        _
    $region24: #{conv_embedding_forward.14} parent=5 // pred_fallthru
      _
    %p137 = scmp.le.s32.totalorder 1, %s9
    %p138 = scmp.lt.s32.totalorder %s9, 3
    %p139 = pnand %p137, %p138
    %p140 = pneg %p139
    // Predicated region
    $region29: #{conv_embedding_forward.14} parent=5 // pred_check
      _
    $region30: #{conv_embedding_forward.14} parent=5 // pred_check_branch
      %142 = sbr.rel (%p139) target = $region32
    $region31: #{conv_embedding_forward.14} parent=5 // pred_region
      %s143 = ssub.s32 %s9, 1
      %s144 = smul.u32 8, %s14
      %p145 = scmp.lt.s32.totalorder %s144, 15
      %s146 = scalar_select %p145, %s144, 15
      %s147 = smul.addr %s146, 4
      %s148 = scalar_lea.vmem %s0, %s147
      %p149 = pneg %p35
      %p150 = pneg %p32
      %p151 = pneg %p56
      %p152 = pneg %p53
      %p153 = pneg %p77
      %p154 = pneg %p74
      %p155 = pneg %p103
      %p156 = pneg %p100
      %s157 = smul.u32 8, %s14
      %p158 = scmp.lt.s32.totalorder %s157, 15
      %s159 = scalar_select %p158, %s157, 15
      %s160 = smul.addr %s159, 8
      %s161 = scalar_lea.vmem %s3, %s160
      %s162 = smul.u32 8, %s14
      %p163 = scmp.lt.s32.totalorder %s162, 15
      %s164 = scalar_select %p163, %s162, 15
      %s165 = smul.addr %s164, 4
      %s166 = scalar_lea.vmem %s0, %s165
      %s167 = smul.u32 8, %s14
      %s168 = smul.u32 8, %s14
      %p169 = scmp.lt.s32.totalorder %s168, 15
      %s170 = scalar_select %p169, %s168, 15
      %s171 = smul.addr %s170, 8
      %s172 = scalar_lea.vmem %s3, %s171
      %s173 = smul.u32 8, %s14
      %v175 = vld [vmem:[%s166] sm:$0xf]
      %v176 = vld [vmem:[%s166 + $0x4] sm:$0xf]
      %v177 = vld [vmem:[%s166 + $0x8] sm:$0xf]
      %v178 = vld [vmem:[%s166 + $0xc] sm:$0xf]
      %v179 = vld [vmem:[%s166 + $0x10] sm:$0xf]
      %v180 = vld [vmem:[%s166 + $0x14] sm:$0xf]
      %v181 = vld [vmem:[%s166 + $0x18] sm:$0xf]
      %v182 = vld [vmem:[%s166 + $0x1c] sm:$0xf]
      %v183 = vld [vmem:[%s1] sm:$0xf]
      %v184 = vld [vmem:[%s1 + $0x4] sm:$0xf]
      %v185 = vld [vmem:[%s1 + $0x8] sm:$0xf]
      %v186 = vld [vmem:[%s1 + $0xc] sm:$0xf]
      %v187 = vld [vmem:[%s1 + $0x10] sm:$0xf]
      %v188 = vld [vmem:[%s1 + $0x14] sm:$0xf]
      %v189 = vld [vmem:[%s1 + $0x18] sm:$0xf]
      %v190 = vld [vmem:[%s1 + $0x1c] sm:$0xf]
      %v191 = vld [vmem:[%s1 + $0x20] sm:$0xf]
      %v192 = vld [vmem:[%s1 + $0x24] sm:$0xf]
      %v193 = vld [vmem:[%s1 + $0x28] sm:$0xf]
      %v194 = vld [vmem:[%s1 + $0x2c] sm:$0xf]
      %v195 = vld [vmem:[%s1 + $0x30] sm:$0xf]
      %v196 = vld [vmem:[%s1 + $0x34] sm:$0xf]
      %v197 = vld [vmem:[%s1 + $0x38] sm:$0xf]
      %v198 = vld [vmem:[%s1 + $0x3c] sm:$0xf]
      %v199 = vld [vmem:[%s2] sm:$0x1]
      %v201 = vlaneseq
      %v202 = vshrl.u32 %v201, 7
      %v203 = vsub.s32 0, %v202
      %v204 = vrot.slane %v199, %v203
      %v214 = vunpack.c.l.b16 %v175
      %v215 = vunpack.c.l.b16 %v176
      %v216 = vunpack.c.l.b16 %v177
      %v217 = vunpack.c.l.b16 %v178
      %v218 = vunpack.c.l.b16 %v179
      %v219 = vunpack.c.l.b16 %v180
      %v220 = vunpack.c.l.b16 %v181
      %v221 = vunpack.c.l.b16 %v182
      %v222 = vpack.c.b16 %v215, %v214
      %v223 = vpack.c.b16 %v217, %v216
      %v224 = vpack.c.b16 %v219, %v218
      %v225 = vpack.c.b16 %v221, %v220
      %v246 = vunpack.c.l.b16 %v183
      %v247 = vunpack.c.l.b16 %v184
      %v248 = vunpack.c.l.b16 %v185
      %v249 = vunpack.c.l.b16 %v186
      %v250 = vunpack.c.l.b16 %v187
      %v251 = vunpack.c.l.b16 %v188
      %v252 = vunpack.c.l.b16 %v189
      %v253 = vunpack.c.l.b16 %v190
      %v254 = vunpack.c.l.b16 %v191
      %v255 = vunpack.c.l.b16 %v192
      %v256 = vunpack.c.l.b16 %v193
      %v257 = vunpack.c.l.b16 %v194
      %v258 = vunpack.c.l.b16 %v195
      %v259 = vunpack.c.l.b16 %v196
      %v260 = vunpack.c.l.b16 %v197
      %v261 = vunpack.c.l.b16 %v198
      %v262 = vpack.c.b16 %v247, %v246
      %v263 = vpack.c.b16 %v249, %v248
      %v264 = vpack.c.b16 %v251, %v250
      %v265 = vpack.c.b16 %v253, %v252
      %v266 = vpack.c.b16 %v255, %v254
      %v267 = vpack.c.b16 %v257, %v256
      %v268 = vpack.c.b16 %v259, %v258
      %v269 = vpack.c.b16 %v261, %v260
      %278 = vmatprep.subr.bf16.mxu0 0
      %279 = vmatpush1.bf16.msra.mxu0 %v269
      %280 = vmatprep.subr.bf16.mxu0 0
      %281 = vmatpush1.bf16.msra.mxu0 %v268
      %282 = vmatprep.subr.bf16.mxu0 0
      %283 = vmatpush1.bf16.msra.mxu0 %v267
      %284 = vmatprep.subr.bf16.mxu0 0
      %285 = vmatpush1.bf16.msra.mxu0 %v266
      %286 = vmatprep.subr.bf16.mxu0 0
      %287 = vmatpush1.bf16.msra.mxu0 %v265
      %288 = vmatprep.subr.bf16.mxu0 0
      %289 = vmatpush1.bf16.msra.mxu0 %v264
      %290 = vmatprep.subr.bf16.mxu0 0
      %291 = vmatpush1.bf16.msra.mxu0 %v263
      %292 = vmatprep.subr.bf16.mxu0 0
      %293 = vmatpush1.bf16.msra.mxu0 %v262
      %294 = vmatprep.subr.bf16.mxu0 0
      %295 = vmatpush2.bf16.msra.mxu0 0
      %296 = vmatprep.subr.bf16.mxu0 0
      %297 = vmatpush2.bf16.msra.mxu0 0
      %298 = vmatprep.subr.bf16.mxu0 0
      %299 = vmatpush2.bf16.msra.mxu0 0
      %300 = vmatprep.subr.bf16.mxu0 0
      %301 = vmatpush2.bf16.msra.mxu0 0
      %302 = vmatprep.subr.bf16.mxu0 0
      %303 = vmatpush2.bf16.msra.mxu0 0
      %304 = vmatprep.subr.bf16.mxu0 0
      %305 = vmatpush2.bf16.msra.mxu0 0
      %306 = vmatprep.subr.bf16.mxu0 0
      %307 = vmatpush2.bf16.msra.mxu0 0
      %308 = vmatprep.subr.bf16.mxu0 0
      %309 = vmatpush2.bf16.msra.mxu0 0
      %310 = vmatprep.mubr.bf16.mxu0 0
      %311 = vmatmul.mubr.bf16.gmra.mxu0 %v222
      %v312 = vpop.f32.mrf.mxu0
      %v313 = vadd.f32 %v204, %v312
      %v314 = vpop.f32.mrf.mxu0
      %v315 = vpop.f32.mrf.mxu0
      %v316 = vadd.f32 %v204, %v315
      %v317 = vpop.f32.mrf.mxu0
      %318 = vmatprep.mubr.bf16.mxu0 0
      %319 = vmatmul.mubr.bf16.gmra.mxu0 %v223
      %v320 = vpop.f32.mrf.mxu0
      %v321 = vadd.f32 %v204, %v320
      %v322 = vpop.f32.mrf.mxu0
      %v323 = vpop.f32.mrf.mxu0
      %v324 = vadd.f32 %v204, %v323
      %v325 = vpop.f32.mrf.mxu0
      %326 = vmatprep.mubr.bf16.mxu0 0
      %327 = vmatmul.mubr.bf16.gmra.mxu0 %v224
      %v328 = vpop.f32.mrf.mxu0
      %v329 = vadd.f32 %v204, %v328
      %v330 = vpop.f32.mrf.mxu0
      %v331 = vpop.f32.mrf.mxu0
      %v332 = vadd.f32 %v204, %v331
      %v333 = vpop.f32.mrf.mxu0
      %334 = vmatprep.mubr.bf16.mxu0 0
      %335 = vmatmul.mubr.bf16.gmra.mxu0 %v225
      %v336 = vpop.f32.mrf.mxu0
      %v337 = vadd.f32 %v204, %v336
      %v338 = vpop.f32.mrf.mxu0
      %v339 = vpop.f32.mrf.mxu0
      %v340 = vadd.f32 %v204, %v339
      %v341 = vpop.f32.mrf.mxu0
      %342 = vdwg.mxu0
      %vm343 = vcmp.gt.f32.partialorder %v313, 0.0
      %vm344 = vcmp.gt.f32.partialorder %v316, 0.0
      %vm345 = vcmp.gt.f32.partialorder %v321, 0.0
      %vm346 = vcmp.gt.f32.partialorder %v324, 0.0
      %vm347 = vcmp.gt.f32.partialorder %v329, 0.0
      %vm348 = vcmp.gt.f32.partialorder %v332, 0.0
      %vm349 = vcmp.gt.f32.partialorder %v337, 0.0
      %vm350 = vcmp.gt.f32.partialorder %v340, 0.0
      %v351 = vmul.f32 %v313, 0.01
      %v352 = vmul.f32 %v316, 0.01
      %v353 = vmul.f32 %v321, 0.01
      %v354 = vmul.f32 %v324, 0.01
      %v355 = vmul.f32 %v329, 0.01
      %v356 = vmul.f32 %v332, 0.01
      %v357 = vmul.f32 %v337, 0.01
      %v358 = vmul.f32 %v340, 0.01
      %v359 = vsel %vm343, %v313, %v351
      %v360 = vsel %vm344, %v316, %v352
      %v361 = vsel %vm345, %v321, %v353
      %v362 = vsel %vm346, %v324, %v354
      %v363 = vsel %vm347, %v329, %v355
      %v364 = vsel %vm348, %v332, %v356
      %v365 = vsel %vm349, %v337, %v357
      %v366 = vsel %vm350, %v340, %v358
      %367 = vst [vmem:[%s172] sm:$0xff] %v359
      %368 = vst [vmem:[%s172 + $0x8] sm:$0xff] %v360
      %369 = vst [vmem:[%s172 + $0x10] sm:$0xff] %v361
      %370 = vst [vmem:[%s172 + $0x18] sm:$0xff] %v362
      %371 = vst [vmem:[%s172 + $0x20] sm:$0xff] %v363
      %372 = vst [vmem:[%s172 + $0x28] sm:$0xff] %v364
      %373 = vst [vmem:[%s172 + $0x30] sm:$0xff] %v365
      %374 = vst [vmem:[%s172 + $0x38] sm:$0xff] %v366
      %s375 = smul.u32 8, %s14
      %p376 = scmp.lt.s32.totalorder %s375, 15
      %s377 = scalar_select %p376, %s375, 15
      %s378 = smul.addr %s377, 8
      %s379 = scalar_lea.vmem %s3, %s378
      // Predicated region
      $region33: #{conv_embedding_forward.14} parent=31 // pred_check
        %p380 = pneg %p100
      $region34: #{conv_embedding_forward.14} parent=31 // pred_check_branch
        %382 = sbr.rel (%p380) target = $region36
      $region35: #{conv_embedding_forward.14} parent=31 // pred_region
        %s383 = smul.u32 8, %s14
      $region36: #{conv_embedding_forward.14} parent=31 // pred_fallthru
        _
    $region32: #{conv_embedding_forward.14} parent=5 // pred_fallthru
      _
    %p384 = scmp.le.s32.totalorder 2, %s9
    // Predicated region
    $region37: #{conv_embedding_forward.14} parent=5 // pred_check
      %p385 = pneg %p384
    $region38: #{conv_embedding_forward.14} parent=5 // pred_check_branch
      %387 = sbr.rel (%p385) target = $region40
    $region39: #{conv_embedding_forward.14} parent=5 // pred_region
      %s388 = ssub.s32 %s9, 2
      // Predicated region
      $region41: #{conv_embedding_forward.14} parent=39 // pred_check
        %p389 = pneg %p106
      $region42: #{conv_embedding_forward.14} parent=39 // pred_check_branch
        %391 = sbr.rel (%p389) target = $region44
      $region43: #{conv_embedding_forward.14} parent=39 // pred_region
        %s392 = smul.u32 8, %s15
        %p393 = scmp.lt.s32.totalorder %s392, 15
        %s394 = scalar_select %p393, %s392, 15
        %s395 = smul.addr %s394, 8
        %s396 = scalar_lea.vmem %s3, %s395
      $region44: #{conv_embedding_forward.14} parent=39 // pred_fallthru
        _
    $region40: #{conv_embedding_forward.14} parent=5 // pred_fallthru
      _
  $region6: #{conv_embedding_forward.14} parent=0 // loop_footer
    %s13 = sadd.s32 1, %s9
  $region7: #{conv_embedding_forward.14} parent=0 // loop_footer_branch
    %8 = sbr.rel target = $region3
  $region8: #{conv_embedding_forward.14} parent=0 // loop_exit
    _

// kernel: conv_embedding_forward.15
$region0: #{conv_embedding_forward.15}
  #allocation0 [shape = 'u32[]', space=smem, size = 0x4, offset = 0x4, fixed_abs, tag = 'smem constant byte address 0x4 - core index']
  #allocation1 [shape = 'u32[144,128]{1,0:T(1,128)}', space=vmem, size = 0x12000, scoped, tag = 'internal scratch']
  %s0 = inlined_call_operand.vmem [shape: bf16[128,256], index: 0, kind: input, shape index: {}]
  %s1 = inlined_call_operand.vmem [shape: bf16[256,128], index: 1, kind: input, shape index: {}]
  %s2 = inlined_call_operand.vmem [shape: f32[1,128], index: 2, kind: input, shape index: {}]
  %s3 = inlined_call_operand.vmem [shape: f32[128,128], index: 3, kind: output, shape index: {}]
  %s4 = sld [smem:[#allocation0]]
  $region45: #{conv_embedding_forward.15} parent=0
    _
  %s6 = ssub.s32 1, %s4
  %s7 = scalar_select 0, %s6, %s4
  loop: start=0, step=1, limit=4
  $region2: #{conv_embedding_forward.15} parent=0 // loop_pre_header
    _
  $region3: #{conv_embedding_forward.15} parent=0 // loop_header
    %s9 = sphi 0, %s13
    %p10 = scmp.ge.s32.totalorder %s9, 4
    %s19 = sphi 0, %s21
    %s22 = sphi 0, %s19
    %s23 = sphi 0, %s22
    %s39 = sphi 0, %s23
    %s43 = sphi 0, %s43
    %s45 = sphi 0, %s43
    %s46 = sphi 0, %s45
    %s60 = sphi 0, %s46
    %s64 = sphi 0, %s64
    %s66 = sphi 0, %s64
    %s67 = sphi 0, %s66
    %s81 = sphi 0, %s67
    %s87 = sphi 0, %s89
    %s90 = sphi 0, %s87
    %s91 = sphi 0, %s90
    %s107 = sphi 0, %s91
  $region4: #{conv_embedding_forward.15} parent=0 // loop_header_branch
    %12 = sbr.rel (%p10) target = $region8
  $region5: #{conv_embedding_forward.15} parent=0 // loop_body
    %s14 = ssub.s32 %s9, 1
    %s15 = ssub.s32 %s9, 2
    %s16 = sadd.s32 %s9, 1
    %s17 = ssub.s32 %s9, %s16
    %p18 = scmp.eq.s32.totalorder %s17, 0
    %s20 = sadd.s32 %s19, 1
    %s21 = scalar_select %p18, %s19, %s20
    %p24 = pneg %p18
    %p25 = scmp.eq.s32.totalorder %s9, 1
    %p26 = por %p24, %p25
    %p27 = scmp.ne.s32.totalorder %s19, %s22
    %p28 = scmp.eq.s32.totalorder %s9, 0
    %p29 = por %p27, %p28
    %p30 = scmp.ne.s32.totalorder %s19, %s22
    %p31 = scmp.eq.s32.totalorder %s14, 1
    %p32 = por %p30, %p31
    %p33 = scmp.ne.s32.totalorder %s22, %s23
    %p34 = scmp.eq.s32.totalorder %s14, 0
    %p35 = por %p33, %p34
    %p36 = scmp.ne.s32.totalorder %s22, %s23
    %p37 = scmp.eq.s32.totalorder %s15, 1
    %p38 = por %p36, %p37
    %p40 = scmp.ne.s32.totalorder %s23, %s39
    %p41 = scmp.eq.s32.totalorder %s15, 0
    %p42 = por %p40, %p41
    %s44 = sadd.s32 %s43, 1
    %p47 = scmp.eq.s32.totalorder %s9, 1
    %p48 = scmp.ne.s32.totalorder %s43, %s45
    %p49 = scmp.eq.s32.totalorder %s9, 0
    %p50 = por %p48, %p49
    %p51 = scmp.ne.s32.totalorder %s43, %s45
    %p52 = scmp.eq.s32.totalorder %s14, 1
    %p53 = por %p51, %p52
    %p54 = scmp.ne.s32.totalorder %s45, %s46
    %p55 = scmp.eq.s32.totalorder %s14, 0
    %p56 = por %p54, %p55
    %p57 = scmp.ne.s32.totalorder %s45, %s46
    %p58 = scmp.eq.s32.totalorder %s15, 1
    %p59 = por %p57, %p58
    %p61 = scmp.ne.s32.totalorder %s46, %s60
    %p62 = scmp.eq.s32.totalorder %s15, 0
    %p63 = por %p61, %p62
    %s65 = sadd.s32 %s64, 1
    %p68 = scmp.eq.s32.totalorder %s9, 1
    %p69 = scmp.ne.s32.totalorder %s64, %s66
    %p70 = scmp.eq.s32.totalorder %s9, 0
    %p71 = por %p69, %p70
    %p72 = scmp.ne.s32.totalorder %s64, %s66
    %p73 = scmp.eq.s32.totalorder %s14, 1
    %p74 = por %p72, %p73
    %p75 = scmp.ne.s32.totalorder %s66, %s67
    %p76 = scmp.eq.s32.totalorder %s14, 0
    %p77 = por %p75, %p76
    %p78 = scmp.ne.s32.totalorder %s66, %s67
    %p79 = scmp.eq.s32.totalorder %s15, 1
    %p80 = por %p78, %p79
    %p82 = scmp.ne.s32.totalorder %s67, %s81
    %p83 = scmp.eq.s32.totalorder %s15, 0
    %p84 = por %p82, %p83
    %s85 = ssub.s32 %s9, %s16
    %p86 = scmp.eq.s32.totalorder %s85, 0
    %s88 = sadd.s32 %s87, 1
    %s89 = scalar_select %p86, %s87, %s88
    %p92 = pneg %p86
    %p93 = scmp.eq.s32.totalorder %s9, 1
    %p94 = por %p92, %p93
    %p95 = scmp.ne.s32.totalorder %s87, %s90
    %p96 = scmp.eq.s32.totalorder %s9, 0
    %p97 = por %p95, %p96
    %p98 = scmp.ne.s32.totalorder %s87, %s90
    %p99 = scmp.eq.s32.totalorder %s14, 1
    %p100 = por %p98, %p99
    %p101 = scmp.ne.s32.totalorder %s90, %s91
    %p102 = scmp.eq.s32.totalorder %s14, 0
    %p103 = por %p101, %p102
    %p104 = scmp.ne.s32.totalorder %s90, %s91
    %p105 = scmp.eq.s32.totalorder %s15, 1
    %p106 = por %p104, %p105
    %p108 = scmp.ne.s32.totalorder %s91, %s107
    %p109 = scmp.eq.s32.totalorder %s15, 0
    %p110 = por %p108, %p109
    %p111 = scmp.le.s32.totalorder 1, %s9
    %p112 = scmp.lt.s32.totalorder %s9, 3
    %p113 = pnand %p111, %p112
    %p114 = pneg %p113
    // Predicated region
    $region9: #{conv_embedding_forward.15} parent=5 // pred_check
      _
    $region10: #{conv_embedding_forward.15} parent=5 // pred_check_branch
      %116 = sbr.rel (%p113) target = $region12
    $region11: #{conv_embedding_forward.15} parent=5 // pred_region
      %s117 = ssub.s32 %s9, 1
      // Predicated region
      $region13: #{conv_embedding_forward.15} parent=11 // pred_check
        %p118 = pneg %p56
      $region14: #{conv_embedding_forward.15} parent=11 // pred_check_branch
        %120 = sbr.rel (%p118) target = $region16
      $region15: #{conv_embedding_forward.15} parent=11 // pred_region
        _
      $region16: #{conv_embedding_forward.15} parent=11 // pred_fallthru
        _
      // Predicated region
      $region17: #{conv_embedding_forward.15} parent=11 // pred_check
        %p121 = pneg %p77
      $region18: #{conv_embedding_forward.15} parent=11 // pred_check_branch
        %123 = sbr.rel (%p121) target = $region20
      $region19: #{conv_embedding_forward.15} parent=11 // pred_region
        _
      $region20: #{conv_embedding_forward.15} parent=11 // pred_fallthru
        _
    $region12: #{conv_embedding_forward.15} parent=5 // pred_fallthru
      _
    %p124 = scmp.lt.s32.totalorder %s9, 2
    // Predicated region
    $region21: #{conv_embedding_forward.15} parent=5 // pred_check
      %p125 = pneg %p124
    $region22: #{conv_embedding_forward.15} parent=5 // pred_check_branch
      %127 = sbr.rel (%p125) target = $region24
    $region23: #{conv_embedding_forward.15} parent=5 // pred_region
      // Predicated region
      $region25: #{conv_embedding_forward.15} parent=23 // pred_check
        %p128 = pneg %p29
      $region26: #{conv_embedding_forward.15} parent=23 // pred_check_branch
        %130 = sbr.rel (%p128) target = $region28
      $region27: #{conv_embedding_forward.15} parent=23 // pred_region
        %s131 = smul.u32 8, %s9
        %p132 = scmp.lt.s32.totalorder %s131, 15
        %s133 = scalar_select %p132, %s131, 15
        %s134 = smul.addr %s133, 2
        %s135 = smul.addr %s134, 4
        %s136 = scalar_lea.vmem %s0, %s135
        %s137 = smul.u32 8, %s9
      $region28: #{conv_embedding_forward.15} parent=23 // pred_fallthru
        _
    $region24: #{conv_embedding_forward.15} parent=5 // pred_fallthru
      _
    %p138 = scmp.le.s32.totalorder 1, %s9
    %p139 = scmp.lt.s32.totalorder %s9, 3
    %p140 = pnand %p138, %p139
    %p141 = pneg %p140
    // Predicated region
    $region29: #{conv_embedding_forward.15} parent=5 // pred_check
      _
    $region30: #{conv_embedding_forward.15} parent=5 // pred_check_branch
      %143 = sbr.rel (%p140) target = $region32
    $region31: #{conv_embedding_forward.15} parent=5 // pred_region
      %s144 = ssub.s32 %s9, 1
      %s145 = smul.u32 8, %s14
      %p146 = scmp.lt.s32.totalorder %s145, 15
      %s147 = scalar_select %p146, %s145, 15
      %s148 = smul.addr %s147, 2
      %s149 = smul.addr %s148, 4
      %s150 = scalar_lea.vmem %s0, %s149
      %p151 = pneg %p35
      %p152 = pneg %p32
      %p153 = pneg %p56
      %p154 = pneg %p53
      %p155 = pneg %p77
      %p156 = pneg %p74
      %p157 = pneg %p103
      %p158 = pneg %p100
      %s159 = smul.u32 8, %s14
      %p160 = scmp.lt.s32.totalorder %s159, 15
      %s161 = scalar_select %p160, %s159, 15
      %s162 = smul.addr %s161, 8
      %s163 = scalar_lea.vmem %s3, %s162
      %s164 = smul.u32 8, %s14
      %p165 = scmp.lt.s32.totalorder %s164, 15
      %s166 = scalar_select %p165, %s164, 15
      %s167 = smul.addr %s166, 2
      %s168 = smul.addr %s167, 4
      %s169 = scalar_lea.vmem %s0, %s168
      %s170 = smul.u32 8, %s14
      %s171 = smul.u32 8, %s14
      %p172 = scmp.lt.s32.totalorder %s171, 15
      %s173 = scalar_select %p172, %s171, 15
      %s174 = smul.addr %s173, 8
      %s175 = scalar_lea.vmem %s3, %s174
      %s176 = smul.u32 8, %s14
      %v178 = vld [vmem:[%s169] sm:$0xff]
      %v179 = vld [vmem:[%s169 + $0x8] sm:$0xff]
      %v180 = vld [vmem:[%s169 + $0x10] sm:$0xff]
      %v181 = vld [vmem:[%s169 + $0x18] sm:$0xff]
      %v182 = vld [vmem:[%s169 + $0x20] sm:$0xff]
      %v183 = vld [vmem:[%s169 + $0x28] sm:$0xff]
      %v184 = vld [vmem:[%s169 + $0x30] sm:$0xff]
      %v185 = vld [vmem:[%s169 + $0x38] sm:$0xff]
      %v186 = vld [vmem:[%s1] sm:$0xf]
      %v187 = vld [vmem:[%s1 + $0x4] sm:$0xf]
      %v188 = vld [vmem:[%s1 + $0x8] sm:$0xf]
      %v189 = vld [vmem:[%s1 + $0xc] sm:$0xf]
      %v190 = vld [vmem:[%s1 + $0x10] sm:$0xf]
      %v191 = vld [vmem:[%s1 + $0x14] sm:$0xf]
      %v192 = vld [vmem:[%s1 + $0x18] sm:$0xf]
      %v193 = vld [vmem:[%s1 + $0x1c] sm:$0xf]
      %v194 = vld [vmem:[%s1 + $0x20] sm:$0xf]
      %v195 = vld [vmem:[%s1 + $0x24] sm:$0xf]
      %v196 = vld [vmem:[%s1 + $0x28] sm:$0xf]
      %v197 = vld [vmem:[%s1 + $0x2c] sm:$0xf]
      %v198 = vld [vmem:[%s1 + $0x30] sm:$0xf]
      %v199 = vld [vmem:[%s1 + $0x34] sm:$0xf]
      %v200 = vld [vmem:[%s1 + $0x38] sm:$0xf]
      %v201 = vld [vmem:[%s1 + $0x3c] sm:$0xf]
      %v202 = vld [vmem:[%s1 + $0x40] sm:$0xf]
      %v203 = vld [vmem:[%s1 + $0x44] sm:$0xf]
      %v204 = vld [vmem:[%s1 + $0x48] sm:$0xf]
      %v205 = vld [vmem:[%s1 + $0x4c] sm:$0xf]
      %v206 = vld [vmem:[%s1 + $0x50] sm:$0xf]
      %v207 = vld [vmem:[%s1 + $0x54] sm:$0xf]
      %v208 = vld [vmem:[%s1 + $0x58] sm:$0xf]
      %v209 = vld [vmem:[%s1 + $0x5c] sm:$0xf]
      %v210 = vld [vmem:[%s1 + $0x60] sm:$0xf]
      %v211 = vld [vmem:[%s1 + $0x64] sm:$0xf]
      %v212 = vld [vmem:[%s1 + $0x68] sm:$0xf]
      %v213 = vld [vmem:[%s1 + $0x6c] sm:$0xf]
      %v214 = vld [vmem:[%s1 + $0x70] sm:$0xf]
      %v215 = vld [vmem:[%s1 + $0x74] sm:$0xf]
      %v216 = vld [vmem:[%s1 + $0x78] sm:$0xf]
      %v217 = vld [vmem:[%s1 + $0x7c] sm:$0xf]
      %v218 = vld [vmem:[%s2] sm:$0x1]
      %v220 = vlaneseq
      %v221 = vshrl.u32 %v220, 7
      %v222 = vsub.s32 0, %v221
      %v223 = vrot.slane %v218, %v222
      %v233 = vunpack.c.l.b16 %v178
      %v234 = vunpack.c.h.b16 %v178
      %v235 = vunpack.c.l.b16 %v179
      %v236 = vunpack.c.h.b16 %v179
      %v237 = vunpack.c.l.b16 %v180
      %v238 = vunpack.c.h.b16 %v180
      %v239 = vunpack.c.l.b16 %v181
      %v240 = vunpack.c.h.b16 %v181
      %v241 = vunpack.c.l.b16 %v182
      %v242 = vunpack.c.h.b16 %v182
      %v243 = vunpack.c.l.b16 %v183
      %v244 = vunpack.c.h.b16 %v183
      %v245 = vunpack.c.l.b16 %v184
      %v246 = vunpack.c.h.b16 %v184
      %v247 = vunpack.c.l.b16 %v185
      %v248 = vunpack.c.h.b16 %v185
      %v249 = vpack.c.b16 %v235, %v233
      %v250 = vpack.c.b16 %v236, %v234
      %v251 = vpack.c.b16 %v239, %v237
      %v252 = vpack.c.b16 %v240, %v238
      %v253 = vpack.c.b16 %v243, %v241
      %v254 = vpack.c.b16 %v244, %v242
      %v255 = vpack.c.b16 %v247, %v245
      %v256 = vpack.c.b16 %v248, %v246
      %v297 = vunpack.c.l.b16 %v186
      %v298 = vunpack.c.l.b16 %v187
      %v299 = vunpack.c.l.b16 %v188
      %v300 = vunpack.c.l.b16 %v189
      %v301 = vunpack.c.l.b16 %v190
      %v302 = vunpack.c.l.b16 %v191
      %v303 = vunpack.c.l.b16 %v192
      %v304 = vunpack.c.l.b16 %v193
      %v305 = vunpack.c.l.b16 %v194
      %v306 = vunpack.c.l.b16 %v195
      %v307 = vunpack.c.l.b16 %v196
      %v308 = vunpack.c.l.b16 %v197
      %v309 = vunpack.c.l.b16 %v198
      %v310 = vunpack.c.l.b16 %v199
      %v311 = vunpack.c.l.b16 %v200
      %v312 = vunpack.c.l.b16 %v201
      %v313 = vunpack.c.l.b16 %v202
      %v314 = vunpack.c.l.b16 %v203
      %v315 = vunpack.c.l.b16 %v204
      %v316 = vunpack.c.l.b16 %v205
      %v317 = vunpack.c.l.b16 %v206
      %v318 = vunpack.c.l.b16 %v207
      %v319 = vunpack.c.l.b16 %v208
      %v320 = vunpack.c.l.b16 %v209
      %v321 = vunpack.c.l.b16 %v210
      %v322 = vunpack.c.l.b16 %v211
      %v323 = vunpack.c.l.b16 %v212
      %v324 = vunpack.c.l.b16 %v213
      %v325 = vunpack.c.l.b16 %v214
      %v326 = vunpack.c.l.b16 %v215
      %v327 = vunpack.c.l.b16 %v216
      %v328 = vunpack.c.l.b16 %v217
      %v329 = vpack.c.b16 %v298, %v297
      %v330 = vpack.c.b16 %v300, %v299
      %v331 = vpack.c.b16 %v302, %v301
      %v332 = vpack.c.b16 %v304, %v303
      %v333 = vpack.c.b16 %v306, %v305
      %v334 = vpack.c.b16 %v308, %v307
      %v335 = vpack.c.b16 %v310, %v309
      %v336 = vpack.c.b16 %v312, %v311
      %v337 = vpack.c.b16 %v314, %v313
      %v338 = vpack.c.b16 %v316, %v315
      %v339 = vpack.c.b16 %v318, %v317
      %v340 = vpack.c.b16 %v320, %v319
      %v341 = vpack.c.b16 %v322, %v321
      %v342 = vpack.c.b16 %v324, %v323
      %v343 = vpack.c.b16 %v326, %v325
      %v344 = vpack.c.b16 %v328, %v327
      %361 = vmatprep.subr.bf16.mxu0 0
      %362 = vmatpush1.bf16.msra.mxu0 %v336
      %363 = vmatprep.subr.bf16.mxu0 0
      %364 = vmatpush1.bf16.msra.mxu0 %v335
      %365 = vmatprep.subr.bf16.mxu0 0
      %366 = vmatpush1.bf16.msra.mxu0 %v334
      %367 = vmatprep.subr.bf16.mxu0 0
      %368 = vmatpush1.bf16.msra.mxu0 %v333
      %369 = vmatprep.subr.bf16.mxu0 0
      %370 = vmatpush1.bf16.msra.mxu0 %v332
      %371 = vmatprep.subr.bf16.mxu0 0
      %372 = vmatpush1.bf16.msra.mxu0 %v331
      %373 = vmatprep.subr.bf16.mxu0 0
      %374 = vmatpush1.bf16.msra.mxu0 %v330
      %375 = vmatprep.subr.bf16.mxu0 0
      %376 = vmatpush1.bf16.msra.mxu0 %v329
      %377 = vmatprep.subr.bf16.mxu0 0
      %378 = vmatpush2.bf16.msra.mxu0 %v344
      %379 = vmatprep.subr.bf16.mxu0 0
      %380 = vmatpush2.bf16.msra.mxu0 %v343
      %381 = vmatprep.subr.bf16.mxu0 0
      %382 = vmatpush2.bf16.msra.mxu0 %v342
      %383 = vmatprep.subr.bf16.mxu0 0
      %384 = vmatpush2.bf16.msra.mxu0 %v341
      %385 = vmatprep.subr.bf16.mxu0 0
      %386 = vmatpush2.bf16.msra.mxu0 %v340
      %387 = vmatprep.subr.bf16.mxu0 0
      %388 = vmatpush2.bf16.msra.mxu0 %v339
      %389 = vmatprep.subr.bf16.mxu0 0
      %390 = vmatpush2.bf16.msra.mxu0 %v338
      %391 = vmatprep.subr.bf16.mxu0 0
      %392 = vmatpush2.bf16.msra.mxu0 %v337
      %393 = vmatprep.mubr.bf16.mxu0 %v250
      %394 = vmatmul.mubr.bf16.gmra.mxu0 %v249
      %v395 = vpop.f32.mrf.mxu0
      %v396 = vadd.f32 %v223, %v395
      %v397 = vpop.f32.mrf.mxu0
      %v398 = vpop.f32.mrf.mxu0
      %v399 = vadd.f32 %v223, %v398
      %v400 = vpop.f32.mrf.mxu0
      %401 = vmatprep.mubr.bf16.mxu0 %v252
      %402 = vmatmul.mubr.bf16.gmra.mxu0 %v251
      %v403 = vpop.f32.mrf.mxu0
      %v404 = vadd.f32 %v223, %v403
      %v405 = vpop.f32.mrf.mxu0
      %v406 = vpop.f32.mrf.mxu0
      %v407 = vadd.f32 %v223, %v406
      %v408 = vpop.f32.mrf.mxu0
      %409 = vmatprep.mubr.bf16.mxu0 %v254
      %410 = vmatmul.mubr.bf16.gmra.mxu0 %v253
      %v411 = vpop.f32.mrf.mxu0
      %v412 = vadd.f32 %v223, %v411
      %v413 = vpop.f32.mrf.mxu0
      %v414 = vpop.f32.mrf.mxu0
      %v415 = vadd.f32 %v223, %v414
      %v416 = vpop.f32.mrf.mxu0
      %417 = vmatprep.mubr.bf16.mxu0 %v256
      %418 = vmatmul.mubr.bf16.gmra.mxu0 %v255
      %v419 = vpop.f32.mrf.mxu0
      %v420 = vadd.f32 %v223, %v419
      %v421 = vpop.f32.mrf.mxu0
      %v422 = vpop.f32.mrf.mxu0
      %v423 = vadd.f32 %v223, %v422
      %v424 = vpop.f32.mrf.mxu0
      %425 = vdwg.mxu0
      %426 = vst [vmem:[%s175] sm:$0xff] %v396
      %427 = vst [vmem:[%s175 + $0x8] sm:$0xff] %v399
      %428 = vst [vmem:[%s175 + $0x10] sm:$0xff] %v404
      %429 = vst [vmem:[%s175 + $0x18] sm:$0xff] %v407
      %430 = vst [vmem:[%s175 + $0x20] sm:$0xff] %v412
      %431 = vst [vmem:[%s175 + $0x28] sm:$0xff] %v415
      %432 = vst [vmem:[%s175 + $0x30] sm:$0xff] %v420
      %433 = vst [vmem:[%s175 + $0x38] sm:$0xff] %v423
      %s434 = smul.u32 8, %s14
      %p435 = scmp.lt.s32.totalorder %s434, 15
      %s436 = scalar_select %p435, %s434, 15
      %s437 = smul.addr %s436, 8
      %s438 = scalar_lea.vmem %s3, %s437
      // Predicated region
      $region33: #{conv_embedding_forward.15} parent=31 // pred_check
        %p439 = pneg %p100
      $region34: #{conv_embedding_forward.15} parent=31 // pred_check_branch
        %441 = sbr.rel (%p439) target = $region36
      $region35: #{conv_embedding_forward.15} parent=31 // pred_region
        %s442 = smul.u32 8, %s14
      $region36: #{conv_embedding_forward.15} parent=31 // pred_fallthru
        _
    $region32: #{conv_embedding_forward.15} parent=5 // pred_fallthru
      _
    %p443 = scmp.le.s32.totalorder 2, %s9
    // Predicated region
    $region37: #{conv_embedding_forward.15} parent=5 // pred_check
      %p444 = pneg %p443
    $region38: #{conv_embedding_forward.15} parent=5 // pred_check_branch
      %446 = sbr.rel (%p444) target = $region40
    $region39: #{conv_embedding_forward.15} parent=5 // pred_region
      %s447 = ssub.s32 %s9, 2
      // Predicated region
      $region41: #{conv_embedding_forward.15} parent=39 // pred_check
        %p448 = pneg %p106
      $region42: #{conv_embedding_forward.15} parent=39 // pred_check_branch
        %450 = sbr.rel (%p448) target = $region44
      $region43: #{conv_embedding_forward.15} parent=39 // pred_region
        %s451 = smul.u32 8, %s15
        %p452 = scmp.lt.s32.totalorder %s451, 15
        %s453 = scalar_select %p452, %s451, 15
        %s454 = smul.addr %s453, 8
        %s455 = scalar_lea.vmem %s3, %s454
      $region44: #{conv_embedding_forward.15} parent=39 // pred_fallthru
        _
    $region40: #{conv_embedding_forward.15} parent=5 // pred_fallthru
      _
  $region6: #{conv_embedding_forward.15} parent=0 // loop_footer
    %s13 = sadd.s32 1, %s9
  $region7: #{conv_embedding_forward.15} parent=0 // loop_footer_branch
    %8 = sbr.rel target = $region3
  $region8: #{conv_embedding_forward.15} parent=0 // loop_exit
    _

// kernel: conv_embedding_forward.17
$region0: #{conv_embedding_forward.17}
  #allocation0 [shape = 'u32[]', space=smem, size = 0x4, offset = 0x4, fixed_abs, tag = 'smem constant byte address 0x4 - core index']
  #allocation1 [shape = 'u32[144,128]{1,0:T(1,128)}', space=vmem, size = 0x12000, scoped, tag = 'internal scratch']
  %s0 = inlined_call_operand.vmem [shape: bf16[32,512], index: 0, kind: input, shape index: {}]
  %s1 = inlined_call_operand.vmem [shape: bf16[512,128], index: 1, kind: input, shape index: {}]
  %s2 = inlined_call_operand.vmem [shape: f32[1,128], index: 2, kind: input, shape index: {}]
  %s3 = inlined_call_operand.vmem [shape: f32[32,128], index: 3, kind: output, shape index: {}]
  %s4 = sld [smem:[#allocation0]]
  $region22: #{conv_embedding_forward.17} parent=0
    _
  %s6 = ssub.s32 1, %s4
  %s7 = scalar_select 0, %s6, %s4
  // Predicated region
  $region2: #{conv_embedding_forward.17} parent=0 // pred_check
    _
  $region3: #{conv_embedding_forward.17} parent=0 // pred_check_branch
    %9 = sbr.rel (0) target = $region5
  $region4: #{conv_embedding_forward.17} parent=0 // pred_region
    _
  $region5: #{conv_embedding_forward.17} parent=0 // pred_fallthru
    _
  // Predicated region
  $region6: #{conv_embedding_forward.17} parent=0 // pred_check
    _
  $region7: #{conv_embedding_forward.17} parent=0 // pred_check_branch
    %11 = sbr.rel (0) target = $region9
  $region8: #{conv_embedding_forward.17} parent=0 // pred_region
    _
  $region9: #{conv_embedding_forward.17} parent=0 // pred_fallthru
    _
  // Predicated region
  $region10: #{conv_embedding_forward.17} parent=0 // pred_check
    _
  $region11: #{conv_embedding_forward.17} parent=0 // pred_check_branch
    %13 = sbr.rel (0) target = $region13
  $region12: #{conv_embedding_forward.17} parent=0 // pred_region
    _
  $region13: #{conv_embedding_forward.17} parent=0 // pred_fallthru
    _
  %v15 = vld [vmem:[%s0] sm:$0xff]
  %v16 = vld [vmem:[%s0 + $0x8] sm:$0xff]
  %v17 = vld [vmem:[%s0 + $0x10] sm:$0xff]
  %v18 = vld [vmem:[%s0 + $0x18] sm:$0xff]
  %v19 = vld [vmem:[%s0 + $0x20] sm:$0xff]
  %v20 = vld [vmem:[%s0 + $0x28] sm:$0xff]
  %v21 = vld [vmem:[%s0 + $0x30] sm:$0xff]
  %v22 = vld [vmem:[%s0 + $0x38] sm:$0xff]
  %v23 = vld [vmem:[%s1] sm:$0xf]
  %v24 = vld [vmem:[%s1 + $0x4] sm:$0xf]
  %v25 = vld [vmem:[%s1 + $0x8] sm:$0xf]
  %v26 = vld [vmem:[%s1 + $0xc] sm:$0xf]
  %v27 = vld [vmem:[%s1 + $0x10] sm:$0xf]
  %v28 = vld [vmem:[%s1 + $0x14] sm:$0xf]
  %v29 = vld [vmem:[%s1 + $0x18] sm:$0xf]
  %v30 = vld [vmem:[%s1 + $0x1c] sm:$0xf]
  %v31 = vld [vmem:[%s1 + $0x20] sm:$0xf]
  %v32 = vld [vmem:[%s1 + $0x24] sm:$0xf]
  %v33 = vld [vmem:[%s1 + $0x28] sm:$0xf]
  %v34 = vld [vmem:[%s1 + $0x2c] sm:$0xf]
  %v35 = vld [vmem:[%s1 + $0x30] sm:$0xf]
  %v36 = vld [vmem:[%s1 + $0x34] sm:$0xf]
  %v37 = vld [vmem:[%s1 + $0x38] sm:$0xf]
  %v38 = vld [vmem:[%s1 + $0x3c] sm:$0xf]
  %v39 = vld [vmem:[%s1 + $0x40] sm:$0xf]
  %v40 = vld [vmem:[%s1 + $0x44] sm:$0xf]
  %v41 = vld [vmem:[%s1 + $0x48] sm:$0xf]
  %v42 = vld [vmem:[%s1 + $0x4c] sm:$0xf]
  %v43 = vld [vmem:[%s1 + $0x50] sm:$0xf]
  %v44 = vld [vmem:[%s1 + $0x54] sm:$0xf]
  %v45 = vld [vmem:[%s1 + $0x58] sm:$0xf]
  %v46 = vld [vmem:[%s1 + $0x5c] sm:$0xf]
  %v47 = vld [vmem:[%s1 + $0x60] sm:$0xf]
  %v48 = vld [vmem:[%s1 + $0x64] sm:$0xf]
  %v49 = vld [vmem:[%s1 + $0x68] sm:$0xf]
  %v50 = vld [vmem:[%s1 + $0x6c] sm:$0xf]
  %v51 = vld [vmem:[%s1 + $0x70] sm:$0xf]
  %v52 = vld [vmem:[%s1 + $0x74] sm:$0xf]
  %v53 = vld [vmem:[%s1 + $0x78] sm:$0xf]
  %v54 = vld [vmem:[%s1 + $0x7c] sm:$0xf]
  %v55 = vld [vmem:[%s1 + $0x80] sm:$0xf]
  %v56 = vld [vmem:[%s1 + $0x84] sm:$0xf]
  %v57 = vld [vmem:[%s1 + $0x88] sm:$0xf]
  %v58 = vld [vmem:[%s1 + $0x8c] sm:$0xf]
  %v59 = vld [vmem:[%s1 + $0x90] sm:$0xf]
  %v60 = vld [vmem:[%s1 + $0x94] sm:$0xf]
  %v61 = vld [vmem:[%s1 + $0x98] sm:$0xf]
  %v62 = vld [vmem:[%s1 + $0x9c] sm:$0xf]
  %v63 = vld [vmem:[%s1 + $0xa0] sm:$0xf]
  %v64 = vld [vmem:[%s1 + $0xa4] sm:$0xf]
  %v65 = vld [vmem:[%s1 + $0xa8] sm:$0xf]
  %v66 = vld [vmem:[%s1 + $0xac] sm:$0xf]
  %v67 = vld [vmem:[%s1 + $0xb0] sm:$0xf]
  %v68 = vld [vmem:[%s1 + $0xb4] sm:$0xf]
  %v69 = vld [vmem:[%s1 + $0xb8] sm:$0xf]
  %v70 = vld [vmem:[%s1 + $0xbc] sm:$0xf]
  %v71 = vld [vmem:[%s1 + $0xc0] sm:$0xf]
  %v72 = vld [vmem:[%s1 + $0xc4] sm:$0xf]
  %v73 = vld [vmem:[%s1 + $0xc8] sm:$0xf]
  %v74 = vld [vmem:[%s1 + $0xcc] sm:$0xf]
  %v75 = vld [vmem:[%s1 + $0xd0] sm:$0xf]
  %v76 = vld [vmem:[%s1 + $0xd4] sm:$0xf]
  %v77 = vld [vmem:[%s1 + $0xd8] sm:$0xf]
  %v78 = vld [vmem:[%s1 + $0xdc] sm:$0xf]
  %v79 = vld [vmem:[%s1 + $0xe0] sm:$0xf]
  %v80 = vld [vmem:[%s1 + $0xe4] sm:$0xf]
  %v81 = vld [vmem:[%s1 + $0xe8] sm:$0xf]
  %v82 = vld [vmem:[%s1 + $0xec] sm:$0xf]
  %v83 = vld [vmem:[%s1 + $0xf0] sm:$0xf]
  %v84 = vld [vmem:[%s1 + $0xf4] sm:$0xf]
  %v85 = vld [vmem:[%s1 + $0xf8] sm:$0xf]
  %v86 = vld [vmem:[%s1 + $0xfc] sm:$0xf]
  %v87 = vld [vmem:[%s2] sm:$0x1]
  %v89 = vlaneseq
  %v90 = vshrl.u32 %v89, 7
  %v91 = vsub.s32 0, %v90
  %v92 = vrot.slane %v87, %v91
  %v102 = vunpack.c.l.b16 %v15
  %v103 = vunpack.c.h.b16 %v15
  %v104 = vunpack.c.l.b16 %v16
  %v105 = vunpack.c.h.b16 %v16
  %v106 = vunpack.c.l.b16 %v17
  %v107 = vunpack.c.h.b16 %v17
  %v108 = vunpack.c.l.b16 %v18
  %v109 = vunpack.c.h.b16 %v18
  %v110 = vunpack.c.l.b16 %v19
  %v111 = vunpack.c.h.b16 %v19
  %v112 = vunpack.c.l.b16 %v20
  %v113 = vunpack.c.h.b16 %v20
  %v114 = vunpack.c.l.b16 %v21
  %v115 = vunpack.c.h.b16 %v21
  %v116 = vunpack.c.l.b16 %v22
  %v117 = vunpack.c.h.b16 %v22
  %v118 = vpack.c.b16 %v106, %v102
  %v119 = vpack.c.b16 %v107, %v103
  %v120 = vpack.c.b16 %v108, %v104
  %v121 = vpack.c.b16 %v109, %v105
  %v122 = vpack.c.b16 %v114, %v110
  %v123 = vpack.c.b16 %v115, %v111
  %v124 = vpack.c.b16 %v116, %v112
  %v125 = vpack.c.b16 %v117, %v113
  %v198 = vunpack.c.l.b16 %v23
  %v199 = vunpack.c.l.b16 %v24
  %v200 = vunpack.c.l.b16 %v25
  %v201 = vunpack.c.l.b16 %v26
  %v202 = vunpack.c.l.b16 %v27
  %v203 = vunpack.c.l.b16 %v28
  %v204 = vunpack.c.l.b16 %v29
  %v205 = vunpack.c.l.b16 %v30
  %v206 = vunpack.c.l.b16 %v31
  %v207 = vunpack.c.l.b16 %v32
  %v208 = vunpack.c.l.b16 %v33
  %v209 = vunpack.c.l.b16 %v34
  %v210 = vunpack.c.l.b16 %v35
  %v211 = vunpack.c.l.b16 %v36
  %v212 = vunpack.c.l.b16 %v37
  %v213 = vunpack.c.l.b16 %v38
  %v214 = vunpack.c.l.b16 %v39
  %v215 = vunpack.c.l.b16 %v40
  %v216 = vunpack.c.l.b16 %v41
  %v217 = vunpack.c.l.b16 %v42
  %v218 = vunpack.c.l.b16 %v43
  %v219 = vunpack.c.l.b16 %v44
  %v220 = vunpack.c.l.b16 %v45
  %v221 = vunpack.c.l.b16 %v46
  %v222 = vunpack.c.l.b16 %v47
  %v223 = vunpack.c.l.b16 %v48
  %v224 = vunpack.c.l.b16 %v49
  %v225 = vunpack.c.l.b16 %v50
  %v226 = vunpack.c.l.b16 %v51
  %v227 = vunpack.c.l.b16 %v52
  %v228 = vunpack.c.l.b16 %v53
  %v229 = vunpack.c.l.b16 %v54
  %v230 = vunpack.c.l.b16 %v55
  %v231 = vunpack.c.l.b16 %v56
  %v232 = vunpack.c.l.b16 %v57
  %v233 = vunpack.c.l.b16 %v58
  %v234 = vunpack.c.l.b16 %v59
  %v235 = vunpack.c.l.b16 %v60
  %v236 = vunpack.c.l.b16 %v61
  %v237 = vunpack.c.l.b16 %v62
  %v238 = vunpack.c.l.b16 %v63
  %v239 = vunpack.c.l.b16 %v64
  %v240 = vunpack.c.l.b16 %v65
  %v241 = vunpack.c.l.b16 %v66
  %v242 = vunpack.c.l.b16 %v67
  %v243 = vunpack.c.l.b16 %v68
  %v244 = vunpack.c.l.b16 %v69
  %v245 = vunpack.c.l.b16 %v70
  %v246 = vunpack.c.l.b16 %v71
  %v247 = vunpack.c.l.b16 %v72
  %v248 = vunpack.c.l.b16 %v73
  %v249 = vunpack.c.l.b16 %v74
  %v250 = vunpack.c.l.b16 %v75
  %v251 = vunpack.c.l.b16 %v76
  %v252 = vunpack.c.l.b16 %v77
  %v253 = vunpack.c.l.b16 %v78
  %v254 = vunpack.c.l.b16 %v79
  %v255 = vunpack.c.l.b16 %v80
  %v256 = vunpack.c.l.b16 %v81
  %v257 = vunpack.c.l.b16 %v82
  %v258 = vunpack.c.l.b16 %v83
  %v259 = vunpack.c.l.b16 %v84
  %v260 = vunpack.c.l.b16 %v85
  %v261 = vunpack.c.l.b16 %v86
  %v262 = vpack.c.b16 %v199, %v198
  %v263 = vpack.c.b16 %v201, %v200
  %v264 = vpack.c.b16 %v203, %v202
  %v265 = vpack.c.b16 %v205, %v204
  %v266 = vpack.c.b16 %v207, %v206
  %v267 = vpack.c.b16 %v209, %v208
  %v268 = vpack.c.b16 %v211, %v210
  %v269 = vpack.c.b16 %v213, %v212
  %v270 = vpack.c.b16 %v215, %v214
  %v271 = vpack.c.b16 %v217, %v216
  %v272 = vpack.c.b16 %v219, %v218
  %v273 = vpack.c.b16 %v221, %v220
  %v274 = vpack.c.b16 %v223, %v222
  %v275 = vpack.c.b16 %v225, %v224
  %v276 = vpack.c.b16 %v227, %v226
  %v277 = vpack.c.b16 %v229, %v228
  %v278 = vpack.c.b16 %v231, %v230
  %v279 = vpack.c.b16 %v233, %v232
  %v280 = vpack.c.b16 %v235, %v234
  %v281 = vpack.c.b16 %v237, %v236
  %v282 = vpack.c.b16 %v239, %v238
  %v283 = vpack.c.b16 %v241, %v240
  %v284 = vpack.c.b16 %v243, %v242
  %v285 = vpack.c.b16 %v245, %v244
  %v286 = vpack.c.b16 %v247, %v246
  %v287 = vpack.c.b16 %v249, %v248
  %v288 = vpack.c.b16 %v251, %v250
  %v289 = vpack.c.b16 %v253, %v252
  %v290 = vpack.c.b16 %v255, %v254
  %v291 = vpack.c.b16 %v257, %v256
  %v292 = vpack.c.b16 %v259, %v258
  %v293 = vpack.c.b16 %v261, %v260
  %326 = vmatprep.subr.bf16.mxu0 0
  %327 = vmatpush1.bf16.msra.mxu0 %v269
  %328 = vmatprep.subr.bf16.mxu0 0
  %329 = vmatpush1.bf16.msra.mxu0 %v268
  %330 = vmatprep.subr.bf16.mxu0 0
  %331 = vmatpush1.bf16.msra.mxu0 %v267
  %332 = vmatprep.subr.bf16.mxu0 0
  %333 = vmatpush1.bf16.msra.mxu0 %v266
  %334 = vmatprep.subr.bf16.mxu0 0
  %335 = vmatpush1.bf16.msra.mxu0 %v265
  %336 = vmatprep.subr.bf16.mxu0 0
  %337 = vmatpush1.bf16.msra.mxu0 %v264
  %338 = vmatprep.subr.bf16.mxu0 0
  %339 = vmatpush1.bf16.msra.mxu0 %v263
  %340 = vmatprep.subr.bf16.mxu0 0
  %341 = vmatpush1.bf16.msra.mxu0 %v262
  %342 = vmatprep.subr.bf16.mxu0 0
  %343 = vmatpush2.bf16.msra.mxu0 %v277
  %344 = vmatprep.subr.bf16.mxu0 0
  %345 = vmatpush2.bf16.msra.mxu0 %v276
  %346 = vmatprep.subr.bf16.mxu0 0
  %347 = vmatpush2.bf16.msra.mxu0 %v275
  %348 = vmatprep.subr.bf16.mxu0 0
  %349 = vmatpush2.bf16.msra.mxu0 %v274
  %350 = vmatprep.subr.bf16.mxu0 0
  %351 = vmatpush2.bf16.msra.mxu0 %v273
  %352 = vmatprep.subr.bf16.mxu0 0
  %353 = vmatpush2.bf16.msra.mxu0 %v272
  %354 = vmatprep.subr.bf16.mxu0 0
  %355 = vmatpush2.bf16.msra.mxu0 %v271
  %356 = vmatprep.subr.bf16.mxu0 0
  %357 = vmatpush2.bf16.msra.mxu0 %v270
  %358 = vmatprep.mubr.bf16.mxu0 %v119
  %359 = vmatmul.mubr.bf16.gmra.mxu0 %v118
  %v360 = vpop.f32.mrf.mxu0
  %v361 = vadd.f32 %v92, %v360
  %v362 = vpop.f32.mrf.mxu0
  %v363 = vpop.f32.mrf.mxu0
  %v364 = vadd.f32 %v92, %v363
  %v365 = vpop.f32.mrf.mxu0
  %366 = vmatprep.mubr.bf16.mxu0 %v123
  %367 = vmatmul.mubr.bf16.gmra.mxu0 %v122
  %v368 = vpop.f32.mrf.mxu0
  %v369 = vadd.f32 %v92, %v368
  %v370 = vpop.f32.mrf.mxu0
  %v371 = vpop.f32.mrf.mxu0
  %v372 = vadd.f32 %v92, %v371
  %v373 = vpop.f32.mrf.mxu0
  %374 = vdwg.mxu0
  %375 = vmatprep.subr.bf16.mxu0 0
  %376 = vmatpush1.bf16.msra.mxu0 %v285
  %377 = vmatprep.subr.bf16.mxu0 0
  %378 = vmatpush1.bf16.msra.mxu0 %v284
  %379 = vmatprep.subr.bf16.mxu0 0
  %380 = vmatpush1.bf16.msra.mxu0 %v283
  %381 = vmatprep.subr.bf16.mxu0 0
  %382 = vmatpush1.bf16.msra.mxu0 %v282
  %383 = vmatprep.subr.bf16.mxu0 0
  %384 = vmatpush1.bf16.msra.mxu0 %v281
  %385 = vmatprep.subr.bf16.mxu0 0
  %386 = vmatpush1.bf16.msra.mxu0 %v280
  %387 = vmatprep.subr.bf16.mxu0 0
  %388 = vmatpush1.bf16.msra.mxu0 %v279
  %389 = vmatprep.subr.bf16.mxu0 0
  %390 = vmatpush1.bf16.msra.mxu0 %v278
  %391 = vmatprep.subr.bf16.mxu0 0
  %392 = vmatpush2.bf16.msra.mxu0 %v293
  %393 = vmatprep.subr.bf16.mxu0 0
  %394 = vmatpush2.bf16.msra.mxu0 %v292
  %395 = vmatprep.subr.bf16.mxu0 0
  %396 = vmatpush2.bf16.msra.mxu0 %v291
  %397 = vmatprep.subr.bf16.mxu0 0
  %398 = vmatpush2.bf16.msra.mxu0 %v290
  %399 = vmatprep.subr.bf16.mxu0 0
  %400 = vmatpush2.bf16.msra.mxu0 %v289
  %401 = vmatprep.subr.bf16.mxu0 0
  %402 = vmatpush2.bf16.msra.mxu0 %v288
  %403 = vmatprep.subr.bf16.mxu0 0
  %404 = vmatpush2.bf16.msra.mxu0 %v287
  %405 = vmatprep.subr.bf16.mxu0 0
  %406 = vmatpush2.bf16.msra.mxu0 %v286
  %407 = vmatprep.mubr.bf16.mxu0 %v121
  %408 = vmatmul.mubr.bf16.gmra.mxu0 %v120
  %v409 = vpop.f32.mrf.mxu0
  %v410 = vadd.f32 %v361, %v409
  %v411 = vpop.f32.mrf.mxu0
  %v412 = vpop.f32.mrf.mxu0
  %v413 = vadd.f32 %v364, %v412
  %v414 = vpop.f32.mrf.mxu0
  %415 = vmatprep.mubr.bf16.mxu0 %v125
  %416 = vmatmul.mubr.bf16.gmra.mxu0 %v124
  %v417 = vpop.f32.mrf.mxu0
  %v418 = vadd.f32 %v369, %v417
  %v419 = vpop.f32.mrf.mxu0
  %v420 = vpop.f32.mrf.mxu0
  %v421 = vadd.f32 %v372, %v420
  %v422 = vpop.f32.mrf.mxu0
  %423 = vdwg.mxu0
  %v424 = vmax.f32 %v410, 0.0
  %v425 = vmax.f32 %v413, 0.0
  %v426 = vmax.f32 %v418, 0.0
  %v427 = vmax.f32 %v421, 0.0
  %vm428 = vcmp.gt.f32.partialorder %v424, 0.0
  %vm429 = vcmp.gt.f32.partialorder %v425, 0.0
  %vm430 = vcmp.gt.f32.partialorder %v426, 0.0
  %vm431 = vcmp.gt.f32.partialorder %v427, 0.0
  %v432 = vmul.f32 %v424, 0.01
  %v433 = vmul.f32 %v425, 0.01
  %v434 = vmul.f32 %v426, 0.01
  %v435 = vmul.f32 %v427, 0.01
  %v436 = vsel %vm428, %v424, %v432
  %v437 = vsel %vm429, %v425, %v433
  %v438 = vsel %vm430, %v426, %v434
  %v439 = vsel %vm431, %v427, %v435
  %440 = vst [vmem:[%s3] sm:$0xff] %v436
  %441 = vst [vmem:[%s3 + $0x8] sm:$0xff] %v437
  %442 = vst [vmem:[%s3 + $0x10] sm:$0xff] %v438
  %443 = vst [vmem:[%s3 + $0x18] sm:$0xff] %v439
  // Predicated region
  $region14: #{conv_embedding_forward.17} parent=0 // pred_check
    _
  $region15: #{conv_embedding_forward.17} parent=0 // pred_check_branch
    %445 = sbr.rel (0) target = $region17
  $region16: #{conv_embedding_forward.17} parent=0 // pred_region
    _
  $region17: #{conv_embedding_forward.17} parent=0 // pred_fallthru
    _
  // Predicated region
  $region18: #{conv_embedding_forward.17} parent=0 // pred_check
    _
  $region19: #{conv_embedding_forward.17} parent=0 // pred_check_branch
    %447 = sbr.rel (0) target = $region21
  $region20: #{conv_embedding_forward.17} parent=0 // pred_region
    _
  $region21: #{conv_embedding_forward.17} parent=0 // pred_fallthru
    _

// kernel: conv_embedding_forward.18
$region0: #{conv_embedding_forward.18}
  #allocation0 [shape = 'u32[]', space=smem, size = 0x4, offset = 0x4, fixed_abs, tag = 'smem constant byte address 0x4 - core index']
  #allocation1 [shape = 'u32[144,128]{1,0:T(1,128)}', space=vmem, size = 0x12000, scoped, tag = 'internal scratch']
  %s0 = inlined_call_operand.vmem [shape: bf16[32,128], index: 0, kind: input, shape index: {}]
  %s1 = inlined_call_operand.vmem [shape: bf16[128,128], index: 1, kind: input, shape index: {}]
  %s2 = inlined_call_operand.vmem [shape: f32[1,128], index: 2, kind: input, shape index: {}]
  %s3 = inlined_call_operand.vmem [shape: f32[32,128], index: 3, kind: output, shape index: {}]
  %s4 = sld [smem:[#allocation0]]
  $region22: #{conv_embedding_forward.18} parent=0
    _
  %s6 = ssub.s32 1, %s4
  %s7 = scalar_select 0, %s6, %s4
  // Predicated region
  $region2: #{conv_embedding_forward.18} parent=0 // pred_check
    _
  $region3: #{conv_embedding_forward.18} parent=0 // pred_check_branch
    %9 = sbr.rel (0) target = $region5
  $region4: #{conv_embedding_forward.18} parent=0 // pred_region
    _
  $region5: #{conv_embedding_forward.18} parent=0 // pred_fallthru
    _
  // Predicated region
  $region6: #{conv_embedding_forward.18} parent=0 // pred_check
    _
  $region7: #{conv_embedding_forward.18} parent=0 // pred_check_branch
    %11 = sbr.rel (0) target = $region9
  $region8: #{conv_embedding_forward.18} parent=0 // pred_region
    _
  $region9: #{conv_embedding_forward.18} parent=0 // pred_fallthru
    _
  // Predicated region
  $region10: #{conv_embedding_forward.18} parent=0 // pred_check
    _
  $region11: #{conv_embedding_forward.18} parent=0 // pred_check_branch
    %13 = sbr.rel (0) target = $region13
  $region12: #{conv_embedding_forward.18} parent=0 // pred_region
    _
  $region13: #{conv_embedding_forward.18} parent=0 // pred_fallthru
    _
  %v15 = vld [vmem:[%s0] sm:$0xf]
  %v16 = vld [vmem:[%s0 + $0x4] sm:$0xf]
  %v17 = vld [vmem:[%s0 + $0x8] sm:$0xf]
  %v18 = vld [vmem:[%s0 + $0xc] sm:$0xf]
  %v19 = vld [vmem:[%s1] sm:$0xf]
  %v20 = vld [vmem:[%s1 + $0x4] sm:$0xf]
  %v21 = vld [vmem:[%s1 + $0x8] sm:$0xf]
  %v22 = vld [vmem:[%s1 + $0xc] sm:$0xf]
  %v23 = vld [vmem:[%s1 + $0x10] sm:$0xf]
  %v24 = vld [vmem:[%s1 + $0x14] sm:$0xf]
  %v25 = vld [vmem:[%s1 + $0x18] sm:$0xf]
  %v26 = vld [vmem:[%s1 + $0x1c] sm:$0xf]
  %v27 = vld [vmem:[%s1 + $0x20] sm:$0xf]
  %v28 = vld [vmem:[%s1 + $0x24] sm:$0xf]
  %v29 = vld [vmem:[%s1 + $0x28] sm:$0xf]
  %v30 = vld [vmem:[%s1 + $0x2c] sm:$0xf]
  %v31 = vld [vmem:[%s1 + $0x30] sm:$0xf]
  %v32 = vld [vmem:[%s1 + $0x34] sm:$0xf]
  %v33 = vld [vmem:[%s1 + $0x38] sm:$0xf]
  %v34 = vld [vmem:[%s1 + $0x3c] sm:$0xf]
  %v35 = vld [vmem:[%s2] sm:$0x1]
  %v37 = vlaneseq
  %v38 = vshrl.u32 %v37, 7
  %v39 = vsub.s32 0, %v38
  %v40 = vrot.slane %v35, %v39
  %v46 = vunpack.c.l.b16 %v15
  %v47 = vunpack.c.l.b16 %v16
  %v48 = vunpack.c.l.b16 %v17
  %v49 = vunpack.c.l.b16 %v18
  %v50 = vpack.c.b16 %v47, %v46
  %v51 = vpack.c.b16 %v49, %v48
  %v70 = vunpack.c.l.b16 %v19
  %v71 = vunpack.c.l.b16 %v20
  %v72 = vunpack.c.l.b16 %v21
  %v73 = vunpack.c.l.b16 %v22
  %v74 = vunpack.c.l.b16 %v23
  %v75 = vunpack.c.l.b16 %v24
  %v76 = vunpack.c.l.b16 %v25
  %v77 = vunpack.c.l.b16 %v26
  %v78 = vunpack.c.l.b16 %v27
  %v79 = vunpack.c.l.b16 %v28
  %v80 = vunpack.c.l.b16 %v29
  %v81 = vunpack.c.l.b16 %v30
  %v82 = vunpack.c.l.b16 %v31
  %v83 = vunpack.c.l.b16 %v32
  %v84 = vunpack.c.l.b16 %v33
  %v85 = vunpack.c.l.b16 %v34
  %v86 = vpack.c.b16 %v71, %v70
  %v87 = vpack.c.b16 %v73, %v72
  %v88 = vpack.c.b16 %v75, %v74
  %v89 = vpack.c.b16 %v77, %v76
  %v90 = vpack.c.b16 %v79, %v78
  %v91 = vpack.c.b16 %v81, %v80
  %v92 = vpack.c.b16 %v83, %v82
  %v93 = vpack.c.b16 %v85, %v84
  %102 = vmatprep.subr.bf16.mxu0 0
  %103 = vmatpush1.bf16.msra.mxu0 %v93
  %104 = vmatprep.subr.bf16.mxu0 0
  %105 = vmatpush1.bf16.msra.mxu0 %v92
  %106 = vmatprep.subr.bf16.mxu0 0
  %107 = vmatpush1.bf16.msra.mxu0 %v91
  %108 = vmatprep.subr.bf16.mxu0 0
  %109 = vmatpush1.bf16.msra.mxu0 %v90
  %110 = vmatprep.subr.bf16.mxu0 0
  %111 = vmatpush1.bf16.msra.mxu0 %v89
  %112 = vmatprep.subr.bf16.mxu0 0
  %113 = vmatpush1.bf16.msra.mxu0 %v88
  %114 = vmatprep.subr.bf16.mxu0 0
  %115 = vmatpush1.bf16.msra.mxu0 %v87
  %116 = vmatprep.subr.bf16.mxu0 0
  %117 = vmatpush1.bf16.msra.mxu0 %v86
  %118 = vmatprep.subr.bf16.mxu0 0
  %119 = vmatpush2.bf16.msra.mxu0 0
  %120 = vmatprep.subr.bf16.mxu0 0
  %121 = vmatpush2.bf16.msra.mxu0 0
  %122 = vmatprep.subr.bf16.mxu0 0
  %123 = vmatpush2.bf16.msra.mxu0 0
  %124 = vmatprep.subr.bf16.mxu0 0
  %125 = vmatpush2.bf16.msra.mxu0 0
  %126 = vmatprep.subr.bf16.mxu0 0
  %127 = vmatpush2.bf16.msra.mxu0 0
  %128 = vmatprep.subr.bf16.mxu0 0
  %129 = vmatpush2.bf16.msra.mxu0 0
  %130 = vmatprep.subr.bf16.mxu0 0
  %131 = vmatpush2.bf16.msra.mxu0 0
  %132 = vmatprep.subr.bf16.mxu0 0
  %133 = vmatpush2.bf16.msra.mxu0 0
  %134 = vmatprep.mubr.bf16.mxu0 0
  %135 = vmatmul.mubr.bf16.gmra.mxu0 %v50
  %v136 = vpop.f32.mrf.mxu0
  %v137 = vadd.f32 %v40, %v136
  %v138 = vpop.f32.mrf.mxu0
  %v139 = vpop.f32.mrf.mxu0
  %v140 = vadd.f32 %v40, %v139
  %v141 = vpop.f32.mrf.mxu0
  %142 = vmatprep.mubr.bf16.mxu0 0
  %143 = vmatmul.mubr.bf16.gmra.mxu0 %v51
  %v144 = vpop.f32.mrf.mxu0
  %v145 = vadd.f32 %v40, %v144
  %v146 = vpop.f32.mrf.mxu0
  %v147 = vpop.f32.mrf.mxu0
  %v148 = vadd.f32 %v40, %v147
  %v149 = vpop.f32.mrf.mxu0
  %150 = vdwg.mxu0
  %151 = vst [vmem:[%s3] sm:$0xff] %v137
  %152 = vst [vmem:[%s3 + $0x8] sm:$0xff] %v140
  %153 = vst [vmem:[%s3 + $0x10] sm:$0xff] %v145
  %154 = vst [vmem:[%s3 + $0x18] sm:$0xff] %v148
  // Predicated region
  $region14: #{conv_embedding_forward.18} parent=0 // pred_check
    _
  $region15: #{conv_embedding_forward.18} parent=0 // pred_check_branch
    %156 = sbr.rel (0) target = $region17
  $region16: #{conv_embedding_forward.18} parent=0 // pred_region
    _
  $region17: #{conv_embedding_forward.18} parent=0 // pred_fallthru
    _
  // Predicated region
  $region18: #{conv_embedding_forward.18} parent=0 // pred_check
    _
  $region19: #{conv_embedding_forward.18} parent=0 // pred_check_branch
    %158 = sbr.rel (0) target = $region21
  $region20: #{conv_embedding_forward.18} parent=0 // pred_region
    _
  $region21: #{conv_embedding_forward.18} parent=0 // pred_fallthru
    _

// kernel: conv_embedding_forward.19
$region0: #{conv_embedding_forward.19}
  #allocation0 [shape = 'u32[]', space=smem, size = 0x4, offset = 0x4, fixed_abs, tag = 'smem constant byte address 0x4 - core index']
  #allocation1 [shape = 'u32[144,128]{1,0:T(1,128)}', space=vmem, size = 0x12000, scoped, tag = 'internal scratch']
  %s0 = inlined_call_operand.vmem [shape: bf16[8,2048], index: 0, kind: input, shape index: {}]
  %s1 = inlined_call_operand.vmem [shape: bf16[2048,128], index: 1, kind: input, shape index: {}]
  %s2 = inlined_call_operand.vmem [shape: f32[1,128], index: 2, kind: input, shape index: {}]
  %s3 = inlined_call_operand.hbm [shape: f32[8,128], index: 3, kind: output, shape index: {}]
  %s4 = sld [smem:[#allocation0]]
  $region22: #{conv_embedding_forward.19} parent=0
    _
  %s6 = ssub.s32 1, %s4
  %s7 = scalar_select 0, %s6, %s4
  $region1: #{conv_embedding_forward.19} parent=0
    #allocation2 [shape = 'u8[4096]{0}', space=vmem, size = 0x1000, scoped, tag = 'output window, operand 0, single buffered']
    #allocation3 [shape = 's32[1]{0}', space=sflag, size = 0x4, scoped, tag = 'scoped memory for conv_embedding_forward.19']
    %8 = vsyncpa [#allocation3], 0
    // Predicated region
    $region2: #{conv_embedding_forward.19} parent=1 // pred_check
      _
    $region3: #{conv_embedding_forward.19} parent=1 // pred_check_branch
      %10 = sbr.rel (0) target = $region5
    $region4: #{conv_embedding_forward.19} parent=1 // pred_region
      _
    $region5: #{conv_embedding_forward.19} parent=1 // pred_fallthru
      _
    // Predicated region
    $region6: #{conv_embedding_forward.19} parent=1 // pred_check
      _
    $region7: #{conv_embedding_forward.19} parent=1 // pred_check_branch
      %12 = sbr.rel (0) target = $region9
    $region8: #{conv_embedding_forward.19} parent=1 // pred_region
      _
    $region9: #{conv_embedding_forward.19} parent=1 // pred_fallthru
      _
    // Predicated region
    $region10: #{conv_embedding_forward.19} parent=1 // pred_check
      _
    $region11: #{conv_embedding_forward.19} parent=1 // pred_check_branch
      %14 = sbr.rel (0) target = $region13
    $region12: #{conv_embedding_forward.19} parent=1 // pred_region
      _
    $region13: #{conv_embedding_forward.19} parent=1 // pred_fallthru
      _
    %v16 = vld [vmem:[%s0] sm:$0xff]
    %v17 = vld [vmem:[%s0 + $0x8] sm:$0xff]
    %v18 = vld [vmem:[%s0 + $0x10] sm:$0xff]
    %v19 = vld [vmem:[%s0 + $0x18] sm:$0xff]
    %v20 = vld [vmem:[%s0 + $0x20] sm:$0xff]
    %v21 = vld [vmem:[%s0 + $0x28] sm:$0xff]
    %v22 = vld [vmem:[%s0 + $0x30] sm:$0xff]
    %v23 = vld [vmem:[%s0 + $0x38] sm:$0xff]
    %v24 = vld [vmem:[%s1] sm:$0xf]
    %v25 = vld [vmem:[%s1 + $0x4] sm:$0xf]
    %v26 = vld [vmem:[%s1 + $0x8] sm:$0xf]
    %v27 = vld [vmem:[%s1 + $0xc] sm:$0xf]
    %v28 = vld [vmem:[%s1 + $0x10] sm:$0xf]
    %v29 = vld [vmem:[%s1 + $0x14] sm:$0xf]
    %v30 = vld [vmem:[%s1 + $0x18] sm:$0xf]
    %v31 = vld [vmem:[%s1 + $0x1c] sm:$0xf]
    %v32 = vld [vmem:[%s1 + $0x20] sm:$0xf]
    %v33 = vld [vmem:[%s1 + $0x24] sm:$0xf]
    %v34 = vld [vmem:[%s1 + $0x28] sm:$0xf]
    %v35 = vld [vmem:[%s1 + $0x2c] sm:$0xf]
    %v36 = vld [vmem:[%s1 + $0x30] sm:$0xf]
    %v37 = vld [vmem:[%s1 + $0x34] sm:$0xf]
    %v38 = vld [vmem:[%s1 + $0x38] sm:$0xf]
    %v39 = vld [vmem:[%s1 + $0x3c] sm:$0xf]
    %v40 = vld [vmem:[%s1 + $0x40] sm:$0xf]
    %v41 = vld [vmem:[%s1 + $0x44] sm:$0xf]
    %v42 = vld [vmem:[%s1 + $0x48] sm:$0xf]
    %v43 = vld [vmem:[%s1 + $0x4c] sm:$0xf]
    %v44 = vld [vmem:[%s1 + $0x50] sm:$0xf]
    %v45 = vld [vmem:[%s1 + $0x54] sm:$0xf]
    %v46 = vld [vmem:[%s1 + $0x58] sm:$0xf]
    %v47 = vld [vmem:[%s1 + $0x5c] sm:$0xf]
    %v48 = vld [vmem:[%s1 + $0x60] sm:$0xf]
    %v49 = vld [vmem:[%s1 + $0x64] sm:$0xf]
    %v50 = vld [vmem:[%s1 + $0x68] sm:$0xf]
    %v51 = vld [vmem:[%s1 + $0x6c] sm:$0xf]
    %v52 = vld [vmem:[%s1 + $0x70] sm:$0xf]
    %v53 = vld [vmem:[%s1 + $0x74] sm:$0xf]
    %v54 = vld [vmem:[%s1 + $0x78] sm:$0xf]
    %v55 = vld [vmem:[%s1 + $0x7c] sm:$0xf]
    %v56 = vld [vmem:[%s1 + $0x80] sm:$0xf]
    %v57 = vld [vmem:[%s1 + $0x84] sm:$0xf]
    %v58 = vld [vmem:[%s1 + $0x88] sm:$0xf]
    %v59 = vld [vmem:[%s1 + $0x8c] sm:$0xf]
    %v60 = vld [vmem:[%s1 + $0x90] sm:$0xf]
    %v61 = vld [vmem:[%s1 + $0x94] sm:$0xf]
    %v62 = vld [vmem:[%s1 + $0x98] sm:$0xf]
    %v63 = vld [vmem:[%s1 + $0x9c] sm:$0xf]
    %v64 = vld [vmem:[%s1 + $0xa0] sm:$0xf]
    %v65 = vld [vmem:[%s1 + $0xa4] sm:$0xf]
    %v66 = vld [vmem:[%s1 + $0xa8] sm:$0xf]
    %v67 = vld [vmem:[%s1 + $0xac] sm:$0xf]
    %v68 = vld [vmem:[%s1 + $0xb0] sm:$0xf]
    %v69 = vld [vmem:[%s1 + $0xb4] sm:$0xf]
    %v70 = vld [vmem:[%s1 + $0xb8] sm:$0xf]
    %v71 = vld [vmem:[%s1 + $0xbc] sm:$0xf]
    %v72 = vld [vmem:[%s1 + $0xc0] sm:$0xf]
    %v73 = vld [vmem:[%s1 + $0xc4] sm:$0xf]
    %v74 = vld [vmem:[%s1 + $0xc8] sm:$0xf]
    %v75 = vld [vmem:[%s1 + $0xcc] sm:$0xf]
    %v76 = vld [vmem:[%s1 + $0xd0] sm:$0xf]
    %v77 = vld [vmem:[%s1 + $0xd4] sm:$0xf]
    %v78 = vld [vmem:[%s1 + $0xd8] sm:$0xf]
    %v79 = vld [vmem:[%s1 + $0xdc] sm:$0xf]
    %v80 = vld [vmem:[%s1 + $0xe0] sm:$0xf]
    %v81 = vld [vmem:[%s1 + $0xe4] sm:$0xf]
    %v82 = vld [vmem:[%s1 + $0xe8] sm:$0xf]
    %v83 = vld [vmem:[%s1 + $0xec] sm:$0xf]
    %v84 = vld [vmem:[%s1 + $0xf0] sm:$0xf]
    %v85 = vld [vmem:[%s1 + $0xf4] sm:$0xf]
    %v86 = vld [vmem:[%s1 + $0xf8] sm:$0xf]
    %v87 = vld [vmem:[%s1 + $0xfc] sm:$0xf]
    %v88 = vld [vmem:[%s1 + $0x100] sm:$0xf]
    %v89 = vld [vmem:[%s1 + $0x104] sm:$0xf]
    %v90 = vld [vmem:[%s1 + $0x108] sm:$0xf]
    %v91 = vld [vmem:[%s1 + $0x10c] sm:$0xf]
    %v92 = vld [vmem:[%s1 + $0x110] sm:$0xf]
    %v93 = vld [vmem:[%s1 + $0x114] sm:$0xf]
    %v94 = vld [vmem:[%s1 + $0x118] sm:$0xf]
    %v95 = vld [vmem:[%s1 + $0x11c] sm:$0xf]
    %v96 = vld [vmem:[%s1 + $0x120] sm:$0xf]
    %v97 = vld [vmem:[%s1 + $0x124] sm:$0xf]
    %v98 = vld [vmem:[%s1 + $0x128] sm:$0xf]
    %v99 = vld [vmem:[%s1 + $0x12c] sm:$0xf]
    %v100 = vld [vmem:[%s1 + $0x130] sm:$0xf]
    %v101 = vld [vmem:[%s1 + $0x134] sm:$0xf]
    %v102 = vld [vmem:[%s1 + $0x138] sm:$0xf]
    %v103 = vld [vmem:[%s1 + $0x13c] sm:$0xf]
    %v104 = vld [vmem:[%s1 + $0x140] sm:$0xf]
    %v105 = vld [vmem:[%s1 + $0x144] sm:$0xf]
    %v106 = vld [vmem:[%s1 + $0x148] sm:$0xf]
    %v107 = vld [vmem:[%s1 + $0x14c] sm:$0xf]
    %v108 = vld [vmem:[%s1 + $0x150] sm:$0xf]
    %v109 = vld [vmem:[%s1 + $0x154] sm:$0xf]
    %v110 = vld [vmem:[%s1 + $0x158] sm:$0xf]
    %v111 = vld [vmem:[%s1 + $0x15c] sm:$0xf]
    %v112 = vld [vmem:[%s1 + $0x160] sm:$0xf]
    %v113 = vld [vmem:[%s1 + $0x164] sm:$0xf]
    %v114 = vld [vmem:[%s1 + $0x168] sm:$0xf]
    %v115 = vld [vmem:[%s1 + $0x16c] sm:$0xf]
    %v116 = vld [vmem:[%s1 + $0x170] sm:$0xf]
    %v117 = vld [vmem:[%s1 + $0x174] sm:$0xf]
    %v118 = vld [vmem:[%s1 + $0x178] sm:$0xf]
    %v119 = vld [vmem:[%s1 + $0x17c] sm:$0xf]
    %v120 = vld [vmem:[%s1 + $0x180] sm:$0xf]
    %v121 = vld [vmem:[%s1 + $0x184] sm:$0xf]
    %v122 = vld [vmem:[%s1 + $0x188] sm:$0xf]
    %v123 = vld [vmem:[%s1 + $0x18c] sm:$0xf]
    %v124 = vld [vmem:[%s1 + $0x190] sm:$0xf]
    %v125 = vld [vmem:[%s1 + $0x194] sm:$0xf]
    %v126 = vld [vmem:[%s1 + $0x198] sm:$0xf]
    %v127 = vld [vmem:[%s1 + $0x19c] sm:$0xf]
    %v128 = vld [vmem:[%s1 + $0x1a0] sm:$0xf]
    %v129 = vld [vmem:[%s1 + $0x1a4] sm:$0xf]
    %v130 = vld [vmem:[%s1 + $0x1a8] sm:$0xf]
    %v131 = vld [vmem:[%s1 + $0x1ac] sm:$0xf]
    %v132 = vld [vmem:[%s1 + $0x1b0] sm:$0xf]
    %v133 = vld [vmem:[%s1 + $0x1b4] sm:$0xf]
    %v134 = vld [vmem:[%s1 + $0x1b8] sm:$0xf]
    %v135 = vld [vmem:[%s1 + $0x1bc] sm:$0xf]
    %v136 = vld [vmem:[%s1 + $0x1c0] sm:$0xf]
    %v137 = vld [vmem:[%s1 + $0x1c4] sm:$0xf]
    %v138 = vld [vmem:[%s1 + $0x1c8] sm:$0xf]
    %v139 = vld [vmem:[%s1 + $0x1cc] sm:$0xf]
    %v140 = vld [vmem:[%s1 + $0x1d0] sm:$0xf]
    %v141 = vld [vmem:[%s1 + $0x1d4] sm:$0xf]
    %v142 = vld [vmem:[%s1 + $0x1d8] sm:$0xf]
    %v143 = vld [vmem:[%s1 + $0x1dc] sm:$0xf]
    %v144 = vld [vmem:[%s1 + $0x1e0] sm:$0xf]
    %v145 = vld [vmem:[%s1 + $0x1e4] sm:$0xf]
    %v146 = vld [vmem:[%s1 + $0x1e8] sm:$0xf]
    %v147 = vld [vmem:[%s1 + $0x1ec] sm:$0xf]
    %v148 = vld [vmem:[%s1 + $0x1f0] sm:$0xf]
    %v149 = vld [vmem:[%s1 + $0x1f4] sm:$0xf]
    %v150 = vld [vmem:[%s1 + $0x1f8] sm:$0xf]
    %v151 = vld [vmem:[%s1 + $0x1fc] sm:$0xf]
    %v152 = vld [vmem:[%s1 + $0x200] sm:$0xf]
    %v153 = vld [vmem:[%s1 + $0x204] sm:$0xf]
    %v154 = vld [vmem:[%s1 + $0x208] sm:$0xf]
    %v155 = vld [vmem:[%s1 + $0x20c] sm:$0xf]
    %v156 = vld [vmem:[%s1 + $0x210] sm:$0xf]
    %v157 = vld [vmem:[%s1 + $0x214] sm:$0xf]
    %v158 = vld [vmem:[%s1 + $0x218] sm:$0xf]
    %v159 = vld [vmem:[%s1 + $0x21c] sm:$0xf]
    %v160 = vld [vmem:[%s1 + $0x220] sm:$0xf]
    %v161 = vld [vmem:[%s1 + $0x224] sm:$0xf]
    %v162 = vld [vmem:[%s1 + $0x228] sm:$0xf]
    %v163 = vld [vmem:[%s1 + $0x22c] sm:$0xf]
    %v164 = vld [vmem:[%s1 + $0x230] sm:$0xf]
    %v165 = vld [vmem:[%s1 + $0x234] sm:$0xf]
    %v166 = vld [vmem:[%s1 + $0x238] sm:$0xf]
    %v167 = vld [vmem:[%s1 + $0x23c] sm:$0xf]
    %v168 = vld [vmem:[%s1 + $0x240] sm:$0xf]
    %v169 = vld [vmem:[%s1 + $0x244] sm:$0xf]
    %v170 = vld [vmem:[%s1 + $0x248] sm:$0xf]
    %v171 = vld [vmem:[%s1 + $0x24c] sm:$0xf]
    %v172 = vld [vmem:[%s1 + $0x250] sm:$0xf]
    %v173 = vld [vmem:[%s1 + $0x254] sm:$0xf]
    %v174 = vld [vmem:[%s1 + $0x258] sm:$0xf]
    %v175 = vld [vmem:[%s1 + $0x25c] sm:$0xf]
    %v176 = vld [vmem:[%s1 + $0x260] sm:$0xf]
    %v177 = vld [vmem:[%s1 + $0x264] sm:$0xf]
    %v178 = vld [vmem:[%s1 + $0x268] sm:$0xf]
    %v179 = vld [vmem:[%s1 + $0x26c] sm:$0xf]
    %v180 = vld [vmem:[%s1 + $0x270] sm:$0xf]
    %v181 = vld [vmem:[%s1 + $0x274] sm:$0xf]
    %v182 = vld [vmem:[%s1 + $0x278] sm:$0xf]
    %v183 = vld [vmem:[%s1 + $0x27c] sm:$0xf]
    %v184 = vld [vmem:[%s1 + $0x280] sm:$0xf]
    %v185 = vld [vmem:[%s1 + $0x284] sm:$0xf]
    %v186 = vld [vmem:[%s1 + $0x288] sm:$0xf]
    %v187 = vld [vmem:[%s1 + $0x28c] sm:$0xf]
    %v188 = vld [vmem:[%s1 + $0x290] sm:$0xf]
    %v189 = vld [vmem:[%s1 + $0x294] sm:$0xf]
    %v190 = vld [vmem:[%s1 + $0x298] sm:$0xf]
    %v191 = vld [vmem:[%s1 + $0x29c] sm:$0xf]
    %v192 = vld [vmem:[%s1 + $0x2a0] sm:$0xf]
    %v193 = vld [vmem:[%s1 + $0x2a4] sm:$0xf]
    %v194 = vld [vmem:[%s1 + $0x2a8] sm:$0xf]
    %v195 = vld [vmem:[%s1 + $0x2ac] sm:$0xf]
    %v196 = vld [vmem:[%s1 + $0x2b0] sm:$0xf]
    %v197 = vld [vmem:[%s1 + $0x2b4] sm:$0xf]
    %v198 = vld [vmem:[%s1 + $0x2b8] sm:$0xf]
    %v199 = vld [vmem:[%s1 + $0x2bc] sm:$0xf]
    %v200 = vld [vmem:[%s1 + $0x2c0] sm:$0xf]
    %v201 = vld [vmem:[%s1 + $0x2c4] sm:$0xf]
    %v202 = vld [vmem:[%s1 + $0x2c8] sm:$0xf]
    %v203 = vld [vmem:[%s1 + $0x2cc] sm:$0xf]
    %v204 = vld [vmem:[%s1 + $0x2d0] sm:$0xf]
    %v205 = vld [vmem:[%s1 + $0x2d4] sm:$0xf]
    %v206 = vld [vmem:[%s1 + $0x2d8] sm:$0xf]
    %v207 = vld [vmem:[%s1 + $0x2dc] sm:$0xf]
    %v208 = vld [vmem:[%s1 + $0x2e0] sm:$0xf]
    %v209 = vld [vmem:[%s1 + $0x2e4] sm:$0xf]
    %v210 = vld [vmem:[%s1 + $0x2e8] sm:$0xf]
    %v211 = vld [vmem:[%s1 + $0x2ec] sm:$0xf]
    %v212 = vld [vmem:[%s1 + $0x2f0] sm:$0xf]
    %v213 = vld [vmem:[%s1 + $0x2f4] sm:$0xf]
    %v214 = vld [vmem:[%s1 + $0x2f8] sm:$0xf]
    %v215 = vld [vmem:[%s1 + $0x2fc] sm:$0xf]
    %v216 = vld [vmem:[%s1 + $0x300] sm:$0xf]
    %v217 = vld [vmem:[%s1 + $0x304] sm:$0xf]
    %v218 = vld [vmem:[%s1 + $0x308] sm:$0xf]
    %v219 = vld [vmem:[%s1 + $0x30c] sm:$0xf]
    %v220 = vld [vmem:[%s1 + $0x310] sm:$0xf]
    %v221 = vld [vmem:[%s1 + $0x314] sm:$0xf]
    %v222 = vld [vmem:[%s1 + $0x318] sm:$0xf]
    %v223 = vld [vmem:[%s1 + $0x31c] sm:$0xf]
    %v224 = vld [vmem:[%s1 + $0x320] sm:$0xf]
    %v225 = vld [vmem:[%s1 + $0x324] sm:$0xf]
    %v226 = vld [vmem:[%s1 + $0x328] sm:$0xf]
    %v227 = vld [vmem:[%s1 + $0x32c] sm:$0xf]
    %v228 = vld [vmem:[%s1 + $0x330] sm:$0xf]
    %v229 = vld [vmem:[%s1 + $0x334] sm:$0xf]
    %v230 = vld [vmem:[%s1 + $0x338] sm:$0xf]
    %v231 = vld [vmem:[%s1 + $0x33c] sm:$0xf]
    %v232 = vld [vmem:[%s1 + $0x340] sm:$0xf]
    %v233 = vld [vmem:[%s1 + $0x344] sm:$0xf]
    %v234 = vld [vmem:[%s1 + $0x348] sm:$0xf]
    %v235 = vld [vmem:[%s1 + $0x34c] sm:$0xf]
    %v236 = vld [vmem:[%s1 + $0x350] sm:$0xf]
    %v237 = vld [vmem:[%s1 + $0x354] sm:$0xf]
    %v238 = vld [vmem:[%s1 + $0x358] sm:$0xf]
    %v239 = vld [vmem:[%s1 + $0x35c] sm:$0xf]
    %v240 = vld [vmem:[%s1 + $0x360] sm:$0xf]
    %v241 = vld [vmem:[%s1 + $0x364] sm:$0xf]
    %v242 = vld [vmem:[%s1 + $0x368] sm:$0xf]
    %v243 = vld [vmem:[%s1 + $0x36c] sm:$0xf]
    %v244 = vld [vmem:[%s1 + $0x370] sm:$0xf]
    %v245 = vld [vmem:[%s1 + $0x374] sm:$0xf]
    %v246 = vld [vmem:[%s1 + $0x378] sm:$0xf]
    %v247 = vld [vmem:[%s1 + $0x37c] sm:$0xf]
    %v248 = vld [vmem:[%s1 + $0x380] sm:$0xf]
    %v249 = vld [vmem:[%s1 + $0x384] sm:$0xf]
    %v250 = vld [vmem:[%s1 + $0x388] sm:$0xf]
    %v251 = vld [vmem:[%s1 + $0x38c] sm:$0xf]
    %v252 = vld [vmem:[%s1 + $0x390] sm:$0xf]
    %v253 = vld [vmem:[%s1 + $0x394] sm:$0xf]
    %v254 = vld [vmem:[%s1 + $0x398] sm:$0xf]
    %v255 = vld [vmem:[%s1 + $0x39c] sm:$0xf]
    %v256 = vld [vmem:[%s1 + $0x3a0] sm:$0xf]
    %v257 = vld [vmem:[%s1 + $0x3a4] sm:$0xf]
    %v258 = vld [vmem:[%s1 + $0x3a8] sm:$0xf]
    %v259 = vld [vmem:[%s1 + $0x3ac] sm:$0xf]
    %v260 = vld [vmem:[%s1 + $0x3b0] sm:$0xf]
    %v261 = vld [vmem:[%s1 + $0x3b4] sm:$0xf]
    %v262 = vld [vmem:[%s1 + $0x3b8] sm:$0xf]
    %v263 = vld [vmem:[%s1 + $0x3bc] sm:$0xf]
    %v264 = vld [vmem:[%s1 + $0x3c0] sm:$0xf]
    %v265 = vld [vmem:[%s1 + $0x3c4] sm:$0xf]
    %v266 = vld [vmem:[%s1 + $0x3c8] sm:$0xf]
    %v267 = vld [vmem:[%s1 + $0x3cc] sm:$0xf]
    %v268 = vld [vmem:[%s1 + $0x3d0] sm:$0xf]
    %v269 = vld [vmem:[%s1 + $0x3d4] sm:$0xf]
    %v270 = vld [vmem:[%s1 + $0x3d8] sm:$0xf]
    %v271 = vld [vmem:[%s1 + $0x3dc] sm:$0xf]
    %v272 = vld [vmem:[%s1 + $0x3e0] sm:$0xf]
    %v273 = vld [vmem:[%s1 + $0x3e4] sm:$0xf]
    %v274 = vld [vmem:[%s1 + $0x3e8] sm:$0xf]
    %v275 = vld [vmem:[%s1 + $0x3ec] sm:$0xf]
    %v276 = vld [vmem:[%s1 + $0x3f0] sm:$0xf]
    %v277 = vld [vmem:[%s1 + $0x3f4] sm:$0xf]
    %v278 = vld [vmem:[%s1 + $0x3f8] sm:$0xf]
    %v279 = vld [vmem:[%s1 + $0x3fc] sm:$0xf]
    %v280 = vld [vmem:[%s2] sm:$0x1]
    %v282 = vlaneseq
    %v283 = vshrl.u32 %v282, 7
    %v284 = vsub.s32 0, %v283
    %v285 = vrot.slane %v280, %v284
    %v295 = vunpack.c.l.b16 %v16
    %v296 = vunpack.c.h.b16 %v16
    %v297 = vunpack.c.l.b16 %v17
    %v298 = vunpack.c.h.b16 %v17
    %v299 = vunpack.c.l.b16 %v18
    %v300 = vunpack.c.h.b16 %v18
    %v301 = vunpack.c.l.b16 %v19
    %v302 = vunpack.c.h.b16 %v19
    %v303 = vunpack.c.l.b16 %v20
    %v304 = vunpack.c.h.b16 %v20
    %v305 = vunpack.c.l.b16 %v21
    %v306 = vunpack.c.h.b16 %v21
    %v307 = vunpack.c.l.b16 %v22
    %v308 = vunpack.c.h.b16 %v22
    %v309 = vunpack.c.l.b16 %v23
    %v310 = vunpack.c.h.b16 %v23
    %v311 = vpack.c.b16 %v295, %v295
    %v312 = vpack.c.b16 %v296, %v296
    %v313 = vpack.c.b16 %v297, %v297
    %v314 = vpack.c.b16 %v298, %v298
    %v315 = vpack.c.b16 %v299, %v299
    %v316 = vpack.c.b16 %v300, %v300
    %v317 = vpack.c.b16 %v301, %v301
    %v318 = vpack.c.b16 %v302, %v302
    %v319 = vpack.c.b16 %v303, %v303
    %v320 = vpack.c.b16 %v304, %v304
    %v321 = vpack.c.b16 %v305, %v305
    %v322 = vpack.c.b16 %v306, %v306
    %v323 = vpack.c.b16 %v307, %v307
    %v324 = vpack.c.b16 %v308, %v308
    %v325 = vpack.c.b16 %v309, %v309
    %v326 = vpack.c.b16 %v310, %v310
    %v599 = vunpack.c.l.b16 %v24
    %v600 = vunpack.c.l.b16 %v25
    %v601 = vunpack.c.l.b16 %v26
    %v602 = vunpack.c.l.b16 %v27
    %v603 = vunpack.c.l.b16 %v28
    %v604 = vunpack.c.l.b16 %v29
    %v605 = vunpack.c.l.b16 %v30
    %v606 = vunpack.c.l.b16 %v31
    %v607 = vunpack.c.l.b16 %v32
    %v608 = vunpack.c.l.b16 %v33
    %v609 = vunpack.c.l.b16 %v34
    %v610 = vunpack.c.l.b16 %v35
    %v611 = vunpack.c.l.b16 %v36
    %v612 = vunpack.c.l.b16 %v37
    %v613 = vunpack.c.l.b16 %v38
    %v614 = vunpack.c.l.b16 %v39
    %v615 = vunpack.c.l.b16 %v40
    %v616 = vunpack.c.l.b16 %v41
    %v617 = vunpack.c.l.b16 %v42
    %v618 = vunpack.c.l.b16 %v43
    %v619 = vunpack.c.l.b16 %v44
    %v620 = vunpack.c.l.b16 %v45
    %v621 = vunpack.c.l.b16 %v46
    %v622 = vunpack.c.l.b16 %v47
    %v623 = vunpack.c.l.b16 %v48
    %v624 = vunpack.c.l.b16 %v49
    %v625 = vunpack.c.l.b16 %v50
    %v626 = vunpack.c.l.b16 %v51
    %v627 = vunpack.c.l.b16 %v52
    %v628 = vunpack.c.l.b16 %v53
    %v629 = vunpack.c.l.b16 %v54
    %v630 = vunpack.c.l.b16 %v55
    %v631 = vunpack.c.l.b16 %v56
    %v632 = vunpack.c.l.b16 %v57
    %v633 = vunpack.c.l.b16 %v58
    %v634 = vunpack.c.l.b16 %v59
    %v635 = vunpack.c.l.b16 %v60
    %v636 = vunpack.c.l.b16 %v61
    %v637 = vunpack.c.l.b16 %v62
    %v638 = vunpack.c.l.b16 %v63
    %v639 = vunpack.c.l.b16 %v64
    %v640 = vunpack.c.l.b16 %v65
    %v641 = vunpack.c.l.b16 %v66
    %v642 = vunpack.c.l.b16 %v67
    %v643 = vunpack.c.l.b16 %v68
    %v644 = vunpack.c.l.b16 %v69
    %v645 = vunpack.c.l.b16 %v70
    %v646 = vunpack.c.l.b16 %v71
    %v647 = vunpack.c.l.b16 %v72
    %v648 = vunpack.c.l.b16 %v73
    %v649 = vunpack.c.l.b16 %v74
    %v650 = vunpack.c.l.b16 %v75
    %v651 = vunpack.c.l.b16 %v76
    %v652 = vunpack.c.l.b16 %v77
    %v653 = vunpack.c.l.b16 %v78
    %v654 = vunpack.c.l.b16 %v79
    %v655 = vunpack.c.l.b16 %v80
    %v656 = vunpack.c.l.b16 %v81
    %v657 = vunpack.c.l.b16 %v82
    %v658 = vunpack.c.l.b16 %v83
    %v659 = vunpack.c.l.b16 %v84
    %v660 = vunpack.c.l.b16 %v85
    %v661 = vunpack.c.l.b16 %v86
    %v662 = vunpack.c.l.b16 %v87
    %v663 = vunpack.c.l.b16 %v88
    %v664 = vunpack.c.l.b16 %v89
    %v665 = vunpack.c.l.b16 %v90
    %v666 = vunpack.c.l.b16 %v91
    %v667 = vunpack.c.l.b16 %v92
    %v668 = vunpack.c.l.b16 %v93
    %v669 = vunpack.c.l.b16 %v94
    %v670 = vunpack.c.l.b16 %v95
    %v671 = vunpack.c.l.b16 %v96
    %v672 = vunpack.c.l.b16 %v97
    %v673 = vunpack.c.l.b16 %v98
    %v674 = vunpack.c.l.b16 %v99
    %v675 = vunpack.c.l.b16 %v100
    %v676 = vunpack.c.l.b16 %v101
    %v677 = vunpack.c.l.b16 %v102
    %v678 = vunpack.c.l.b16 %v103
    %v679 = vunpack.c.l.b16 %v104
    %v680 = vunpack.c.l.b16 %v105
    %v681 = vunpack.c.l.b16 %v106
    %v682 = vunpack.c.l.b16 %v107
    %v683 = vunpack.c.l.b16 %v108
    %v684 = vunpack.c.l.b16 %v109
    %v685 = vunpack.c.l.b16 %v110
    %v686 = vunpack.c.l.b16 %v111
    %v687 = vunpack.c.l.b16 %v112
    %v688 = vunpack.c.l.b16 %v113
    %v689 = vunpack.c.l.b16 %v114
    %v690 = vunpack.c.l.b16 %v115
    %v691 = vunpack.c.l.b16 %v116
    %v692 = vunpack.c.l.b16 %v117
    %v693 = vunpack.c.l.b16 %v118
    %v694 = vunpack.c.l.b16 %v119
    %v695 = vunpack.c.l.b16 %v120
    %v696 = vunpack.c.l.b16 %v121
    %v697 = vunpack.c.l.b16 %v122
    %v698 = vunpack.c.l.b16 %v123
    %v699 = vunpack.c.l.b16 %v124
    %v700 = vunpack.c.l.b16 %v125
    %v701 = vunpack.c.l.b16 %v126
    %v702 = vunpack.c.l.b16 %v127
    %v703 = vunpack.c.l.b16 %v128
    %v704 = vunpack.c.l.b16 %v129
    %v705 = vunpack.c.l.b16 %v130
    %v706 = vunpack.c.l.b16 %v131
    %v707 = vunpack.c.l.b16 %v132
    %v708 = vunpack.c.l.b16 %v133
    %v709 = vunpack.c.l.b16 %v134
    %v710 = vunpack.c.l.b16 %v135
    %v711 = vunpack.c.l.b16 %v136
    %v712 = vunpack.c.l.b16 %v137
    %v713 = vunpack.c.l.b16 %v138
    %v714 = vunpack.c.l.b16 %v139
    %v715 = vunpack.c.l.b16 %v140
    %v716 = vunpack.c.l.b16 %v141
    %v717 = vunpack.c.l.b16 %v142
    %v718 = vunpack.c.l.b16 %v143
    %v719 = vunpack.c.l.b16 %v144
    %v720 = vunpack.c.l.b16 %v145
    %v721 = vunpack.c.l.b16 %v146
    %v722 = vunpack.c.l.b16 %v147
    %v723 = vunpack.c.l.b16 %v148
    %v724 = vunpack.c.l.b16 %v149
    %v725 = vunpack.c.l.b16 %v150
    %v726 = vunpack.c.l.b16 %v151
    %v727 = vunpack.c.l.b16 %v152
    %v728 = vunpack.c.l.b16 %v153
    %v729 = vunpack.c.l.b16 %v154
    %v730 = vunpack.c.l.b16 %v155
    %v731 = vunpack.c.l.b16 %v156
    %v732 = vunpack.c.l.b16 %v157
    %v733 = vunpack.c.l.b16 %v158
    %v734 = vunpack.c.l.b16 %v159
    %v735 = vunpack.c.l.b16 %v160
    %v736 = vunpack.c.l.b16 %v161
    %v737 = vunpack.c.l.b16 %v162
    %v738 = vunpack.c.l.b16 %v163
    %v739 = vunpack.c.l.b16 %v164
    %v740 = vunpack.c.l.b16 %v165
    %v741 = vunpack.c.l.b16 %v166
    %v742 = vunpack.c.l.b16 %v167
    %v743 = vunpack.c.l.b16 %v168
    %v744 = vunpack.c.l.b16 %v169
    %v745 = vunpack.c.l.b16 %v170
    %v746 = vunpack.c.l.b16 %v171
    %v747 = vunpack.c.l.b16 %v172
    %v748 = vunpack.c.l.b16 %v173
    %v749 = vunpack.c.l.b16 %v174
    %v750 = vunpack.c.l.b16 %v175
    %v751 = vunpack.c.l.b16 %v176
    %v752 = vunpack.c.l.b16 %v177
    %v753 = vunpack.c.l.b16 %v178
    %v754 = vunpack.c.l.b16 %v179
    %v755 = vunpack.c.l.b16 %v180
    %v756 = vunpack.c.l.b16 %v181
    %v757 = vunpack.c.l.b16 %v182
    %v758 = vunpack.c.l.b16 %v183
    %v759 = vunpack.c.l.b16 %v184
    %v760 = vunpack.c.l.b16 %v185
    %v761 = vunpack.c.l.b16 %v186
    %v762 = vunpack.c.l.b16 %v187
    %v763 = vunpack.c.l.b16 %v188
    %v764 = vunpack.c.l.b16 %v189
    %v765 = vunpack.c.l.b16 %v190
    %v766 = vunpack.c.l.b16 %v191
    %v767 = vunpack.c.l.b16 %v192
    %v768 = vunpack.c.l.b16 %v193
    %v769 = vunpack.c.l.b16 %v194
    %v770 = vunpack.c.l.b16 %v195
    %v771 = vunpack.c.l.b16 %v196
    %v772 = vunpack.c.l.b16 %v197
    %v773 = vunpack.c.l.b16 %v198
    %v774 = vunpack.c.l.b16 %v199
    %v775 = vunpack.c.l.b16 %v200
    %v776 = vunpack.c.l.b16 %v201
    %v777 = vunpack.c.l.b16 %v202
    %v778 = vunpack.c.l.b16 %v203
    %v779 = vunpack.c.l.b16 %v204
    %v780 = vunpack.c.l.b16 %v205
    %v781 = vunpack.c.l.b16 %v206
    %v782 = vunpack.c.l.b16 %v207
    %v783 = vunpack.c.l.b16 %v208
    %v784 = vunpack.c.l.b16 %v209
    %v785 = vunpack.c.l.b16 %v210
    %v786 = vunpack.c.l.b16 %v211
    %v787 = vunpack.c.l.b16 %v212
    %v788 = vunpack.c.l.b16 %v213
    %v789 = vunpack.c.l.b16 %v214
    %v790 = vunpack.c.l.b16 %v215
    %v791 = vunpack.c.l.b16 %v216
    %v792 = vunpack.c.l.b16 %v217
    %v793 = vunpack.c.l.b16 %v218
    %v794 = vunpack.c.l.b16 %v219
    %v795 = vunpack.c.l.b16 %v220
    %v796 = vunpack.c.l.b16 %v221
    %v797 = vunpack.c.l.b16 %v222
    %v798 = vunpack.c.l.b16 %v223
    %v799 = vunpack.c.l.b16 %v224
    %v800 = vunpack.c.l.b16 %v225
    %v801 = vunpack.c.l.b16 %v226
    %v802 = vunpack.c.l.b16 %v227
    %v803 = vunpack.c.l.b16 %v228
    %v804 = vunpack.c.l.b16 %v229
    %v805 = vunpack.c.l.b16 %v230
    %v806 = vunpack.c.l.b16 %v231
    %v807 = vunpack.c.l.b16 %v232
    %v808 = vunpack.c.l.b16 %v233
    %v809 = vunpack.c.l.b16 %v234
    %v810 = vunpack.c.l.b16 %v235
    %v811 = vunpack.c.l.b16 %v236
    %v812 = vunpack.c.l.b16 %v237
    %v813 = vunpack.c.l.b16 %v238
    %v814 = vunpack.c.l.b16 %v239
    %v815 = vunpack.c.l.b16 %v240
    %v816 = vunpack.c.l.b16 %v241
    %v817 = vunpack.c.l.b16 %v242
    %v818 = vunpack.c.l.b16 %v243
    %v819 = vunpack.c.l.b16 %v244
    %v820 = vunpack.c.l.b16 %v245
    %v821 = vunpack.c.l.b16 %v246
    %v822 = vunpack.c.l.b16 %v247
    %v823 = vunpack.c.l.b16 %v248
    %v824 = vunpack.c.l.b16 %v249
    %v825 = vunpack.c.l.b16 %v250
    %v826 = vunpack.c.l.b16 %v251
    %v827 = vunpack.c.l.b16 %v252
    %v828 = vunpack.c.l.b16 %v253
    %v829 = vunpack.c.l.b16 %v254
    %v830 = vunpack.c.l.b16 %v255
    %v831 = vunpack.c.l.b16 %v256
    %v832 = vunpack.c.l.b16 %v257
    %v833 = vunpack.c.l.b16 %v258
    %v834 = vunpack.c.l.b16 %v259
    %v835 = vunpack.c.l.b16 %v260
    %v836 = vunpack.c.l.b16 %v261
    %v837 = vunpack.c.l.b16 %v262
    %v838 = vunpack.c.l.b16 %v263
    %v839 = vunpack.c.l.b16 %v264
    %v840 = vunpack.c.l.b16 %v265
    %v841 = vunpack.c.l.b16 %v266
    %v842 = vunpack.c.l.b16 %v267
    %v843 = vunpack.c.l.b16 %v268
    %v844 = vunpack.c.l.b16 %v269
    %v845 = vunpack.c.l.b16 %v270
    %v846 = vunpack.c.l.b16 %v271
    %v847 = vunpack.c.l.b16 %v272
    %v848 = vunpack.c.l.b16 %v273
    %v849 = vunpack.c.l.b16 %v274
    %v850 = vunpack.c.l.b16 %v275
    %v851 = vunpack.c.l.b16 %v276
    %v852 = vunpack.c.l.b16 %v277
    %v853 = vunpack.c.l.b16 %v278
    %v854 = vunpack.c.l.b16 %v279
    %v855 = vpack.c.b16 %v600, %v599
    %v856 = vpack.c.b16 %v602, %v601
    %v857 = vpack.c.b16 %v604, %v603
    %v858 = vpack.c.b16 %v606, %v605
    %v859 = vpack.c.b16 %v608, %v607
    %v860 = vpack.c.b16 %v610, %v609
    %v861 = vpack.c.b16 %v612, %v611
    %v862 = vpack.c.b16 %v614, %v613
    %v863 = vpack.c.b16 %v616, %v615
    %v864 = vpack.c.b16 %v618, %v617
    %v865 = vpack.c.b16 %v620, %v619
    %v866 = vpack.c.b16 %v622, %v621
    %v867 = vpack.c.b16 %v624, %v623
    %v868 = vpack.c.b16 %v626, %v625
    %v869 = vpack.c.b16 %v628, %v627
    %v870 = vpack.c.b16 %v630, %v629
    %v871 = vpack.c.b16 %v632, %v631
    %v872 = vpack.c.b16 %v634, %v633
    %v873 = vpack.c.b16 %v636, %v635
    %v874 = vpack.c.b16 %v638, %v637
    %v875 = vpack.c.b16 %v640, %v639
    %v876 = vpack.c.b16 %v642, %v641
    %v877 = vpack.c.b16 %v644, %v643
    %v878 = vpack.c.b16 %v646, %v645
    %v879 = vpack.c.b16 %v648, %v647
    %v880 = vpack.c.b16 %v650, %v649
    %v881 = vpack.c.b16 %v652, %v651
    %v882 = vpack.c.b16 %v654, %v653
    %v883 = vpack.c.b16 %v656, %v655
    %v884 = vpack.c.b16 %v658, %v657
    %v885 = vpack.c.b16 %v660, %v659
    %v886 = vpack.c.b16 %v662, %v661
    %v887 = vpack.c.b16 %v664, %v663
    %v888 = vpack.c.b16 %v666, %v665
    %v889 = vpack.c.b16 %v668, %v667
    %v890 = vpack.c.b16 %v670, %v669
    %v891 = vpack.c.b16 %v672, %v671
    %v892 = vpack.c.b16 %v674, %v673
    %v893 = vpack.c.b16 %v676, %v675
    %v894 = vpack.c.b16 %v678, %v677
    %v895 = vpack.c.b16 %v680, %v679
    %v896 = vpack.c.b16 %v682, %v681
    %v897 = vpack.c.b16 %v684, %v683
    %v898 = vpack.c.b16 %v686, %v685
    %v899 = vpack.c.b16 %v688, %v687
    %v900 = vpack.c.b16 %v690, %v689
    %v901 = vpack.c.b16 %v692, %v691
    %v902 = vpack.c.b16 %v694, %v693
    %v903 = vpack.c.b16 %v696, %v695
    %v904 = vpack.c.b16 %v698, %v697
    %v905 = vpack.c.b16 %v700, %v699
    %v906 = vpack.c.b16 %v702, %v701
    %v907 = vpack.c.b16 %v704, %v703
    %v908 = vpack.c.b16 %v706, %v705
    %v909 = vpack.c.b16 %v708, %v707
    %v910 = vpack.c.b16 %v710, %v709
    %v911 = vpack.c.b16 %v712, %v711
    %v912 = vpack.c.b16 %v714, %v713
    %v913 = vpack.c.b16 %v716, %v715
    %v914 = vpack.c.b16 %v718, %v717
    %v915 = vpack.c.b16 %v720, %v719
    %v916 = vpack.c.b16 %v722, %v721
    %v917 = vpack.c.b16 %v724, %v723
    %v918 = vpack.c.b16 %v726, %v725
    %v919 = vpack.c.b16 %v728, %v727
    %v920 = vpack.c.b16 %v730, %v729
    %v921 = vpack.c.b16 %v732, %v731
    %v922 = vpack.c.b16 %v734, %v733
    %v923 = vpack.c.b16 %v736, %v735
    %v924 = vpack.c.b16 %v738, %v737
    %v925 = vpack.c.b16 %v740, %v739
    %v926 = vpack.c.b16 %v742, %v741
    %v927 = vpack.c.b16 %v744, %v743
    %v928 = vpack.c.b16 %v746, %v745
    %v929 = vpack.c.b16 %v748, %v747
    %v930 = vpack.c.b16 %v750, %v749
    %v931 = vpack.c.b16 %v752, %v751
    %v932 = vpack.c.b16 %v754, %v753
    %v933 = vpack.c.b16 %v756, %v755
    %v934 = vpack.c.b16 %v758, %v757
    %v935 = vpack.c.b16 %v760, %v759
    %v936 = vpack.c.b16 %v762, %v761
    %v937 = vpack.c.b16 %v764, %v763
    %v938 = vpack.c.b16 %v766, %v765
    %v939 = vpack.c.b16 %v768, %v767
    %v940 = vpack.c.b16 %v770, %v769
    %v941 = vpack.c.b16 %v772, %v771
    %v942 = vpack.c.b16 %v774, %v773
    %v943 = vpack.c.b16 %v776, %v775
    %v944 = vpack.c.b16 %v778, %v777
    %v945 = vpack.c.b16 %v780, %v779
    %v946 = vpack.c.b16 %v782, %v781
    %v947 = vpack.c.b16 %v784, %v783
    %v948 = vpack.c.b16 %v786, %v785
    %v949 = vpack.c.b16 %v788, %v787
    %v950 = vpack.c.b16 %v790, %v789
    %v951 = vpack.c.b16 %v792, %v791
    %v952 = vpack.c.b16 %v794, %v793
    %v953 = vpack.c.b16 %v796, %v795
    %v954 = vpack.c.b16 %v798, %v797
    %v955 = vpack.c.b16 %v800, %v799
    %v956 = vpack.c.b16 %v802, %v801
    %v957 = vpack.c.b16 %v804, %v803
    %v958 = vpack.c.b16 %v806, %v805
    %v959 = vpack.c.b16 %v808, %v807
    %v960 = vpack.c.b16 %v810, %v809
    %v961 = vpack.c.b16 %v812, %v811
    %v962 = vpack.c.b16 %v814, %v813
    %v963 = vpack.c.b16 %v816, %v815
    %v964 = vpack.c.b16 %v818, %v817
    %v965 = vpack.c.b16 %v820, %v819
    %v966 = vpack.c.b16 %v822, %v821
    %v967 = vpack.c.b16 %v824, %v823
    %v968 = vpack.c.b16 %v826, %v825
    %v969 = vpack.c.b16 %v828, %v827
    %v970 = vpack.c.b16 %v830, %v829
    %v971 = vpack.c.b16 %v832, %v831
    %v972 = vpack.c.b16 %v834, %v833
    %v973 = vpack.c.b16 %v836, %v835
    %v974 = vpack.c.b16 %v838, %v837
    %v975 = vpack.c.b16 %v840, %v839
    %v976 = vpack.c.b16 %v842, %v841
    %v977 = vpack.c.b16 %v844, %v843
    %v978 = vpack.c.b16 %v846, %v845
    %v979 = vpack.c.b16 %v848, %v847
    %v980 = vpack.c.b16 %v850, %v849
    %v981 = vpack.c.b16 %v852, %v851
    %v982 = vpack.c.b16 %v854, %v853
    %1111 = vmatprep.subr.bf16.mxu0 0
    %1112 = vmatpush1.bf16.msra.mxu0 %v862
    %1113 = vmatprep.subr.bf16.mxu0 0
    %1114 = vmatpush1.bf16.msra.mxu0 %v861
    %1115 = vmatprep.subr.bf16.mxu0 0
    %1116 = vmatpush1.bf16.msra.mxu0 %v860
    %1117 = vmatprep.subr.bf16.mxu0 0
    %1118 = vmatpush1.bf16.msra.mxu0 %v859
    %1119 = vmatprep.subr.bf16.mxu0 0
    %1120 = vmatpush1.bf16.msra.mxu0 %v858
    %1121 = vmatprep.subr.bf16.mxu0 0
    %1122 = vmatpush1.bf16.msra.mxu0 %v857
    %1123 = vmatprep.subr.bf16.mxu0 0
    %1124 = vmatpush1.bf16.msra.mxu0 %v856
    %1125 = vmatprep.subr.bf16.mxu0 0
    %1126 = vmatpush1.bf16.msra.mxu0 %v855
    %1127 = vmatprep.subr.bf16.mxu0 0
    %1128 = vmatpush2.bf16.msra.mxu0 %v870
    %1129 = vmatprep.subr.bf16.mxu0 0
    %1130 = vmatpush2.bf16.msra.mxu0 %v869
    %1131 = vmatprep.subr.bf16.mxu0 0
    %1132 = vmatpush2.bf16.msra.mxu0 %v868
    %1133 = vmatprep.subr.bf16.mxu0 0
    %1134 = vmatpush2.bf16.msra.mxu0 %v867
    %1135 = vmatprep.subr.bf16.mxu0 0
    %1136 = vmatpush2.bf16.msra.mxu0 %v866
    %1137 = vmatprep.subr.bf16.mxu0 0
    %1138 = vmatpush2.bf16.msra.mxu0 %v865
    %1139 = vmatprep.subr.bf16.mxu0 0
    %1140 = vmatpush2.bf16.msra.mxu0 %v864
    %1141 = vmatprep.subr.bf16.mxu0 0
    %1142 = vmatpush2.bf16.msra.mxu0 %v863
    %1143 = vmatprep.mubr.bf16.mxu0 %v312
    %1144 = vmatmul.mubr.bf16.gmra.mxu0 %v311
    %v1145 = vpop.f32.mrf.mxu0
    %v1146 = vadd.f32 %v285, %v1145
    %v1147 = vpop.f32.mrf.mxu0
    %v1148 = vpop.f32.mrf.mxu0
    %v1149 = vpop.f32.mrf.mxu0
    %1150 = vdwg.mxu0
    %1151 = vmatprep.subr.bf16.mxu0 0
    %1152 = vmatpush1.bf16.msra.mxu0 %v878
    %1153 = vmatprep.subr.bf16.mxu0 0
    %1154 = vmatpush1.bf16.msra.mxu0 %v877
    %1155 = vmatprep.subr.bf16.mxu0 0
    %1156 = vmatpush1.bf16.msra.mxu0 %v876
    %1157 = vmatprep.subr.bf16.mxu0 0
    %1158 = vmatpush1.bf16.msra.mxu0 %v875
    %1159 = vmatprep.subr.bf16.mxu0 0
    %1160 = vmatpush1.bf16.msra.mxu0 %v874
    %1161 = vmatprep.subr.bf16.mxu0 0
    %1162 = vmatpush1.bf16.msra.mxu0 %v873
    %1163 = vmatprep.subr.bf16.mxu0 0
    %1164 = vmatpush1.bf16.msra.mxu0 %v872
    %1165 = vmatprep.subr.bf16.mxu0 0
    %1166 = vmatpush1.bf16.msra.mxu0 %v871
    %1167 = vmatprep.subr.bf16.mxu0 0
    %1168 = vmatpush2.bf16.msra.mxu0 %v886
    %1169 = vmatprep.subr.bf16.mxu0 0
    %1170 = vmatpush2.bf16.msra.mxu0 %v885
    %1171 = vmatprep.subr.bf16.mxu0 0
    %1172 = vmatpush2.bf16.msra.mxu0 %v884
    %1173 = vmatprep.subr.bf16.mxu0 0
    %1174 = vmatpush2.bf16.msra.mxu0 %v883
    %1175 = vmatprep.subr.bf16.mxu0 0
    %1176 = vmatpush2.bf16.msra.mxu0 %v882
    %1177 = vmatprep.subr.bf16.mxu0 0
    %1178 = vmatpush2.bf16.msra.mxu0 %v881
    %1179 = vmatprep.subr.bf16.mxu0 0
    %1180 = vmatpush2.bf16.msra.mxu0 %v880
    %1181 = vmatprep.subr.bf16.mxu0 0
    %1182 = vmatpush2.bf16.msra.mxu0 %v879
    %1183 = vmatprep.mubr.bf16.mxu0 %v314
    %1184 = vmatmul.mubr.bf16.gmra.mxu0 %v313
    %v1185 = vpop.f32.mrf.mxu0
    %v1186 = vadd.f32 %v1146, %v1185
    %v1187 = vpop.f32.mrf.mxu0
    %v1188 = vpop.f32.mrf.mxu0
    %v1189 = vpop.f32.mrf.mxu0
    %1190 = vdwg.mxu0
    %1191 = vmatprep.subr.bf16.mxu0 0
    %1192 = vmatpush1.bf16.msra.mxu0 %v894
    %1193 = vmatprep.subr.bf16.mxu0 0
    %1194 = vmatpush1.bf16.msra.mxu0 %v893
    %1195 = vmatprep.subr.bf16.mxu0 0
    %1196 = vmatpush1.bf16.msra.mxu0 %v892
    %1197 = vmatprep.subr.bf16.mxu0 0
    %1198 = vmatpush1.bf16.msra.mxu0 %v891
    %1199 = vmatprep.subr.bf16.mxu0 0
    %1200 = vmatpush1.bf16.msra.mxu0 %v890
    %1201 = vmatprep.subr.bf16.mxu0 0
    %1202 = vmatpush1.bf16.msra.mxu0 %v889
    %1203 = vmatprep.subr.bf16.mxu0 0
    %1204 = vmatpush1.bf16.msra.mxu0 %v888
    %1205 = vmatprep.subr.bf16.mxu0 0
    %1206 = vmatpush1.bf16.msra.mxu0 %v887
    %1207 = vmatprep.subr.bf16.mxu0 0
    %1208 = vmatpush2.bf16.msra.mxu0 %v902
    %1209 = vmatprep.subr.bf16.mxu0 0
    %1210 = vmatpush2.bf16.msra.mxu0 %v901
    %1211 = vmatprep.subr.bf16.mxu0 0
    %1212 = vmatpush2.bf16.msra.mxu0 %v900
    %1213 = vmatprep.subr.bf16.mxu0 0
    %1214 = vmatpush2.bf16.msra.mxu0 %v899
    %1215 = vmatprep.subr.bf16.mxu0 0
    %1216 = vmatpush2.bf16.msra.mxu0 %v898
    %1217 = vmatprep.subr.bf16.mxu0 0
    %1218 = vmatpush2.bf16.msra.mxu0 %v897
    %1219 = vmatprep.subr.bf16.mxu0 0
    %1220 = vmatpush2.bf16.msra.mxu0 %v896
    %1221 = vmatprep.subr.bf16.mxu0 0
    %1222 = vmatpush2.bf16.msra.mxu0 %v895
    %1223 = vmatprep.mubr.bf16.mxu0 %v316
    %1224 = vmatmul.mubr.bf16.gmra.mxu0 %v315
    %v1225 = vpop.f32.mrf.mxu0
    %v1226 = vadd.f32 %v1186, %v1225
    %v1227 = vpop.f32.mrf.mxu0
    %v1228 = vpop.f32.mrf.mxu0
    %v1229 = vpop.f32.mrf.mxu0
    %1230 = vdwg.mxu0
    %1231 = vmatprep.subr.bf16.mxu0 0
    %1232 = vmatpush1.bf16.msra.mxu0 %v910
    %1233 = vmatprep.subr.bf16.mxu0 0
    %1234 = vmatpush1.bf16.msra.mxu0 %v909
    %1235 = vmatprep.subr.bf16.mxu0 0
    %1236 = vmatpush1.bf16.msra.mxu0 %v908
    %1237 = vmatprep.subr.bf16.mxu0 0
    %1238 = vmatpush1.bf16.msra.mxu0 %v907
    %1239 = vmatprep.subr.bf16.mxu0 0
    %1240 = vmatpush1.bf16.msra.mxu0 %v906
    %1241 = vmatprep.subr.bf16.mxu0 0
    %1242 = vmatpush1.bf16.msra.mxu0 %v905
    %1243 = vmatprep.subr.bf16.mxu0 0
    %1244 = vmatpush1.bf16.msra.mxu0 %v904
    %1245 = vmatprep.subr.bf16.mxu0 0
    %1246 = vmatpush1.bf16.msra.mxu0 %v903
    %1247 = vmatprep.subr.bf16.mxu0 0
    %1248 = vmatpush2.bf16.msra.mxu0 %v918
    %1249 = vmatprep.subr.bf16.mxu0 0
    %1250 = vmatpush2.bf16.msra.mxu0 %v917
    %1251 = vmatprep.subr.bf16.mxu0 0
    %1252 = vmatpush2.bf16.msra.mxu0 %v916
    %1253 = vmatprep.subr.bf16.mxu0 0
    %1254 = vmatpush2.bf16.msra.mxu0 %v915
    %1255 = vmatprep.subr.bf16.mxu0 0
    %1256 = vmatpush2.bf16.msra.mxu0 %v914
    %1257 = vmatprep.subr.bf16.mxu0 0
    %1258 = vmatpush2.bf16.msra.mxu0 %v913
    %1259 = vmatprep.subr.bf16.mxu0 0
    %1260 = vmatpush2.bf16.msra.mxu0 %v912
    %1261 = vmatprep.subr.bf16.mxu0 0
    %1262 = vmatpush2.bf16.msra.mxu0 %v911
    %1263 = vmatprep.mubr.bf16.mxu0 %v318
    %1264 = vmatmul.mubr.bf16.gmra.mxu0 %v317
    %v1265 = vpop.f32.mrf.mxu0
    %v1266 = vadd.f32 %v1226, %v1265
    %v1267 = vpop.f32.mrf.mxu0
    %v1268 = vpop.f32.mrf.mxu0
    %v1269 = vpop.f32.mrf.mxu0
    %1270 = vdwg.mxu0
    %1271 = vmatprep.subr.bf16.mxu0 0
    %1272 = vmatpush1.bf16.msra.mxu0 %v926
    %1273 = vmatprep.subr.bf16.mxu0 0
    %1274 = vmatpush1.bf16.msra.mxu0 %v925
    %1275 = vmatprep.subr.bf16.mxu0 0
    %1276 = vmatpush1.bf16.msra.mxu0 %v924
    %1277 = vmatprep.subr.bf16.mxu0 0
    %1278 = vmatpush1.bf16.msra.mxu0 %v923
    %1279 = vmatprep.subr.bf16.mxu0 0
    %1280 = vmatpush1.bf16.msra.mxu0 %v922
    %1281 = vmatprep.subr.bf16.mxu0 0
    %1282 = vmatpush1.bf16.msra.mxu0 %v921
    %1283 = vmatprep.subr.bf16.mxu0 0
    %1284 = vmatpush1.bf16.msra.mxu0 %v920
    %1285 = vmatprep.subr.bf16.mxu0 0
    %1286 = vmatpush1.bf16.msra.mxu0 %v919
    %1287 = vmatprep.subr.bf16.mxu0 0
    %1288 = vmatpush2.bf16.msra.mxu0 %v934
    %1289 = vmatprep.subr.bf16.mxu0 0
    %1290 = vmatpush2.bf16.msra.mxu0 %v933
    %1291 = vmatprep.subr.bf16.mxu0 0
    %1292 = vmatpush2.bf16.msra.mxu0 %v932
    %1293 = vmatprep.subr.bf16.mxu0 0
    %1294 = vmatpush2.bf16.msra.mxu0 %v931
    %1295 = vmatprep.subr.bf16.mxu0 0
    %1296 = vmatpush2.bf16.msra.mxu0 %v930
    %1297 = vmatprep.subr.bf16.mxu0 0
    %1298 = vmatpush2.bf16.msra.mxu0 %v929
    %1299 = vmatprep.subr.bf16.mxu0 0
    %1300 = vmatpush2.bf16.msra.mxu0 %v928
    %1301 = vmatprep.subr.bf16.mxu0 0
    %1302 = vmatpush2.bf16.msra.mxu0 %v927
    %1303 = vmatprep.mubr.bf16.mxu0 %v320
    %1304 = vmatmul.mubr.bf16.gmra.mxu0 %v319
    %v1305 = vpop.f32.mrf.mxu0
    %v1306 = vadd.f32 %v1266, %v1305
    %v1307 = vpop.f32.mrf.mxu0
    %v1308 = vpop.f32.mrf.mxu0
    %v1309 = vpop.f32.mrf.mxu0
    %1310 = vdwg.mxu0
    %1311 = vmatprep.subr.bf16.mxu0 0
    %1312 = vmatpush1.bf16.msra.mxu0 %v942
    %1313 = vmatprep.subr.bf16.mxu0 0
    %1314 = vmatpush1.bf16.msra.mxu0 %v941
    %1315 = vmatprep.subr.bf16.mxu0 0
    %1316 = vmatpush1.bf16.msra.mxu0 %v940
    %1317 = vmatprep.subr.bf16.mxu0 0
    %1318 = vmatpush1.bf16.msra.mxu0 %v939
    %1319 = vmatprep.subr.bf16.mxu0 0
    %1320 = vmatpush1.bf16.msra.mxu0 %v938
    %1321 = vmatprep.subr.bf16.mxu0 0
    %1322 = vmatpush1.bf16.msra.mxu0 %v937
    %1323 = vmatprep.subr.bf16.mxu0 0
    %1324 = vmatpush1.bf16.msra.mxu0 %v936
    %1325 = vmatprep.subr.bf16.mxu0 0
    %1326 = vmatpush1.bf16.msra.mxu0 %v935
    %1327 = vmatprep.subr.bf16.mxu0 0
    %1328 = vmatpush2.bf16.msra.mxu0 %v950
    %1329 = vmatprep.subr.bf16.mxu0 0
    %1330 = vmatpush2.bf16.msra.mxu0 %v949
    %1331 = vmatprep.subr.bf16.mxu0 0
    %1332 = vmatpush2.bf16.msra.mxu0 %v948
    %1333 = vmatprep.subr.bf16.mxu0 0
    %1334 = vmatpush2.bf16.msra.mxu0 %v947
    %1335 = vmatprep.subr.bf16.mxu0 0
    %1336 = vmatpush2.bf16.msra.mxu0 %v946
    %1337 = vmatprep.subr.bf16.mxu0 0
    %1338 = vmatpush2.bf16.msra.mxu0 %v945
    %1339 = vmatprep.subr.bf16.mxu0 0
    %1340 = vmatpush2.bf16.msra.mxu0 %v944
    %1341 = vmatprep.subr.bf16.mxu0 0
    %1342 = vmatpush2.bf16.msra.mxu0 %v943
    %1343 = vmatprep.mubr.bf16.mxu0 %v322
    %1344 = vmatmul.mubr.bf16.gmra.mxu0 %v321
    %v1345 = vpop.f32.mrf.mxu0
    %v1346 = vadd.f32 %v1306, %v1345
    %v1347 = vpop.f32.mrf.mxu0
    %v1348 = vpop.f32.mrf.mxu0
    %v1349 = vpop.f32.mrf.mxu0
    %1350 = vdwg.mxu0
    %1351 = vmatprep.subr.bf16.mxu0 0
    %1352 = vmatpush1.bf16.msra.mxu0 %v958
    %1353 = vmatprep.subr.bf16.mxu0 0
    %1354 = vmatpush1.bf16.msra.mxu0 %v957
    %1355 = vmatprep.subr.bf16.mxu0 0
    %1356 = vmatpush1.bf16.msra.mxu0 %v956
    %1357 = vmatprep.subr.bf16.mxu0 0
    %1358 = vmatpush1.bf16.msra.mxu0 %v955
    %1359 = vmatprep.subr.bf16.mxu0 0
    %1360 = vmatpush1.bf16.msra.mxu0 %v954
    %1361 = vmatprep.subr.bf16.mxu0 0
    %1362 = vmatpush1.bf16.msra.mxu0 %v953
    %1363 = vmatprep.subr.bf16.mxu0 0
    %1364 = vmatpush1.bf16.msra.mxu0 %v952
    %1365 = vmatprep.subr.bf16.mxu0 0
    %1366 = vmatpush1.bf16.msra.mxu0 %v951
    %1367 = vmatprep.subr.bf16.mxu0 0
    %1368 = vmatpush2.bf16.msra.mxu0 %v966
    %1369 = vmatprep.subr.bf16.mxu0 0
    %1370 = vmatpush2.bf16.msra.mxu0 %v965
    %1371 = vmatprep.subr.bf16.mxu0 0
    %1372 = vmatpush2.bf16.msra.mxu0 %v964
    %1373 = vmatprep.subr.bf16.mxu0 0
    %1374 = vmatpush2.bf16.msra.mxu0 %v963
    %1375 = vmatprep.subr.bf16.mxu0 0
    %1376 = vmatpush2.bf16.msra.mxu0 %v962
    %1377 = vmatprep.subr.bf16.mxu0 0
    %1378 = vmatpush2.bf16.msra.mxu0 %v961
    %1379 = vmatprep.subr.bf16.mxu0 0
    %1380 = vmatpush2.bf16.msra.mxu0 %v960
    %1381 = vmatprep.subr.bf16.mxu0 0
    %1382 = vmatpush2.bf16.msra.mxu0 %v959
    %1383 = vmatprep.mubr.bf16.mxu0 %v324
    %1384 = vmatmul.mubr.bf16.gmra.mxu0 %v323
    %v1385 = vpop.f32.mrf.mxu0
    %v1386 = vadd.f32 %v1346, %v1385
    %v1387 = vpop.f32.mrf.mxu0
    %v1388 = vpop.f32.mrf.mxu0
    %v1389 = vpop.f32.mrf.mxu0
    %1390 = vdwg.mxu0
    %1391 = vmatprep.subr.bf16.mxu0 0
    %1392 = vmatpush1.bf16.msra.mxu0 %v974
    %1393 = vmatprep.subr.bf16.mxu0 0
    %1394 = vmatpush1.bf16.msra.mxu0 %v973
    %1395 = vmatprep.subr.bf16.mxu0 0
    %1396 = vmatpush1.bf16.msra.mxu0 %v972
    %1397 = vmatprep.subr.bf16.mxu0 0
    %1398 = vmatpush1.bf16.msra.mxu0 %v971
    %1399 = vmatprep.subr.bf16.mxu0 0
    %1400 = vmatpush1.bf16.msra.mxu0 %v970
    %1401 = vmatprep.subr.bf16.mxu0 0
    %1402 = vmatpush1.bf16.msra.mxu0 %v969
    %1403 = vmatprep.subr.bf16.mxu0 0
    %1404 = vmatpush1.bf16.msra.mxu0 %v968
    %1405 = vmatprep.subr.bf16.mxu0 0
    %1406 = vmatpush1.bf16.msra.mxu0 %v967
    %1407 = vmatprep.subr.bf16.mxu0 0
    %1408 = vmatpush2.bf16.msra.mxu0 %v982
    %1409 = vmatprep.subr.bf16.mxu0 0
    %1410 = vmatpush2.bf16.msra.mxu0 %v981
    %1411 = vmatprep.subr.bf16.mxu0 0
    %1412 = vmatpush2.bf16.msra.mxu0 %v980
    %1413 = vmatprep.subr.bf16.mxu0 0
    %1414 = vmatpush2.bf16.msra.mxu0 %v979
    %1415 = vmatprep.subr.bf16.mxu0 0
    %1416 = vmatpush2.bf16.msra.mxu0 %v978
    %1417 = vmatprep.subr.bf16.mxu0 0
    %1418 = vmatpush2.bf16.msra.mxu0 %v977
    %1419 = vmatprep.subr.bf16.mxu0 0
    %1420 = vmatpush2.bf16.msra.mxu0 %v976
    %1421 = vmatprep.subr.bf16.mxu0 0
    %1422 = vmatpush2.bf16.msra.mxu0 %v975
    %1423 = vmatprep.mubr.bf16.mxu0 %v326
    %1424 = vmatmul.mubr.bf16.gmra.mxu0 %v325
    %v1425 = vpop.f32.mrf.mxu0
    %v1426 = vadd.f32 %v1386, %v1425
    %v1427 = vpop.f32.mrf.mxu0
    %v1428 = vpop.f32.mrf.mxu0
    %v1429 = vpop.f32.mrf.mxu0
    %1430 = vdwg.mxu0
    %1431 = vst [vmem:[#allocation2] sm:$0xff] %v1426
    // Predicated region
    $region14: #{conv_embedding_forward.19} parent=1 // pred_check
      _
    $region15: #{conv_embedding_forward.19} parent=1 // pred_check_branch
      %1433 = sbr.rel (0) target = $region17
    $region16: #{conv_embedding_forward.19} parent=1 // pred_region
      %s1435 = ssub.s32 128, 128
      %1436 = vsyncadd [#allocation3], %s1435
      %s1438 = sshll.u32 [#allocation2], 4
      %s1439 = int_to_ptr.vmem [resolvable:$true] %s1438
      %1441 = dma.vmem_to_hbm [thread:$0]  %s1439, 128, %s3, [#allocation3]
    $region17: #{conv_embedding_forward.19} parent=1 // pred_fallthru
      _
    // Predicated region
    $region18: #{conv_embedding_forward.19} parent=1 // pred_check
      _
    $region19: #{conv_embedding_forward.19} parent=1 // pred_check_branch
      %1443 = sbr.rel (0) target = $region21
    $region20: #{conv_embedding_forward.19} parent=1 // pred_region
      %1444 = dma.done [#allocation3], 128
    $region21: #{conv_embedding_forward.19} parent=1 // pred_fallthru
      _
    %1445 = vsyncpa [#allocation3], 1

</llo_original>
